<compile_context>
chip_gen: v7x
topology: tpu7x:2x2x1
jax: 0.10.0
libtpu: 0.0.40
codegen_flags: <defaults>
</compile_context>

<pallas_src>
import functools

import jax
import jax.numpy as jnp
import numpy as np
from jax.experimental import pallas as pl
from jax.experimental.pallas import tpu as pltpu

EPS = 1e-5


# --------------------------------------------------------------------------
# In-kernel helpers
# --------------------------------------------------------------------------
def _bn_coeffs(st_ref, g_ref, b_ref, inv_p):
    """Global training-mode BN scale/shift from per-image (sum, sumsq) partials.

    st_ref: (N, 2, C, 1) per-image partials; g_ref/b_ref: (C, 1).
    Returns (scale, shift), each (C, 1) f32, with y_norm = y * scale + shift.
    """
    tot = jnp.sum(st_ref[...], axis=0)          # (2, C, 1)
    mean = tot[0] * inv_p                       # (C, 1)
    var = tot[1] * inv_p - mean * mean          # biased batch variance (f32)
    scale = jax.lax.rsqrt(var + EPS) * g_ref[...]
    shift = b_ref[...] - mean * scale
    return scale, shift


def _write_stats(st_ref, y):
    """Fused stats epilogue: per-channel sum and sum-of-squares of (C, HW)."""
    st_ref[0, :, :] = jnp.sum(y, axis=1, keepdims=True)
    st_ref[1, :, :] = jnp.sum(y * y, axis=1, keepdims=True)


# --------------------------------------------------------------------------
# Kernels (one image tile (C, H*W) per grid step)
# --------------------------------------------------------------------------
def _conv1_kernel(x_ref, w1_ref, y1_ref, st1_ref):
    # 1x1 conv as (Cmid, Cin) @ (Cin, HW); stats of the conv output fused in.
    y = jnp.dot(w1_ref[...], x_ref[...], preferred_element_type=jnp.float32)
    y1_ref[...] = y
    _write_stats(st1_ref, y)


def _conv2_kernel(y1_ref, st1_ref, g1_ref, b1_ref, w2_ref, mask_ref,
                  y2_ref, st2_ref, *, H, W, inv_p):
    HW = H * W
    scale, shift = _bn_coeffs(st1_ref, g1_ref, b1_ref, inv_p)
    a = jnp.maximum(y1_ref[...] * scale + shift, 0.0)          # bn1 + relu
    # 3x3 conv, stride 1, pad 1: 9 taps via lane rolls of the flattened pixel
    # axis + precomputed zero-padding boundary masks; accumulate on the MXU.
    acc = None
    t = 0
    for dy in range(3):
        for dx in range(3):
            off = (dy - 1) * W + (dx - 1)       # flat source offset of tap
            src = a if off == 0 else pltpu.roll(a, shift=(-off) % HW, axis=1)
            if not (dy == 1 and dx == 1):
                src = src * mask_ref[t, :, :]    # zero the padding halo
            tap = jnp.dot(w2_ref[dy, dx, :, :], src,
                          preferred_element_type=jnp.float32)
            acc = tap if acc is None else acc + tap
            t += 1
    y2_ref[...] = acc
    _write_stats(st2_ref, acc)


def _conv3_kernel(y2_ref, st2_ref, g2_ref, b2_ref, w3_ref, y3_ref, st3_ref,
                  *, inv_p):
    scale, shift = _bn_coeffs(st2_ref, g2_ref, b2_ref, inv_p)
    a = jnp.maximum(y2_ref[...] * scale + shift, 0.0)          # bn2 + relu
    y = jnp.dot(w3_ref[...], a, preferred_element_type=jnp.float32)
    y3_ref[...] = y
    _write_stats(st3_ref, y)


def _residual_kernel(y3_ref, st3_ref, g3_ref, b3_ref, x_ref, out_ref, *, inv_p):
    scale, shift = _bn_coeffs(st3_ref, g3_ref, b3_ref, inv_p)
    out = y3_ref[...] * scale + shift + x_ref[...].astype(jnp.float32)
    out_ref[...] = jnp.maximum(out, 0.0).astype(out_ref.dtype)


# --------------------------------------------------------------------------
# Wrapper
# --------------------------------------------------------------------------
def _img_spec(shape):
    """Per-image block: leading batch dim squeezed, block index i along it."""
    nd = len(shape)
    return pl.BlockSpec((None,) + tuple(shape), lambda i: (i,) + (0,) * nd)


def _resident_spec(shape):
    """Whole (small) array, resident in VMEM across the grid."""
    nd = len(shape)
    return pl.BlockSpec(tuple(shape), lambda i: (0,) * nd)


def _tap_masks(H, W):
    """(9, 1, H*W) f32 validity masks for the 3x3 taps (zero-padding halo)."""
    h = np.arange(H * W) // W
    w = np.arange(H * W) % W
    masks = []
    for dy in range(3):
        for dx in range(3):
            valid = ((h + dy - 1 >= 0) & (h + dy - 1 < H) &
                     (w + dx - 1 >= 0) & (w + dx - 1 < W))
            masks.append(valid.astype(np.float32))
    return jnp.asarray(np.stack(masks)[:, None, :])


@jax.jit
def bottleneck_block(x, params):
    """x: (N, Cin, H, W) NCHW (PyTorch layout). Returns (N, 4*Cmid, H, W)."""
    N, Cin, H, W = x.shape
    Cmid = params["w1"].shape[0]
    Cout = params["w3"].shape[0]
    assert Cin == Cout, (
        "identity residual (downsample=None) requires "
        "in_channels == 4 * out_channels")
    HW = H * W
    inv_p = 1.0 / float(N * HW)
    f32 = jnp.float32
    cp = pltpu.CompilerParams(dimension_semantics=("parallel",))

    x_flat = x.reshape(N, Cin, HW)
    w1 = params["w1"]                                   # (Cmid, Cin)
    w2 = jnp.transpose(params["w2"], (2, 3, 0, 1))      # OIHW -> (3, 3, O, I)
    w3 = params["w3"]                                   # (Cout, Cmid)
    g1 = params["g1"].reshape(Cmid, 1); b1 = params["b1"].reshape(Cmid, 1)
    g2 = params["g2"].reshape(Cmid, 1); b2 = params["b2"].reshape(Cmid, 1)
    g3 = params["g3"].reshape(Cout, 1); b3 = params["b3"].reshape(Cout, 1)
    masks = _tap_masks(H, W)                            # (9, 1, HW)

    # Pass 1: conv1 (1x1) + per-image stats of its output.
    y1, st1 = pl.pallas_call(
        _conv1_kernel,
        grid=(N,),
        in_specs=[_img_spec((Cin, HW)), _resident_spec((Cmid, Cin))],
        out_specs=(_img_spec((Cmid, HW)), _img_spec((2, Cmid, 1))),
        out_shape=(jax.ShapeDtypeStruct((N, Cmid, HW), f32),
                   jax.ShapeDtypeStruct((N, 2, Cmid, 1), f32)),
        compiler_params=cp,
    )(x_flat, w1)

    # Pass 2: bn1 + relu + conv2 (3x3, pad 1) + stats of its output.
    y2, st2 = pl.pallas_call(
        functools.partial(_conv2_kernel, H=H, W=W, inv_p=inv_p),
        grid=(N,),
        in_specs=[_img_spec((Cmid, HW)),
                  _resident_spec((N, 2, Cmid, 1)),
                  _resident_spec((Cmid, 1)), _resident_spec((Cmid, 1)),
                  _resident_spec((3, 3, Cmid, Cmid)),
                  _resident_spec((9, 1, HW))],
        out_specs=(_img_spec((Cmid, HW)), _img_spec((2, Cmid, 1))),
        out_shape=(jax.ShapeDtypeStruct((N, Cmid, HW), f32),
                   jax.ShapeDtypeStruct((N, 2, Cmid, 1), f32)),
        compiler_params=cp,
    )(y1, st1, g1, b1, w2, masks)

    # Pass 3: bn2 + relu + conv3 (1x1 expand) + stats of its output.
    y3, st3 = pl.pallas_call(
        functools.partial(_conv3_kernel, inv_p=inv_p),
        grid=(N,),
        in_specs=[_img_spec((Cmid, HW)),
                  _resident_spec((N, 2, Cmid, 1)),
                  _resident_spec((Cmid, 1)), _resident_spec((Cmid, 1)),
                  _resident_spec((Cout, Cmid))],
        out_specs=(_img_spec((Cout, HW)), _img_spec((2, Cout, 1))),
        out_shape=(jax.ShapeDtypeStruct((N, Cout, HW), f32),
                   jax.ShapeDtypeStruct((N, 2, Cout, 1), f32)),
        compiler_params=cp,
    )(y2, st2, g2, b2, w3)

    # Pass 4: bn3 + identity residual + final relu.  Output aliases x.
    out_flat = pl.pallas_call(
        functools.partial(_residual_kernel, inv_p=inv_p),
        grid=(N,),
        in_specs=[_img_spec((Cout, HW)),
                  _resident_spec((N, 2, Cout, 1)),
                  _resident_spec((Cout, 1)), _resident_spec((Cout, 1)),
                  _img_spec((Cout, HW))],
        out_specs=_img_spec((Cout, HW)),
        out_shape=jax.ShapeDtypeStruct((N, Cout, HW), x.dtype),
        input_output_aliases={4: 0},
        compiler_params=cp,
    )(y3, st3, g3, b3, x_flat)

    return out_flat.reshape(N, Cout, H, W)


# --------------------------------------------------------------------------
# Pure-JAX reference (NCHW, lax conv + training-mode BatchNorm)
# --------------------------------------------------------------------------
def ref_forward(x, p):
    def conv(x, w, pad):
        return jax.lax.conv_general_dilated(
            x, w, window_strides=(1, 1), padding=[(pad, pad), (pad, pad)],
            dimension_numbers=("NCHW", "OIHW", "NCHW"))

    def bn(y, g, b):
        m = jnp.mean(y, axis=(0, 2, 3), keepdims=True)
        v = jnp.mean((y - m) ** 2, axis=(0, 2, 3), keepdims=True)
        return ((y - m) * jax.lax.rsqrt(v + EPS) * g.reshape(1, -1, 1, 1)
                + b.reshape(1, -1, 1, 1))

    y = jax.nn.relu(bn(conv(x, p["w1"][:, :, None, None], 0), p["g1"], p["b1"]))
    y = jax.nn.relu(bn(conv(y, p["w2"], 1), p["g2"], p["b2"]))
    y = bn(conv(y, p["w3"][:, :, None, None], 0), p["g3"], p["b3"])
    return jax.nn.relu(y + x)


if __name__ == "__main__":
    key = jax.random.PRNGKey(0)
    N, H, W = 2, 16, 16
    Cmid = 4                    # out_channels
    Cout = Cmid * 4             # BottleneckBlockINet.in_out_ratio = 4
    Cin = Cout                  # identity residual (downsample=None)

    ks = jax.random.split(key, 10)
    x = jax.random.normal(ks[0], (N, Cin, H, W), jnp.float32)

    params = dict(
        w1=jax.random.normal(ks[1], (Cmid, Cin), jnp.float32) / np.sqrt(Cin),
        w2=jax.random.normal(ks[2], (Cmid, Cmid, 3, 3), jnp.float32)
        / np.sqrt(9 * Cmid),
        w3=jax.random.normal(ks[3], (Cout, Cmid), jnp.float32) / np.sqrt(Cmid),
        g1=1.0 + 0.1 * jax.random.normal(ks[4], (Cmid,), jnp.float32),
        b1=0.1 * jax.random.normal(ks[5], (Cmid,), jnp.float32),
        g2=1.0 + 0.1 * jax.random.normal(ks[6], (Cmid,), jnp.float32),
        b2=0.1 * jax.random.normal(ks[7], (Cmid,), jnp.float32),
        g3=1.0 + 0.1 * jax.random.normal(ks[8], (Cout,), jnp.float32),
        b3=0.1 * jax.random.normal(ks[9], (Cout,), jnp.float32),
    )

    out = jax.block_until_ready(bottleneck_block(x, params))
    ref = ref_forward(x, params)
    err = float(jnp.max(jnp.abs(out - ref)))

    assert out.shape == (N, Cout, H, W)
    assert jnp.allclose(out, ref, atol=1e-3, rtol=1e-3), f"max abs err {err}"
    print("KERNEL_OK")
</pallas_src>

<mosaic_0001>
module attributes {stable_mosaic.version = 11 : i64} {
  func.func @_conv1_kernel(%arg0: i32, %arg1: memref<1x16x256xf32, #tpu.memory_space<vmem>>, %arg2: memref<4x16xf32, #tpu.memory_space<vmem>>, %arg3: memref<1x4x256xf32, #tpu.memory_space<vmem>>, %arg4: memref<1x2x4x1xf32, #tpu.memory_space<vmem>>) attributes {dimension_semantics = [#tpu.dimension_semantics<parallel>], iteration_bounds = array<i64: 2>, scalar_prefetch = 0 : i64, scratch_operands = 0 : i64, tpu.core_type = #tpu.core_type<tc>, window_params = [{transform_indices = @transform_0, window_bounds = array<i64: 1, 16, 256>}, {pipeline_mode = #tpu.pipeline_mode<synchronous>, transform_indices = @transform_1, window_bounds = array<i64: 4, 16>}, {transform_indices = @transform_2, window_bounds = array<i64: 1, 4, 256>}, {transform_indices = @transform_3, window_bounds = array<i64: 1, 2, 4, 1>}]} {
    %c0 = arith.constant 0 : index
    %c0_0 = arith.constant 0 : index
    %0 = vector.load %arg2[%c0, %c0_0] : memref<4x16xf32, #tpu.memory_space<vmem>>, vector<4x16xf32>
    %c0_1 = arith.constant 0 : index
    %c0_2 = arith.constant 0 : index
    %c0_3 = arith.constant 0 : index
    %1 = vector.load %arg1[%c0_1, %c0_2, %c0_3] : memref<1x16x256xf32, #tpu.memory_space<vmem>>, vector<1x16x256xf32>
    %2 = vector.shape_cast %1 : vector<1x16x256xf32> to vector<16x256xf32>
    %cst = arith.constant dense<0.000000e+00> : vector<4x256xf32>
    %3 = tpu.matmul %0, %2, %cst {dimension_numbers = #tpu.dot_dimension_numbers<[1], [0], [0], [1], [0, 0, 1, 1], [], []>} : vector<4x16xf32>, vector<16x256xf32>, vector<4x256xf32> -> vector<4x256xf32>
    %c0_4 = arith.constant 0 : index
    %c0_5 = arith.constant 0 : index
    %c0_6 = arith.constant 0 : index
    %4 = vector.load %arg3[%c0_4, %c0_5, %c0_6] : memref<1x4x256xf32, #tpu.memory_space<vmem>>, vector<1x4x256xf32>
    %5 = vector.shape_cast %4 : vector<1x4x256xf32> to vector<4x256xf32>
    %6 = vector.shape_cast %3 : vector<4x256xf32> to vector<1x4x256xf32>
    tpu.vector_store %arg3[%c0_4, %c0_5, %c0_6], %6 {strides = array<i32>} : memref<1x4x256xf32, #tpu.memory_space<vmem>>, vector<1x4x256xf32>,
    %cst_7 = arith.constant dense<0.000000e+00> : vector<4xf32>
    %7 = vector.multi_reduction <add>, %3, %cst_7 [1] : vector<4x256xf32> to vector<4xf32>
    %8 = vector.shape_cast %7 : vector<4xf32> to vector<4x1xf32>
    %c0_8 = arith.constant 0 : index
    %c0_9 = arith.constant 0 : index
    %c0_10 = arith.constant 0 : index
    %c0_11 = arith.constant 0 : index
    %9 = vector.load %arg4[%c0_8, %c0_9, %c0_10, %c0_11] : memref<1x2x4x1xf32, #tpu.memory_space<vmem>>, vector<1x1x4x1xf32>
    %10 = vector.shape_cast %9 : vector<1x1x4x1xf32> to vector<4x1xf32>
    %11 = vector.shape_cast %8 : vector<4x1xf32> to vector<1x1x4x1xf32>
    tpu.vector_store %arg4[%c0_8, %c0_9, %c0_10, %c0_11], %11 {strides = array<i32>} : memref<1x2x4x1xf32, #tpu.memory_space<vmem>>, vector<1x1x4x1xf32>,
    %12 = arith.mulf %3, %3 : vector<4x256xf32>
    %cst_12 = arith.constant dense<0.000000e+00> : vector<4xf32>
    %13 = vector.multi_reduction <add>, %12, %cst_12 [1] : vector<4x256xf32> to vector<4xf32>
    %14 = vector.shape_cast %13 : vector<4xf32> to vector<4x1xf32>
    %c0_13 = arith.constant 0 : index
    %c1 = arith.constant 1 : index
    %c0_14 = arith.constant 0 : index
    %c0_15 = arith.constant 0 : index
    %15 = vector.load %arg4[%c0_13, %c1, %c0_14, %c0_15] : memref<1x2x4x1xf32, #tpu.memory_space<vmem>>, vector<1x1x4x1xf32>
    %16 = vector.shape_cast %15 : vector<1x1x4x1xf32> to vector<4x1xf32>
    %17 = vector.shape_cast %14 : vector<4x1xf32> to vector<1x1x4x1xf32>
    tpu.vector_store %arg4[%c0_13, %c1, %c0_14, %c0_15], %17 {strides = array<i32>} : memref<1x2x4x1xf32, #tpu.memory_space<vmem>>, vector<1x1x4x1xf32>,
    return
  }
  func.func @transform_0(%arg0: i32) -> (i32, i32, i32) {
    %c0_i32 = arith.constant 0 : i32
    %c0_i32_0 = arith.constant 0 : i32
    %c0_i32_1 = arith.constant 0 : i32
    return %arg0, %c0_i32, %c0_i32_0 : i32, i32, i32
  }
  func.func @transform_1(%arg0: i32) -> (i32, i32) {
    %c0_i32 = arith.constant 0 : i32
    %c0_i32_0 = arith.constant 0 : i32
    %c0_i32_1 = arith.constant 0 : i32
    return %c0_i32, %c0_i32_0 : i32, i32
  }
  func.func @transform_2(%arg0: i32) -> (i32, i32, i32) {
    %c0_i32 = arith.constant 0 : i32
    %c0_i32_0 = arith.constant 0 : i32
    %c0_i32_1 = arith.constant 0 : i32
    return %arg0, %c0_i32, %c0_i32_0 : i32, i32, i32
  }
  func.func @transform_3(%arg0: i32) -> (i32, i32, i32, i32) {
    %c0_i32 = arith.constant 0 : i32
    %c0_i32_0 = arith.constant 0 : i32
    %c0_i32_1 = arith.constant 0 : i32
    %c0_i32_2 = arith.constant 0 : i32
    return %arg0, %c0_i32, %c0_i32_0, %c0_i32_1 : i32, i32, i32, i32
  }
}

module attributes {stable_mosaic.version = 11 : i64} {
  func.func @_conv3_kernel(%arg0: i32, %arg1: memref<1x4x256xf32, #tpu.memory_space<vmem>>, %arg2: memref<2x2x4x1xf32, #tpu.memory_space<vmem>>, %arg3: memref<4x1xf32, #tpu.memory_space<vmem>>, %arg4: memref<4x1xf32, #tpu.memory_space<vmem>>, %arg5: memref<16x4xf32, #tpu.memory_space<vmem>>, %arg6: memref<1x16x256xf32, #tpu.memory_space<vmem>>, %arg7: memref<1x2x16x1xf32, #tpu.memory_space<vmem>>) attributes {dimension_semantics = [#tpu.dimension_semantics<parallel>], iteration_bounds = array<i64: 2>, scalar_prefetch = 0 : i64, scratch_operands = 0 : i64, tpu.core_type = #tpu.core_type<tc>, window_params = [{transform_indices = @transform_0, window_bounds = array<i64: 1, 4, 256>}, {pipeline_mode = #tpu.pipeline_mode<synchronous>, transform_indices = @transform_1, window_bounds = array<i64: 2, 2, 4, 1>}, {pipeline_mode = #tpu.pipeline_mode<synchronous>, transform_indices = @transform_2, window_bounds = array<i64: 4, 1>}, {pipeline_mode = #tpu.pipeline_mode<synchronous>, transform_indices = @transform_3, window_bounds = array<i64: 4, 1>}, {pipeline_mode = #tpu.pipeline_mode<synchronous>, transform_indices = @transform_4, window_bounds = array<i64: 16, 4>}, {transform_indices = @transform_5, window_bounds = array<i64: 1, 16, 256>}, {transform_indices = @transform_6, window_bounds = array<i64: 1, 2, 16, 1>}]} {
    %c0 = arith.constant 0 : index
    %c0_0 = arith.constant 0 : index
    %c0_1 = arith.constant 0 : index
    %c0_2 = arith.constant 0 : index
    %0 = vector.load %arg2[%c0, %c0_0, %c0_1, %c0_2] : memref<2x2x4x1xf32, #tpu.memory_space<vmem>>, vector<2x2x4x1xf32>
    %cst = arith.constant dense<0.000000e+00> : vector<2x4x1xf32>
    %1 = vector.multi_reduction <add>, %0, %cst [0] : vector<2x2x4x1xf32> to vector<2x4x1xf32>
    %2 = vector.extract_strided_slice %1 {offsets = [0, 0, 0], sizes = [1, 4, 1], strides = [1, 1, 1]} : vector<2x4x1xf32> to vector<1x4x1xf32>
    %3 = vector.shape_cast %2 : vector<1x4x1xf32> to vector<4x1xf32>
    %cst_3 = arith.constant 0.001953125 : f32
    %4 = vector.broadcast %cst_3 : f32 to vector<4x1xf32>
    %5 = arith.mulf %3, %4 : vector<4x1xf32>
    %6 = vector.extract_strided_slice %1 {offsets = [1, 0, 0], sizes = [1, 4, 1], strides = [1, 1, 1]} : vector<2x4x1xf32> to vector<1x4x1xf32>
    %7 = vector.shape_cast %6 : vector<1x4x1xf32> to vector<4x1xf32>
    %cst_4 = arith.constant 0.001953125 : f32
    %8 = vector.broadcast %cst_4 : f32 to vector<4x1xf32>
    %9 = arith.mulf %7, %8 : vector<4x1xf32>
    %10 = arith.mulf %5, %5 : vector<4x1xf32>
    %11 = arith.subf %9, %10 : vector<4x1xf32>
    %cst_5 = arith.constant 9.99999974E-6 : f32
    %12 = vector.broadcast %cst_5 : f32 to vector<4x1xf32>
    %13 = arith.addf %11, %12 : vector<4x1xf32>
    %14 = math.rsqrt %13 : vector<4x1xf32>
    %c0_6 = arith.constant 0 : index
    %c0_7 = arith.constant 0 : index
    %15 = vector.load %arg3[%c0_6, %c0_7] : memref<4x1xf32, #tpu.memory_space<vmem>>, vector<4x1xf32>
    %16 = arith.mulf %14, %15 : vector<4x1xf32>
    %c0_8 = arith.constant 0 : index
    %c0_9 = arith.constant 0 : index
    %17 = vector.load %arg4[%c0_8, %c0_9] : memref<4x1xf32, #tpu.memory_space<vmem>>, vector<4x1xf32>
    %18 = arith.mulf %5, %16 : vector<4x1xf32>
    %19 = arith.subf %17, %18 : vector<4x1xf32>
    %c0_10 = arith.constant 0 : index
    %c0_11 = arith.constant 0 : index
    %c0_12 = arith.constant 0 : index
    %20 = vector.load %arg1[%c0_10, %c0_11, %c0_12] : memref<1x4x256xf32, #tpu.memory_space<vmem>>, vector<1x4x256xf32>
    %21 = vector.shape_cast %20 : vector<1x4x256xf32> to vector<4x256xf32>
    %22 = vector.broadcast %16 : vector<4x1xf32> to vector<4x256xf32>
    %23 = arith.mulf %21, %22 : vector<4x256xf32>
    %24 = vector.broadcast %19 : vector<4x1xf32> to vector<4x256xf32>
    %25 = arith.addf %23, %24 : vector<4x256xf32>
    %cst_13 = arith.constant 0.000000e+00 : f32
    %26 = vector.broadcast %cst_13 : f32 to vector<4x256xf32>
    %27 = arith.maximumf %25, %26 : vector<4x256xf32>
    %c0_14 = arith.constant 0 : index
    %c0_15 = arith.constant 0 : index
    %28 = vector.load %arg5[%c0_14, %c0_15] : memref<16x4xf32, #tpu.memory_space<vmem>>, vector<16x4xf32>
    %cst_16 = arith.constant dense<0.000000e+00> : vector<16x256xf32>
    %29 = tpu.matmul %28, %27, %cst_16 {dimension_numbers = #tpu.dot_dimension_numbers<[1], [0], [0], [1], [0, 0, 1, 1], [], []>} : vector<16x4xf32>, vector<4x256xf32>, vector<16x256xf32> -> vector<16x256xf32>
    %c0_17 = arith.constant 0 : index
    %c0_18 = arith.constant 0 : index
    %c0_19 = arith.constant 0 : index
    %30 = vector.load %arg6[%c0_17, %c0_18, %c0_19] : memref<1x16x256xf32, #tpu.memory_space<vmem>>, vector<1x16x256xf32>
    %31 = vector.shape_cast %30 : vector<1x16x256xf32> to vector<16x256xf32>
    %32 = vector.shape_cast %29 : vector<16x256xf32> to vector<1x16x256xf32>
    tpu.vector_store %arg6[%c0_17, %c0_18, %c0_19], %32 {strides = array<i32>} : memref<1x16x256xf32, #tpu.memory_space<vmem>>, vector<1x16x256xf32>,
    %cst_20 = arith.constant dense<0.000000e+00> : vector<16xf32>
    %33 = vector.multi_reduction <add>, %29, %cst_20 [1] : vector<16x256xf32> to vector<16xf32>
    %34 = vector.shape_cast %33 : vector<16xf32> to vector<16x1xf32>
    %c0_21 = arith.constant 0 : index
    %c0_22 = arith.constant 0 : index
    %c0_23 = arith.constant 0 : index
    %c0_24 = arith.constant 0 : index
    %35 = vector.load %arg7[%c0_21, %c0_22, %c0_23, %c0_24] : memref<1x2x16x1xf32, #tpu.memory_space<vmem>>, vector<1x1x16x1xf32>
    %36 = vector.shape_cast %35 : vector<1x1x16x1xf32> to vector<16x1xf32>
    %37 = vector.shape_cast %34 : vector<16x1xf32> to vector<1x1x16x1xf32>
    tpu.vector_store %arg7[%c0_21, %c0_22, %c0_23, %c0_24], %37 {strides = array<i32>} : memref<1x2x16x1xf32, #tpu.memory_space<vmem>>, vector<1x1x16x1xf32>,
    %38 = arith.mulf %29, %29 : vector<16x256xf32>
    %cst_25 = arith.constant dense<0.000000e+00> : vector<16xf32>
    %39 = vector.multi_reduction <add>, %38, %cst_25 [1] : vector<16x256xf32> to vector<16xf32>
    %40 = vector.shape_cast %39 : vector<16xf32> to vector<16x1xf32>
    %c0_26 = arith.constant 0 : index
    %c1 = arith.constant 1 : index
    %c0_27 = arith.constant 0 : index
    %c0_28 = arith.constant 0 : index
    %41 = vector.load %arg7[%c0_26, %c1, %c0_27, %c0_28] : memref<1x2x16x1xf32, #tpu.memory_space<vmem>>, vector<1x1x16x1xf32>
    %42 = vector.shape_cast %41 : vector<1x1x16x1xf32> to vector<16x1xf32>
    %43 = vector.shape_cast %40 : vector<16x1xf32> to vector<1x1x16x1xf32>
    tpu.vector_store %arg7[%c0_26, %c1, %c0_27, %c0_28], %43 {strides = array<i32>} : memref<1x2x16x1xf32, #tpu.memory_space<vmem>>, vector<1x1x16x1xf32>,
    return
  }
  func.func @transform_0(%arg0: i32) -> (i32, i32, i32) {
    %c0_i32 = arith.constant 0 : i32
    %c0_i32_0 = arith.constant 0 : i32
    %c0_i32_1 = arith.constant 0 : i32
    return %arg0, %c0_i32, %c0_i32_0 : i32, i32, i32
  }
  func.func @transform_1(%arg0: i32) -> (i32, i32, i32, i32) {
    %c0_i32 = arith.constant 0 : i32
    %c0_i32_0 = arith.constant 0 : i32
    %c0_i32_1 = arith.constant 0 : i32
    %c0_i32_2 = arith.constant 0 : i32
    %c0_i32_3 = arith.constant 0 : i32
    return %c0_i32, %c0_i32_0, %c0_i32_1, %c0_i32_2 : i32, i32, i32, i32
  }
  func.func @transform_2(%arg0: i32) -> (i32, i32) {
    %c0_i32 = arith.constant 0 : i32
    %c0_i32_0 = arith.constant 0 : i32
    %c0_i32_1 = arith.constant 0 : i32
    return %c0_i32, %c0_i32_0 : i32, i32
  }
  func.func @transform_3(%arg0: i32) -> (i32, i32) {
    %c0_i32 = arith.constant 0 : i32
    %c0_i32_0 = arith.constant 0 : i32
    %c0_i32_1 = arith.constant 0 : i32
    return %c0_i32, %c0_i32_0 : i32, i32
  }
  func.func @transform_4(%arg0: i32) -> (i32, i32) {
    %c0_i32 = arith.constant 0 : i32
    %c0_i32_0 = arith.constant 0 : i32
    %c0_i32_1 = arith.constant 0 : i32
    return %c0_i32, %c0_i32_0 : i32, i32
  }
  func.func @transform_5(%arg0: i32) -> (i32, i32, i32) {
    %c0_i32 = arith.constant 0 : i32
    %c0_i32_0 = arith.constant 0 : i32
    %c0_i32_1 = arith.constant 0 : i32
    return %arg0, %c0_i32, %c0_i32_0 : i32, i32, i32
  }
  func.func @transform_6(%arg0: i32) -> (i32, i32, i32, i32) {
    %c0_i32 = arith.constant 0 : i32
    %c0_i32_0 = arith.constant 0 : i32
    %c0_i32_1 = arith.constant 0 : i32
    %c0_i32_2 = arith.constant 0 : i32
    return %arg0, %c0_i32, %c0_i32_0, %c0_i32_1 : i32, i32, i32, i32
  }
}

module attributes {stable_mosaic.version = 11 : i64} {
  func.func @_conv2_kernel(%arg0: i32, %arg1: memref<1x4x256xf32, #tpu.memory_space<vmem>>, %arg2: memref<2x2x4x1xf32, #tpu.memory_space<vmem>>, %arg3: memref<4x1xf32, #tpu.memory_space<vmem>>, %arg4: memref<4x1xf32, #tpu.memory_space<vmem>>, %arg5: memref<3x3x4x4xf32, #tpu.memory_space<vmem>>, %arg6: memref<9x1x256xf32, #tpu.memory_space<vmem>>, %arg7: memref<1x4x256xf32, #tpu.memory_space<vmem>>, %arg8: memref<1x2x4x1xf32, #tpu.memory_space<vmem>>) attributes {dimension_semantics = [#tpu.dimension_semantics<parallel>], iteration_bounds = array<i64: 2>, scalar_prefetch = 0 : i64, scratch_operands = 0 : i64, tpu.core_type = #tpu.core_type<tc>, window_params = [{transform_indices = @transform_0, window_bounds = array<i64: 1, 4, 256>}, {pipeline_mode = #tpu.pipeline_mode<synchronous>, transform_indices = @transform_1, window_bounds = array<i64: 2, 2, 4, 1>}, {pipeline_mode = #tpu.pipeline_mode<synchronous>, transform_indices = @transform_2, window_bounds = array<i64: 4, 1>}, {pipeline_mode = #tpu.pipeline_mode<synchronous>, transform_indices = @transform_3, window_bounds = array<i64: 4, 1>}, {pipeline_mode = #tpu.pipeline_mode<synchronous>, transform_indices = @transform_4, window_bounds = array<i64: 3, 3, 4, 4>}, {pipeline_mode = #tpu.pipeline_mode<synchronous>, transform_indices = @transform_5, window_bounds = array<i64: 9, 1, 256>}, {transform_indices = @transform_6, window_bounds = array<i64: 1, 4, 256>}, {transform_indices = @transform_7, window_bounds = array<i64: 1, 2, 4, 1>}]} {
    %c0 = arith.constant 0 : index
    %c0_0 = arith.constant 0 : index
    %c0_1 = arith.constant 0 : index
    %c0_2 = arith.constant 0 : index
    %0 = vector.load %arg2[%c0, %c0_0, %c0_1, %c0_2] : memref<2x2x4x1xf32, #tpu.memory_space<vmem>>, vector<2x2x4x1xf32>
    %cst = arith.constant dense<0.000000e+00> : vector<2x4x1xf32>
    %1 = vector.multi_reduction <add>, %0, %cst [0] : vector<2x2x4x1xf32> to vector<2x4x1xf32>
    %2 = vector.extract_strided_slice %1 {offsets = [0, 0, 0], sizes = [1, 4, 1], strides = [1, 1, 1]} : vector<2x4x1xf32> to vector<1x4x1xf32>
    %3 = vector.shape_cast %2 : vector<1x4x1xf32> to vector<4x1xf32>
    %cst_3 = arith.constant 0.001953125 : f32
    %4 = vector.broadcast %cst_3 : f32 to vector<4x1xf32>
    %5 = arith.mulf %3, %4 : vector<4x1xf32>
    %6 = vector.extract_strided_slice %1 {offsets = [1, 0, 0], sizes = [1, 4, 1], strides = [1, 1, 1]} : vector<2x4x1xf32> to vector<1x4x1xf32>
    %7 = vector.shape_cast %6 : vector<1x4x1xf32> to vector<4x1xf32>
    %cst_4 = arith.constant 0.001953125 : f32
    %8 = vector.broadcast %cst_4 : f32 to vector<4x1xf32>
    %9 = arith.mulf %7, %8 : vector<4x1xf32>
    %10 = arith.mulf %5, %5 : vector<4x1xf32>
    %11 = arith.subf %9, %10 : vector<4x1xf32>
    %cst_5 = arith.constant 9.99999974E-6 : f32
    %12 = vector.broadcast %cst_5 : f32 to vector<4x1xf32>
    %13 = arith.addf %11, %12 : vector<4x1xf32>
    %14 = math.rsqrt %13 : vector<4x1xf32>
    %c0_6 = arith.constant 0 : index
    %c0_7 = arith.constant 0 : index
    %15 = vector.load %arg3[%c0_6, %c0_7] : memref<4x1xf32, #tpu.memory_space<vmem>>, vector<4x1xf32>
    %16 = arith.mulf %14, %15 : vector<4x1xf32>
    %c0_8 = arith.constant 0 : index
    %c0_9 = arith.constant 0 : index
    %17 = vector.load %arg4[%c0_8, %c0_9] : memref<4x1xf32, #tpu.memory_space<vmem>>, vector<4x1xf32>
    %18 = arith.mulf %5, %16 : vector<4x1xf32>
    %19 = arith.subf %17, %18 : vector<4x1xf32>
    %c0_10 = arith.constant 0 : index
    %c0_11 = arith.constant 0 : index
    %c0_12 = arith.constant 0 : index
    %20 = vector.load %arg1[%c0_10, %c0_11, %c0_12] : memref<1x4x256xf32, #tpu.memory_space<vmem>>, vector<1x4x256xf32>
    %21 = vector.shape_cast %20 : vector<1x4x256xf32> to vector<4x256xf32>
    %22 = vector.broadcast %16 : vector<4x1xf32> to vector<4x256xf32>
    %23 = arith.mulf %21, %22 : vector<4x256xf32>
    %24 = vector.broadcast %19 : vector<4x1xf32> to vector<4x256xf32>
    %25 = arith.addf %23, %24 : vector<4x256xf32>
    %cst_13 = arith.constant 0.000000e+00 : f32
    %26 = vector.broadcast %cst_13 : f32 to vector<4x256xf32>
    %27 = arith.maximumf %25, %26 : vector<4x256xf32>
    %c17_i32 = arith.constant 17 : i32
    %28 = tpu.dynamic_rotate %27 by %c17_i32 dim 1 : vector<4x256xf32>, i32 -> vector<4x256xf32>
    %c0_14 = arith.constant 0 : index
    %c0_15 = arith.constant 0 : index
    %c0_16 = arith.constant 0 : index
    %29 = vector.load %arg6[%c0_14, %c0_15, %c0_16] : memref<9x1x256xf32, #tpu.memory_space<vmem>>, vector<1x1x256xf32>
    %30 = vector.shape_cast %29 : vector<1x1x256xf32> to vector<1x256xf32>
    %31 = vector.broadcast %30 : vector<1x256xf32> to vector<4x256xf32>
    %32 = arith.mulf %28, %31 : vector<4x256xf32>
    %c0_17 = arith.constant 0 : index
    %c0_18 = arith.constant 0 : index
    %c0_19 = arith.constant 0 : index
    %c0_20 = arith.constant 0 : index
    %33 = vector.load %arg5[%c0_17, %c0_18, %c0_19, %c0_20] : memref<3x3x4x4xf32, #tpu.memory_space<vmem>>, vector<1x1x4x4xf32>
    %34 = vector.shape_cast %33 : vector<1x1x4x4xf32> to vector<4x4xf32>
    %cst_21 = arith.constant dense<0.000000e+00> : vector<4x256xf32>
    %35 = tpu.matmul %34, %32, %cst_21 {dimension_numbers = #tpu.dot_dimension_numbers<[1], [0], [0], [1], [0, 0, 1, 1], [], []>} : vector<4x4xf32>, vector<4x256xf32>, vector<4x256xf32> -> vector<4x256xf32>
    %c16_i32 = arith.constant 16 : i32
    %36 = tpu.dynamic_rotate %27 by %c16_i32 dim 1 : vector<4x256xf32>, i32 -> vector<4x256xf32>
    %c1 = arith.constant 1 : index
    %c0_22 = arith.constant 0 : index
    %c0_23 = arith.constant 0 : index
    %37 = vector.load %arg6[%c1, %c0_22, %c0_23] : memref<9x1x256xf32, #tpu.memory_space<vmem>>, vector<1x1x256xf32>
    %38 = vector.shape_cast %37 : vector<1x1x256xf32> to vector<1x256xf32>
    %39 = vector.broadcast %38 : vector<1x256xf32> to vector<4x256xf32>
    %40 = arith.mulf %36, %39 : vector<4x256xf32>
    %c0_24 = arith.constant 0 : index
    %c1_25 = arith.constant 1 : index
    %c0_26 = arith.constant 0 : index
    %c0_27 = arith.constant 0 : index
    %41 = vector.load %arg5[%c0_24, %c1_25, %c0_26, %c0_27] : memref<3x3x4x4xf32, #tpu.memory_space<vmem>>, vector<1x1x4x4xf32>
    %42 = vector.shape_cast %41 : vector<1x1x4x4xf32> to vector<4x4xf32>
    %cst_28 = arith.constant dense<0.000000e+00> : vector<4x256xf32>
    %43 = tpu.matmul %42, %40, %cst_28 {dimension_numbers = #tpu.dot_dimension_numbers<[1], [0], [0], [1], [0, 0, 1, 1], [], []>} : vector<4x4xf32>, vector<4x256xf32>, vector<4x256xf32> -> vector<4x256xf32>
    %44 = arith.addf %35, %43 : vector<4x256xf32>
    %c15_i32 = arith.constant 15 : i32
    %45 = tpu.dynamic_rotate %27 by %c15_i32 dim 1 : vector<4x256xf32>, i32 -> vector<4x256xf32>
    %c2 = arith.constant 2 : index
    %c0_29 = arith.constant 0 : index
    %c0_30 = arith.constant 0 : index
    %46 = vector.load %arg6[%c2, %c0_29, %c0_30] : memref<9x1x256xf32, #tpu.memory_space<vmem>>, vector<1x1x256xf32>
    %47 = vector.shape_cast %46 : vector<1x1x256xf32> to vector<1x256xf32>
    %48 = vector.broadcast %47 : vector<1x256xf32> to vector<4x256xf32>
    %49 = arith.mulf %45, %48 : vector<4x256xf32>
    %c0_31 = arith.constant 0 : index
    %c2_32 = arith.constant 2 : index
    %c0_33 = arith.constant 0 : index
    %c0_34 = arith.constant 0 : index
    %50 = vector.load %arg5[%c0_31, %c2_32, %c0_33, %c0_34] : memref<3x3x4x4xf32, #tpu.memory_space<vmem>>, vector<1x1x4x4xf32>
    %51 = vector.shape_cast %50 : vector<1x1x4x4xf32> to vector<4x4xf32>
    %cst_35 = arith.constant dense<0.000000e+00> : vector<4x256xf32>
    %52 = tpu.matmul %51, %49, %cst_35 {dimension_numbers = #tpu.dot_dimension_numbers<[1], [0], [0], [1], [0, 0, 1, 1], [], []>} : vector<4x4xf32>, vector<4x256xf32>, vector<4x256xf32> -> vector<4x256xf32>
    %53 = arith.addf %44, %52 : vector<4x256xf32>
    %c1_i32 = arith.constant 1 : i32
    %54 = tpu.dynamic_rotate %27 by %c1_i32 dim 1 : vector<4x256xf32>, i32 -> vector<4x256xf32>
    %c3 = arith.constant 3 : index
    %c0_36 = arith.constant 0 : index
    %c0_37 = arith.constant 0 : index
    %55 = vector.load %arg6[%c3, %c0_36, %c0_37] : memref<9x1x256xf32, #tpu.memory_space<vmem>>, vector<1x1x256xf32>
    %56 = vector.shape_cast %55 : vector<1x1x256xf32> to vector<1x256xf32>
    %57 = vector.broadcast %56 : vector<1x256xf32> to vector<4x256xf32>
    %58 = arith.mulf %54, %57 : vector<4x256xf32>
    %c1_38 = arith.constant 1 : index
    %c0_39 = arith.constant 0 : index
    %c0_40 = arith.constant 0 : index
    %c0_41 = arith.constant 0 : index
    %59 = vector.load %arg5[%c1_38, %c0_39, %c0_40, %c0_41] : memref<3x3x4x4xf32, #tpu.memory_space<vmem>>, vector<1x1x4x4xf32>
    %60 = vector.shape_cast %59 : vector<1x1x4x4xf32> to vector<4x4xf32>
    %cst_42 = arith.constant dense<0.000000e+00> : vector<4x256xf32>
    %61 = tpu.matmul %60, %58, %cst_42 {dimension_numbers = #tpu.dot_dimension_numbers<[1], [0], [0], [1], [0, 0, 1, 1], [], []>} : vector<4x4xf32>, vector<4x256xf32>, vector<4x256xf32> -> vector<4x256xf32>
    %62 = arith.addf %53, %61 : vector<4x256xf32>
    %c1_43 = arith.constant 1 : index
    %c1_44 = arith.constant 1 : index
    %c0_45 = arith.constant 0 : index
    %c0_46 = arith.constant 0 : index
    %63 = vector.load %arg5[%c1_43, %c1_44, %c0_45, %c0_46] : memref<3x3x4x4xf32, #tpu.memory_space<vmem>>, vector<1x1x4x4xf32>
    %64 = vector.shape_cast %63 : vector<1x1x4x4xf32> to vector<4x4xf32>
    %cst_47 = arith.constant dense<0.000000e+00> : vector<4x256xf32>
    %65 = tpu.matmul %64, %27, %cst_47 {dimension_numbers = #tpu.dot_dimension_numbers<[1], [0], [0], [1], [0, 0, 1, 1], [], []>} : vector<4x4xf32>, vector<4x256xf32>, vector<4x256xf32> -> vector<4x256xf32>
    %66 = arith.addf %62, %65 : vector<4x256xf32>
    %c255_i32 = arith.constant 255 : i32
    %67 = tpu.dynamic_rotate %27 by %c255_i32 dim 1 : vector<4x256xf32>, i32 -> vector<4x256xf32>
    %c5 = arith.constant 5 : index
    %c0_48 = arith.constant 0 : index
    %c0_49 = arith.constant 0 : index
    %68 = vector.load %arg6[%c5, %c0_48, %c0_49] : memref<9x1x256xf32, #tpu.memory_space<vmem>>, vector<1x1x256xf32>
    %69 = vector.shape_cast %68 : vector<1x1x256xf32> to vector<1x256xf32>
    %70 = vector.broadcast %69 : vector<1x256xf32> to vector<4x256xf32>
    %71 = arith.mulf %67, %70 : vector<4x256xf32>
    %c1_50 = arith.constant 1 : index
    %c2_51 = arith.constant 2 : index
    %c0_52 = arith.constant 0 : index
    %c0_53 = arith.constant 0 : index
    %72 = vector.load %arg5[%c1_50, %c2_51, %c0_52, %c0_53] : memref<3x3x4x4xf32, #tpu.memory_space<vmem>>, vector<1x1x4x4xf32>
    %73 = vector.shape_cast %72 : vector<1x1x4x4xf32> to vector<4x4xf32>
    %cst_54 = arith.constant dense<0.000000e+00> : vector<4x256xf32>
    %74 = tpu.matmul %73, %71, %cst_54 {dimension_numbers = #tpu.dot_dimension_numbers<[1], [0], [0], [1], [0, 0, 1, 1], [], []>} : vector<4x4xf32>, vector<4x256xf32>, vector<4x256xf32> -> vector<4x256xf32>
    %75 = arith.addf %66, %74 : vector<4x256xf32>
    %c241_i32 = arith.constant 241 : i32
    %76 = tpu.dynamic_rotate %27 by %c241_i32 dim 1 : vector<4x256xf32>, i32 -> vector<4x256xf32>
    %c6 = arith.constant 6 : index
    %c0_55 = arith.constant 0 : index
    %c0_56 = arith.constant 0 : index
    %77 = vector.load %arg6[%c6, %c0_55, %c0_56] : memref<9x1x256xf32, #tpu.memory_space<vmem>>, vector<1x1x256xf32>
    %78 = vector.shape_cast %77 : vector<1x1x256xf32> to vector<1x256xf32>
    %79 = vector.broadcast %78 : vector<1x256xf32> to vector<4x256xf32>
    %80 = arith.mulf %76, %79 : vector<4x256xf32>
    %c2_57 = arith.constant 2 : index
    %c0_58 = arith.constant 0 : index
    %c0_59 = arith.constant 0 : index
    %c0_60 = arith.constant 0 : index
    %81 = vector.load %arg5[%c2_57, %c0_58, %c0_59, %c0_60] : memref<3x3x4x4xf32, #tpu.memory_space<vmem>>, vector<1x1x4x4xf32>
    %82 = vector.shape_cast %81 : vector<1x1x4x4xf32> to vector<4x4xf32>
    %cst_61 = arith.constant dense<0.000000e+00> : vector<4x256xf32>
    %83 = tpu.matmul %82, %80, %cst_61 {dimension_numbers = #tpu.dot_dimension_numbers<[1], [0], [0], [1], [0, 0, 1, 1], [], []>} : vector<4x4xf32>, vector<4x256xf32>, vector<4x256xf32> -> vector<4x256xf32>
    %84 = arith.addf %75, %83 : vector<4x256xf32>
    %c240_i32 = arith.constant 240 : i32
    %85 = tpu.dynamic_rotate %27 by %c240_i32 dim 1 : vector<4x256xf32>, i32 -> vector<4x256xf32>
    %c7 = arith.constant 7 : index
    %c0_62 = arith.constant 0 : index
    %c0_63 = arith.constant 0 : index
    %86 = vector.load %arg6[%c7, %c0_62, %c0_63] : memref<9x1x256xf32, #tpu.memory_space<vmem>>, vector<1x1x256xf32>
    %87 = vector.shape_cast %86 : vector<1x1x256xf32> to vector<1x256xf32>
    %88 = vector.broadcast %87 : vector<1x256xf32> to vector<4x256xf32>
    %89 = arith.mulf %85, %88 : vector<4x256xf32>
    %c2_64 = arith.constant 2 : index
    %c1_65 = arith.constant 1 : index
    %c0_66 = arith.constant 0 : index
    %c0_67 = arith.constant 0 : index
    %90 = vector.load %arg5[%c2_64, %c1_65, %c0_66, %c0_67] : memref<3x3x4x4xf32, #tpu.memory_space<vmem>>, vector<1x1x4x4xf32>
    %91 = vector.shape_cast %90 : vector<1x1x4x4xf32> to vector<4x4xf32>
    %cst_68 = arith.constant dense<0.000000e+00> : vector<4x256xf32>
    %92 = tpu.matmul %91, %89, %cst_68 {dimension_numbers = #tpu.dot_dimension_numbers<[1], [0], [0], [1], [0, 0, 1, 1], [], []>} : vector<4x4xf32>, vector<4x256xf32>, vector<4x256xf32> -> vector<4x256xf32>
    %93 = arith.addf %84, %92 : vector<4x256xf32>
    %c239_i32 = arith.constant 239 : i32
    %94 = tpu.dynamic_rotate %27 by %c239_i32 dim 1 : vector<4x256xf32>, i32 -> vector<4x256xf32>
    %c8 = arith.constant 8 : index
    %c0_69 = arith.constant 0 : index
    %c0_70 = arith.constant 0 : index
    %95 = vector.load %arg6[%c8, %c0_69, %c0_70] : memref<9x1x256xf32, #tpu.memory_space<vmem>>, vector<1x1x256xf32>
    %96 = vector.shape_cast %95 : vector<1x1x256xf32> to vector<1x256xf32>
    %97 = vector.broadcast %96 : vector<1x256xf32> to vector<4x256xf32>
    %98 = arith.mulf %94, %97 : vector<4x256xf32>
    %c2_71 = arith.constant 2 : index
    %c2_72 = arith.constant 2 : index
    %c0_73 = arith.constant 0 : index
    %c0_74 = arith.constant 0 : index
    %99 = vector.load %arg5[%c2_71, %c2_72, %c0_73, %c0_74] : memref<3x3x4x4xf32, #tpu.memory_space<vmem>>, vector<1x1x4x4xf32>
    %100 = vector.shape_cast %99 : vector<1x1x4x4xf32> to vector<4x4xf32>
    %cst_75 = arith.constant dense<0.000000e+00> : vector<4x256xf32>
    %101 = tpu.matmul %100, %98, %cst_75 {dimension_numbers = #tpu.dot_dimension_numbers<[1], [0], [0], [1], [0, 0, 1, 1], [], []>} : vector<4x4xf32>, vector<4x256xf32>, vector<4x256xf32> -> vector<4x256xf32>
    %102 = arith.addf %93, %101 : vector<4x256xf32>
    %c0_76 = arith.constant 0 : index
    %c0_77 = arith.constant 0 : index
    %c0_78 = arith.constant 0 : index
    %103 = vector.load %arg7[%c0_76, %c0_77, %c0_78] : memref<1x4x256xf32, #tpu.memory_space<vmem>>, vector<1x4x256xf32>
    %104 = vector.shape_cast %103 : vector<1x4x256xf32> to vector<4x256xf32>
    %105 = vector.shape_cast %102 : vector<4x256xf32> to vector<1x4x256xf32>
    tpu.vector_store %arg7[%c0_76, %c0_77, %c0_78], %105 {strides = array<i32>} : memref<1x4x256xf32, #tpu.memory_space<vmem>>, vector<1x4x256xf32>,
    %cst_79 = arith.constant dense<0.000000e+00> : vector<4xf32>
    %106 = vector.multi_reduction <add>, %102, %cst_79 [1] : vector<4x256xf32> to vector<4xf32>
    %107 = vector.shape_cast %106 : vector<4xf32> to vector<4x1xf32>
    %c0_80 = arith.constant 0 : index
    %c0_81 = arith.constant 0 : index
    %c0_82 = arith.constant 0 : index
    %c0_83 = arith.constant 0 : index
    %108 = vector.load %arg8[%c0_80, %c0_81, %c0_82, %c0_83] : memref<1x2x4x1xf32, #tpu.memory_space<vmem>>, vector<1x1x4x1xf32>
    %109 = vector.shape_cast %108 : vector<1x1x4x1xf32> to vector<4x1xf32>
    %110 = vector.shape_cast %107 : vector<4x1xf32> to vector<1x1x4x1xf32>
    tpu.vector_store %arg8[%c0_80, %c0_81, %c0_82, %c0_83], %110 {strides = array<i32>} : memref<1x2x4x1xf32, #tpu.memory_space<vmem>>, vector<1x1x4x1xf32>,
    %111 = arith.mulf %102, %102 : vector<4x256xf32>
    %cst_84 = arith.constant dense<0.000000e+00> : vector<4xf32>
    %112 = vector.multi_reduction <add>, %111, %cst_84 [1] : vector<4x256xf32> to vector<4xf32>
    %113 = vector.shape_cast %112 : vector<4xf32> to vector<4x1xf32>
    %c0_85 = arith.constant 0 : index
    %c1_86 = arith.constant 1 : index
    %c0_87 = arith.constant 0 : index
    %c0_88 = arith.constant 0 : index
    %114 = vector.load %arg8[%c0_85, %c1_86, %c0_87, %c0_88] : memref<1x2x4x1xf32, #tpu.memory_space<vmem>>, vector<1x1x4x1xf32>
    %115 = vector.shape_cast %114 : vector<1x1x4x1xf32> to vector<4x1xf32>
    %116 = vector.shape_cast %113 : vector<4x1xf32> to vector<1x1x4x1xf32>
    tpu.vector_store %arg8[%c0_85, %c1_86, %c0_87, %c0_88], %116 {strides = array<i32>} : memref<1x2x4x1xf32, #tpu.memory_space<vmem>>, vector<1x1x4x1xf32>,
    return
  }
  func.func @transform_0(%arg0: i32) -> (i32, i32, i32) {
    %c0_i32 = arith.constant 0 : i32
    %c0_i32_0 = arith.constant 0 : i32
    %c0_i32_1 = arith.constant 0 : i32
    return %arg0, %c0_i32, %c0_i32_0 : i32, i32, i32
  }
  func.func @transform_1(%arg0: i32) -> (i32, i32, i32, i32) {
    %c0_i32 = arith.constant 0 : i32
    %c0_i32_0 = arith.constant 0 : i32
    %c0_i32_1 = arith.constant 0 : i32
    %c0_i32_2 = arith.constant 0 : i32
    %c0_i32_3 = arith.constant 0 : i32
    return %c0_i32, %c0_i32_0, %c0_i32_1, %c0_i32_2 : i32, i32, i32, i32
  }
  func.func @transform_2(%arg0: i32) -> (i32, i32) {
    %c0_i32 = arith.constant 0 : i32
    %c0_i32_0 = arith.constant 0 : i32
    %c0_i32_1 = arith.constant 0 : i32
    return %c0_i32, %c0_i32_0 : i32, i32
  }
  func.func @transform_3(%arg0: i32) -> (i32, i32) {
    %c0_i32 = arith.constant 0 : i32
    %c0_i32_0 = arith.constant 0 : i32
    %c0_i32_1 = arith.constant 0 : i32
    return %c0_i32, %c0_i32_0 : i32, i32
  }
  func.func @transform_4(%arg0: i32) -> (i32, i32, i32, i32) {
    %c0_i32 = arith.constant 0 : i32
    %c0_i32_0 = arith.constant 0 : i32
    %c0_i32_1 = arith.constant 0 : i32
    %c0_i32_2 = arith.constant 0 : i32
    %c0_i32_3 = arith.constant 0 : i32
    return %c0_i32, %c0_i32_0, %c0_i32_1, %c0_i32_2 : i32, i32, i32, i32
  }
  func.func @transform_5(%arg0: i32) -> (i32, i32, i32) {
    %c0_i32 = arith.constant 0 : i32
    %c0_i32_0 = arith.constant 0 : i32
    %c0_i32_1 = arith.constant 0 : i32
    %c0_i32_2 = arith.constant 0 : i32
    return %c0_i32, %c0_i32_0, %c0_i32_1 : i32, i32, i32
  }
  func.func @transform_6(%arg0: i32) -> (i32, i32, i32) {
    %c0_i32 = arith.constant 0 : i32
    %c0_i32_0 = arith.constant 0 : i32
    %c0_i32_1 = arith.constant 0 : i32
    return %arg0, %c0_i32, %c0_i32_0 : i32, i32, i32
  }
  func.func @transform_7(%arg0: i32) -> (i32, i32, i32, i32) {
    %c0_i32 = arith.constant 0 : i32
    %c0_i32_0 = arith.constant 0 : i32
    %c0_i32_1 = arith.constant 0 : i32
    %c0_i32_2 = arith.constant 0 : i32
    return %arg0, %c0_i32, %c0_i32_0, %c0_i32_1 : i32, i32, i32, i32
  }
}

module attributes {stable_mosaic.version = 11 : i64} {
  func.func @_residual_kernel(%arg0: i32, %arg1: memref<1x16x256xf32, #tpu.memory_space<vmem>>, %arg2: memref<2x2x16x1xf32, #tpu.memory_space<vmem>>, %arg3: memref<16x1xf32, #tpu.memory_space<vmem>>, %arg4: memref<16x1xf32, #tpu.memory_space<vmem>>, %arg5: memref<1x16x256xf32, #tpu.memory_space<vmem>>, %arg6: memref<1x16x256xf32, #tpu.memory_space<vmem>>) attributes {dimension_semantics = [#tpu.dimension_semantics<parallel>], iteration_bounds = array<i64: 2>, scalar_prefetch = 0 : i64, scratch_operands = 0 : i64, tpu.core_type = #tpu.core_type<tc>, window_params = [{transform_indices = @transform_0, window_bounds = array<i64: 1, 16, 256>}, {pipeline_mode = #tpu.pipeline_mode<synchronous>, transform_indices = @transform_1, window_bounds = array<i64: 2, 2, 16, 1>}, {pipeline_mode = #tpu.pipeline_mode<synchronous>, transform_indices = @transform_2, window_bounds = array<i64: 16, 1>}, {pipeline_mode = #tpu.pipeline_mode<synchronous>, transform_indices = @transform_3, window_bounds = array<i64: 16, 1>}, {transform_indices = @transform_4, window_bounds = array<i64: 1, 16, 256>}, {transform_indices = @transform_5, window_bounds = array<i64: 1, 16, 256>}]} {
    %c0 = arith.constant 0 : index
    %c0_0 = arith.constant 0 : index
    %c0_1 = arith.constant 0 : index
    %c0_2 = arith.constant 0 : index
    %0 = vector.load %arg2[%c0, %c0_0, %c0_1, %c0_2] : memref<2x2x16x1xf32, #tpu.memory_space<vmem>>, vector<2x2x16x1xf32>
    %cst = arith.constant dense<0.000000e+00> : vector<2x16x1xf32>
    %1 = vector.multi_reduction <add>, %0, %cst [0] : vector<2x2x16x1xf32> to vector<2x16x1xf32>
    %2 = vector.extract_strided_slice %1 {offsets = [0, 0, 0], sizes = [1, 16, 1], strides = [1, 1, 1]} : vector<2x16x1xf32> to vector<1x16x1xf32>
    %3 = vector.shape_cast %2 : vector<1x16x1xf32> to vector<16x1xf32>
    %cst_3 = arith.constant 0.001953125 : f32
    %4 = vector.broadcast %cst_3 : f32 to vector<16x1xf32>
    %5 = arith.mulf %3, %4 : vector<16x1xf32>
    %6 = vector.extract_strided_slice %1 {offsets = [1, 0, 0], sizes = [1, 16, 1], strides = [1, 1, 1]} : vector<2x16x1xf32> to vector<1x16x1xf32>
    %7 = vector.shape_cast %6 : vector<1x16x1xf32> to vector<16x1xf32>
    %cst_4 = arith.constant 0.001953125 : f32
    %8 = vector.broadcast %cst_4 : f32 to vector<16x1xf32>
    %9 = arith.mulf %7, %8 : vector<16x1xf32>
    %10 = arith.mulf %5, %5 : vector<16x1xf32>
    %11 = arith.subf %9, %10 : vector<16x1xf32>
    %cst_5 = arith.constant 9.99999974E-6 : f32
    %12 = vector.broadcast %cst_5 : f32 to vector<16x1xf32>
    %13 = arith.addf %11, %12 : vector<16x1xf32>
    %14 = math.rsqrt %13 : vector<16x1xf32>
    %c0_6 = arith.constant 0 : index
    %c0_7 = arith.constant 0 : index
    %15 = vector.load %arg3[%c0_6, %c0_7] : memref<16x1xf32, #tpu.memory_space<vmem>>, vector<16x1xf32>
    %16 = arith.mulf %14, %15 : vector<16x1xf32>
    %c0_8 = arith.constant 0 : index
    %c0_9 = arith.constant 0 : index
    %17 = vector.load %arg4[%c0_8, %c0_9] : memref<16x1xf32, #tpu.memory_space<vmem>>, vector<16x1xf32>
    %18 = arith.mulf %5, %16 : vector<16x1xf32>
    %19 = arith.subf %17, %18 : vector<16x1xf32>
    %c0_10 = arith.constant 0 : index
    %c0_11 = arith.constant 0 : index
    %c0_12 = arith.constant 0 : index
    %20 = vector.load %arg1[%c0_10, %c0_11, %c0_12] : memref<1x16x256xf32, #tpu.memory_space<vmem>>, vector<1x16x256xf32>
    %21 = vector.shape_cast %20 : vector<1x16x256xf32> to vector<16x256xf32>
    %22 = vector.broadcast %16 : vector<16x1xf32> to vector<16x256xf32>
    %23 = arith.mulf %21, %22 : vector<16x256xf32>
    %24 = vector.broadcast %19 : vector<16x1xf32> to vector<16x256xf32>
    %25 = arith.addf %23, %24 : vector<16x256xf32>
    %c0_13 = arith.constant 0 : index
    %c0_14 = arith.constant 0 : index
    %c0_15 = arith.constant 0 : index
    %26 = vector.load %arg5[%c0_13, %c0_14, %c0_15] : memref<1x16x256xf32, #tpu.memory_space<vmem>>, vector<1x16x256xf32>
    %27 = vector.shape_cast %26 : vector<1x16x256xf32> to vector<16x256xf32>
    %28 = arith.addf %25, %27 : vector<16x256xf32>
    %cst_16 = arith.constant 0.000000e+00 : f32
    %29 = vector.broadcast %cst_16 : f32 to vector<16x256xf32>
    %30 = arith.maximumf %28, %29 : vector<16x256xf32>
    %c0_17 = arith.constant 0 : index
    %c0_18 = arith.constant 0 : index
    %c0_19 = arith.constant 0 : index
    %31 = vector.load %arg6[%c0_17, %c0_18, %c0_19] : memref<1x16x256xf32, #tpu.memory_space<vmem>>, vector<1x16x256xf32>
    %32 = vector.shape_cast %31 : vector<1x16x256xf32> to vector<16x256xf32>
    %33 = vector.shape_cast %30 : vector<16x256xf32> to vector<1x16x256xf32>
    tpu.vector_store %arg6[%c0_17, %c0_18, %c0_19], %33 {strides = array<i32>} : memref<1x16x256xf32, #tpu.memory_space<vmem>>, vector<1x16x256xf32>,
    return
  }
  func.func @transform_0(%arg0: i32) -> (i32, i32, i32) {
    %c0_i32 = arith.constant 0 : i32
    %c0_i32_0 = arith.constant 0 : i32
    %c0_i32_1 = arith.constant 0 : i32
    return %arg0, %c0_i32, %c0_i32_0 : i32, i32, i32
  }
  func.func @transform_1(%arg0: i32) -> (i32, i32, i32, i32) {
    %c0_i32 = arith.constant 0 : i32
    %c0_i32_0 = arith.constant 0 : i32
    %c0_i32_1 = arith.constant 0 : i32
    %c0_i32_2 = arith.constant 0 : i32
    %c0_i32_3 = arith.constant 0 : i32
    return %c0_i32, %c0_i32_0, %c0_i32_1, %c0_i32_2 : i32, i32, i32, i32
  }
  func.func @transform_2(%arg0: i32) -> (i32, i32) {
    %c0_i32 = arith.constant 0 : i32
    %c0_i32_0 = arith.constant 0 : i32
    %c0_i32_1 = arith.constant 0 : i32
    return %c0_i32, %c0_i32_0 : i32, i32
  }
  func.func @transform_3(%arg0: i32) -> (i32, i32) {
    %c0_i32 = arith.constant 0 : i32
    %c0_i32_0 = arith.constant 0 : i32
    %c0_i32_1 = arith.constant 0 : i32
    return %c0_i32, %c0_i32_0 : i32, i32
  }
  func.func @transform_4(%arg0: i32) -> (i32, i32, i32) {
    %c0_i32 = arith.constant 0 : i32
    %c0_i32_0 = arith.constant 0 : i32
    %c0_i32_1 = arith.constant 0 : i32
    return %arg0, %c0_i32, %c0_i32_0 : i32, i32, i32
  }
  func.func @transform_5(%arg0: i32) -> (i32, i32, i32) {
    %c0_i32 = arith.constant 0 : i32
    %c0_i32_0 = arith.constant 0 : i32
    %c0_i32_1 = arith.constant 0 : i32
    return %arg0, %c0_i32, %c0_i32_0 : i32, i32, i32
  }
}

</mosaic_0001>

<llo_original>
// kernel: bottleneck_block.6
$region0: #{bottleneck_block.6}
  #allocation0 [shape = 'u32[]', space=smem, size = 0x4, offset = 0x4, fixed_abs, tag = 'smem constant byte address 0x4 - core index']
  #allocation1 [shape = 'u32[144,128]{1,0:T(1,128)}', space=vmem, size = 0x12000, scoped, tag = 'internal scratch']
  %s0 = inlined_call_operand.vmem [shape: f32[2,4,256], index: 0, kind: input, shape index: {}]
  %s1 = inlined_call_operand.vmem [shape: f32[2,2,4,1], index: 1, kind: input, shape index: {}]
  %s2 = inlined_call_operand.vmem [shape: f32[4,1], index: 2, kind: input, shape index: {}]
  %s3 = inlined_call_operand.vmem [shape: f32[4,1], index: 3, kind: input, shape index: {}]
  %s4 = inlined_call_operand.vmem [shape: f32[16,4], index: 4, kind: input, shape index: {}]
  %s5 = inlined_call_operand.vmem [shape: f32[2,16,256], index: 5, kind: output, shape index: {0}]
  %s6 = inlined_call_operand.vmem [shape: f32[2,2,16,1], index: 6, kind: output, shape index: {1}]
  %7 = xla_tuple %s5, %s6
  %s8 = sld [smem:[#allocation0]]
  $region61: #{bottleneck_block.6} parent=0
    _
  %s10 = ssub.s32 1, %s8
  %s11 = scalar_select 0, %s10, %s8
  loop: start=0, step=1, limit=4
  $region2: #{bottleneck_block.6} parent=0 // loop_pre_header
    _
  $region3: #{bottleneck_block.6} parent=0 // loop_header
    %s13 = sphi 0, %s17
    %p14 = scmp.ge.s32.totalorder %s13, 4
    %s23 = sphi 0, %s25
    %s26 = sphi 0, %s23
    %s27 = sphi 0, %s26
    %s43 = sphi 0, %s27
    %s47 = sphi 0, %s47
    %s49 = sphi 0, %s47
    %s50 = sphi 0, %s49
    %s64 = sphi 0, %s50
    %s68 = sphi 0, %s68
    %s70 = sphi 0, %s68
    %s71 = sphi 0, %s70
    %s85 = sphi 0, %s71
    %s89 = sphi 0, %s89
    %s91 = sphi 0, %s89
    %s92 = sphi 0, %s91
    %s106 = sphi 0, %s92
    %s110 = sphi 0, %s110
    %s112 = sphi 0, %s110
    %s113 = sphi 0, %s112
    %s127 = sphi 0, %s113
    %s133 = sphi 0, %s135
    %s136 = sphi 0, %s133
    %s137 = sphi 0, %s136
    %s153 = sphi 0, %s137
    %s159 = sphi 0, %s161
    %s162 = sphi 0, %s159
    %s163 = sphi 0, %s162
    %s179 = sphi 0, %s163
  $region4: #{bottleneck_block.6} parent=0 // loop_header_branch
    %16 = sbr.rel (%p14) target = $region8
  $region5: #{bottleneck_block.6} parent=0 // loop_body
    %s18 = ssub.s32 %s13, 1
    %s19 = ssub.s32 %s13, 2
    %s20 = sadd.s32 %s13, 1
    %s21 = ssub.s32 %s13, %s20
    %p22 = scmp.eq.s32.totalorder %s21, 0
    %s24 = sadd.s32 %s23, 1
    %s25 = scalar_select %p22, %s23, %s24
    %p28 = pneg %p22
    %p29 = scmp.eq.s32.totalorder %s13, 1
    %p30 = por %p28, %p29
    %p31 = scmp.ne.s32.totalorder %s23, %s26
    %p32 = scmp.eq.s32.totalorder %s13, 0
    %p33 = por %p31, %p32
    %p34 = scmp.ne.s32.totalorder %s23, %s26
    %p35 = scmp.eq.s32.totalorder %s18, 1
    %p36 = por %p34, %p35
    %p37 = scmp.ne.s32.totalorder %s26, %s27
    %p38 = scmp.eq.s32.totalorder %s18, 0
    %p39 = por %p37, %p38
    %p40 = scmp.ne.s32.totalorder %s26, %s27
    %p41 = scmp.eq.s32.totalorder %s19, 1
    %p42 = por %p40, %p41
    %p44 = scmp.ne.s32.totalorder %s27, %s43
    %p45 = scmp.eq.s32.totalorder %s19, 0
    %p46 = por %p44, %p45
    %s48 = sadd.s32 %s47, 1
    %p51 = scmp.eq.s32.totalorder %s13, 1
    %p52 = scmp.ne.s32.totalorder %s47, %s49
    %p53 = scmp.eq.s32.totalorder %s13, 0
    %p54 = por %p52, %p53
    %p55 = scmp.ne.s32.totalorder %s47, %s49
    %p56 = scmp.eq.s32.totalorder %s18, 1
    %p57 = por %p55, %p56
    %p58 = scmp.ne.s32.totalorder %s49, %s50
    %p59 = scmp.eq.s32.totalorder %s18, 0
    %p60 = por %p58, %p59
    %p61 = scmp.ne.s32.totalorder %s49, %s50
    %p62 = scmp.eq.s32.totalorder %s19, 1
    %p63 = por %p61, %p62
    %p65 = scmp.ne.s32.totalorder %s50, %s64
    %p66 = scmp.eq.s32.totalorder %s19, 0
    %p67 = por %p65, %p66
    %s69 = sadd.s32 %s68, 1
    %p72 = scmp.eq.s32.totalorder %s13, 1
    %p73 = scmp.ne.s32.totalorder %s68, %s70
    %p74 = scmp.eq.s32.totalorder %s13, 0
    %p75 = por %p73, %p74
    %p76 = scmp.ne.s32.totalorder %s68, %s70
    %p77 = scmp.eq.s32.totalorder %s18, 1
    %p78 = por %p76, %p77
    %p79 = scmp.ne.s32.totalorder %s70, %s71
    %p80 = scmp.eq.s32.totalorder %s18, 0
    %p81 = por %p79, %p80
    %p82 = scmp.ne.s32.totalorder %s70, %s71
    %p83 = scmp.eq.s32.totalorder %s19, 1
    %p84 = por %p82, %p83
    %p86 = scmp.ne.s32.totalorder %s71, %s85
    %p87 = scmp.eq.s32.totalorder %s19, 0
    %p88 = por %p86, %p87
    %s90 = sadd.s32 %s89, 1
    %p93 = scmp.eq.s32.totalorder %s13, 1
    %p94 = scmp.ne.s32.totalorder %s89, %s91
    %p95 = scmp.eq.s32.totalorder %s13, 0
    %p96 = por %p94, %p95
    %p97 = scmp.ne.s32.totalorder %s89, %s91
    %p98 = scmp.eq.s32.totalorder %s18, 1
    %p99 = por %p97, %p98
    %p100 = scmp.ne.s32.totalorder %s91, %s92
    %p101 = scmp.eq.s32.totalorder %s18, 0
    %p102 = por %p100, %p101
    %p103 = scmp.ne.s32.totalorder %s91, %s92
    %p104 = scmp.eq.s32.totalorder %s19, 1
    %p105 = por %p103, %p104
    %p107 = scmp.ne.s32.totalorder %s92, %s106
    %p108 = scmp.eq.s32.totalorder %s19, 0
    %p109 = por %p107, %p108
    %s111 = sadd.s32 %s110, 1
    %p114 = scmp.eq.s32.totalorder %s13, 1
    %p115 = scmp.ne.s32.totalorder %s110, %s112
    %p116 = scmp.eq.s32.totalorder %s13, 0
    %p117 = por %p115, %p116
    %p118 = scmp.ne.s32.totalorder %s110, %s112
    %p119 = scmp.eq.s32.totalorder %s18, 1
    %p120 = por %p118, %p119
    %p121 = scmp.ne.s32.totalorder %s112, %s113
    %p122 = scmp.eq.s32.totalorder %s18, 0
    %p123 = por %p121, %p122
    %p124 = scmp.ne.s32.totalorder %s112, %s113
    %p125 = scmp.eq.s32.totalorder %s19, 1
    %p126 = por %p124, %p125
    %p128 = scmp.ne.s32.totalorder %s113, %s127
    %p129 = scmp.eq.s32.totalorder %s19, 0
    %p130 = por %p128, %p129
    %s131 = ssub.s32 %s13, %s20
    %p132 = scmp.eq.s32.totalorder %s131, 0
    %s134 = sadd.s32 %s133, 1
    %s135 = scalar_select %p132, %s133, %s134
    %p138 = pneg %p132
    %p139 = scmp.eq.s32.totalorder %s13, 1
    %p140 = por %p138, %p139
    %p141 = scmp.ne.s32.totalorder %s133, %s136
    %p142 = scmp.eq.s32.totalorder %s13, 0
    %p143 = por %p141, %p142
    %p144 = scmp.ne.s32.totalorder %s133, %s136
    %p145 = scmp.eq.s32.totalorder %s18, 1
    %p146 = por %p144, %p145
    %p147 = scmp.ne.s32.totalorder %s136, %s137
    %p148 = scmp.eq.s32.totalorder %s18, 0
    %p149 = por %p147, %p148
    %p150 = scmp.ne.s32.totalorder %s136, %s137
    %p151 = scmp.eq.s32.totalorder %s19, 1
    %p152 = por %p150, %p151
    %p154 = scmp.ne.s32.totalorder %s137, %s153
    %p155 = scmp.eq.s32.totalorder %s19, 0
    %p156 = por %p154, %p155
    %s157 = ssub.s32 %s13, %s20
    %p158 = scmp.eq.s32.totalorder %s157, 0
    %s160 = sadd.s32 %s159, 1
    %s161 = scalar_select %p158, %s159, %s160
    %p164 = pneg %p158
    %p165 = scmp.eq.s32.totalorder %s13, 1
    %p166 = por %p164, %p165
    %p167 = scmp.ne.s32.totalorder %s159, %s162
    %p168 = scmp.eq.s32.totalorder %s13, 0
    %p169 = por %p167, %p168
    %p170 = scmp.ne.s32.totalorder %s159, %s162
    %p171 = scmp.eq.s32.totalorder %s18, 1
    %p172 = por %p170, %p171
    %p173 = scmp.ne.s32.totalorder %s162, %s163
    %p174 = scmp.eq.s32.totalorder %s18, 0
    %p175 = por %p173, %p174
    %p176 = scmp.ne.s32.totalorder %s162, %s163
    %p177 = scmp.eq.s32.totalorder %s19, 1
    %p178 = por %p176, %p177
    %p180 = scmp.ne.s32.totalorder %s163, %s179
    %p181 = scmp.eq.s32.totalorder %s19, 0
    %p182 = por %p180, %p181
    %p183 = scmp.le.s32.totalorder 1, %s13
    %p184 = scmp.lt.s32.totalorder %s13, 3
    %p185 = pnand %p183, %p184
    %p186 = pneg %p185
    // Predicated region
    $region9: #{bottleneck_block.6} parent=5 // pred_check
      _
    $region10: #{bottleneck_block.6} parent=5 // pred_check_branch
      %188 = sbr.rel (%p185) target = $region12
    $region11: #{bottleneck_block.6} parent=5 // pred_region
      %s189 = ssub.s32 %s13, 1
      // Predicated region
      $region13: #{bottleneck_block.6} parent=11 // pred_check
        %p190 = pneg %p60
      $region14: #{bottleneck_block.6} parent=11 // pred_check_branch
        %192 = sbr.rel (%p190) target = $region16
      $region15: #{bottleneck_block.6} parent=11 // pred_region
        _
      $region16: #{bottleneck_block.6} parent=11 // pred_fallthru
        _
      // Predicated region
      $region17: #{bottleneck_block.6} parent=11 // pred_check
        %p193 = pneg %p81
      $region18: #{bottleneck_block.6} parent=11 // pred_check_branch
        %195 = sbr.rel (%p193) target = $region20
      $region19: #{bottleneck_block.6} parent=11 // pred_region
        _
      $region20: #{bottleneck_block.6} parent=11 // pred_fallthru
        _
      // Predicated region
      $region21: #{bottleneck_block.6} parent=11 // pred_check
        %p196 = pneg %p102
      $region22: #{bottleneck_block.6} parent=11 // pred_check_branch
        %198 = sbr.rel (%p196) target = $region24
      $region23: #{bottleneck_block.6} parent=11 // pred_region
        _
      $region24: #{bottleneck_block.6} parent=11 // pred_fallthru
        _
      // Predicated region
      $region25: #{bottleneck_block.6} parent=11 // pred_check
        %p199 = pneg %p123
      $region26: #{bottleneck_block.6} parent=11 // pred_check_branch
        %201 = sbr.rel (%p199) target = $region28
      $region27: #{bottleneck_block.6} parent=11 // pred_region
        _
      $region28: #{bottleneck_block.6} parent=11 // pred_fallthru
        _
    $region12: #{bottleneck_block.6} parent=5 // pred_fallthru
      _
    %p202 = scmp.lt.s32.totalorder %s13, 2
    // Predicated region
    $region29: #{bottleneck_block.6} parent=5 // pred_check
      %p203 = pneg %p202
    $region30: #{bottleneck_block.6} parent=5 // pred_check_branch
      %205 = sbr.rel (%p203) target = $region32
    $region31: #{bottleneck_block.6} parent=5 // pred_region
      // Predicated region
      $region33: #{bottleneck_block.6} parent=31 // pred_check
        %p206 = pneg %p33
      $region34: #{bottleneck_block.6} parent=31 // pred_check_branch
        %208 = sbr.rel (%p206) target = $region36
      $region35: #{bottleneck_block.6} parent=31 // pred_region
        %p209 = scmp.lt.s32.totalorder %s13, 1
        %s210 = scalar_select %p209, %s13, 1
        %s211 = smul.addr %s210, 2
        %s212 = smul.addr %s211, 4
        %s213 = scalar_lea.vmem %s0, %s212
      $region36: #{bottleneck_block.6} parent=31 // pred_fallthru
        _
    $region32: #{bottleneck_block.6} parent=5 // pred_fallthru
      _
    %p214 = scmp.le.s32.totalorder 1, %s13
    %p215 = scmp.lt.s32.totalorder %s13, 3
    %p216 = pnand %p214, %p215
    %p217 = pneg %p216
    // Predicated region
    $region37: #{bottleneck_block.6} parent=5 // pred_check
      _
    $region38: #{bottleneck_block.6} parent=5 // pred_check_branch
      %219 = sbr.rel (%p216) target = $region40
    $region39: #{bottleneck_block.6} parent=5 // pred_region
      %s220 = ssub.s32 %s13, 1
      %p221 = scmp.lt.s32.totalorder %s18, 1
      %s222 = scalar_select %p221, %s18, 1
      %s223 = smul.addr %s222, 2
      %s224 = smul.addr %s223, 4
      %s225 = scalar_lea.vmem %s0, %s224
      %p226 = pneg %p39
      %p227 = pneg %p36
      %p228 = pneg %p60
      %p229 = pneg %p57
      %p230 = pneg %p81
      %p231 = pneg %p78
      %p232 = pneg %p102
      %p233 = pneg %p99
      %p234 = pneg %p123
      %p235 = pneg %p120
      %p236 = pneg %p149
      %p237 = pneg %p146
      %p238 = scmp.lt.s32.totalorder %s18, 1
      %s239 = scalar_select %p238, %s18, 1
      %s240 = smul.addr %s239, 4
      %s241 = smul.addr %s240, 8
      %s242 = scalar_lea.vmem %s5, %s241
      %p243 = pneg %p175
      %p244 = pneg %p172
      %p245 = scmp.lt.s32.totalorder %s18, 1
      %s246 = scalar_select %p245, %s18, 1
      %s247 = smul.addr %s246, 4
      %s248 = smul.addr %s247, 8
      %s249 = scalar_lea.vmem %s6, %s248
      %p250 = scmp.lt.s32.totalorder %s18, 1
      %s251 = scalar_select %p250, %s18, 1
      %s252 = smul.addr %s251, 2
      %s253 = smul.addr %s252, 4
      %s254 = scalar_lea.vmem %s0, %s253
      %p255 = scmp.lt.s32.totalorder %s18, 1
      %s256 = scalar_select %p255, %s18, 1
      %s257 = smul.addr %s256, 4
      %s258 = smul.addr %s257, 8
      %s259 = scalar_lea.vmem %s5, %s258
      %p260 = scmp.lt.s32.totalorder %s18, 1
      %s261 = scalar_select %p260, %s18, 1
      %s262 = smul.addr %s261, 4
      %s263 = smul.addr %s262, 8
      %s264 = scalar_lea.vmem %s6, %s263
      %v265 = vld [vmem:[%s1] sm:$0xf]
      %v266 = vld [vmem:[%s1 + $0x4] sm:$0xf]
      %v267 = vld [vmem:[%s1 + $0x8] sm:$0xf]
      %v268 = vld [vmem:[%s1 + $0xc] sm:$0xf]
      %vm269 = vcmask 3072
      %v270 = vsel %vm269, %v265, 0.0
      %v271 = vsel %vm269, %v267, 0.0
      %v272 = vadd.f32 %v270, %v271
      %v273 = vsel %vm269, %v266, 0.0
      %v274 = vsel %vm269, %v268, 0.0
      %v275 = vadd.f32 %v273, %v274
      %v276 = vmul.f32 %v272, 0.001953125
      %v277 = vmul.f32 %v275, 0.001953125
      %v278 = vmul.f32 %v276, %v276
      %v279 = vsub.f32 %v277, %v278
      %v280 = vadd.f32 %v279, 1e-05
      %v281 = vrsqrt.pop %v280
      %v282 = vld [vmem:[%s2] sm:$0xf]
      %v283 = vmul.f32 %v281, %v282
      %v284 = vld [vmem:[%s3] sm:$0xf]
      %v285 = vmul.f32 %v276, %v283
      %v286 = vsub.f32 %v284, %v285
      %v287 = vld [vmem:[%s254] sm:$0xff]
      %289 = vset.pattern.permute.xlu0 0
      %290 = vperm.xlu0 %289, %v283
      %v291 = vpop.permute.xlu0 %290
      %v293 = vunpack.c.l.s4 839922192
      %v294 = vunpack.c.0.s8 %v293
      %v295 = vlaneseq
      %v296 = vshrl.u32 %v295, 7
      %v297 = vsub.s32 %v294, %v296
      %v298 = vrot.slane %v291, %v297
      %v300 = vmul.f32 %v287, %v298
      %302 = vset.pattern.permute.xlu0 0
      %303 = vperm.xlu0 %302, %v286
      %v304 = vpop.permute.xlu0 %303
      %v306 = vunpack.c.l.s4 839922192
      %v307 = vunpack.c.0.s8 %v306
      %v308 = vlaneseq
      %v309 = vshrl.u32 %v308, 7
      %v310 = vsub.s32 %v307, %v309
      %v311 = vrot.slane %v304, %v310
      %v313 = vadd.f32 %v300, %v311
      %v314 = vmax.f32 %v313, 0.0
      %v315 = vld [vmem:[%s4] sm:$0xff]
      %v316 = vld [vmem:[%s4 + $0x8] sm:$0xff]
      %v318 = vcombine.high %v314, %v314
      %vm319 = vcmask 31744
      %v321 = vsel %vm319, %v315, 0
      %v324 = vsel %vm319, %v316, 0
      %vm326 = vcmask 1043456
      %v327 = vsel %vm326, %v314, 0
      %v329 = vsel %vm326, %v318, 0
      %331 = vmatprep.subr.mxu0 %v329
      %332 = vmatpush1.msra.mxu0 %v327
      %333 = vmatprep.subr.mxu0 0.0
      %334 = vmatpush1.msra.mxu0 0.0
      %335 = vmatprep.subr.mxu0 0.0
      %336 = vmatpush1.msra.mxu0 0.0
      %337 = vmatprep.subr.mxu0 0.0
      %338 = vmatpush1.msra.mxu0 0.0
      %339 = vmatprep.subr.mxu0 0.0
      %340 = vmatpush1.msra.mxu0 0.0
      %341 = vmatprep.subr.mxu0 0.0
      %342 = vmatpush1.msra.mxu0 0.0
      %343 = vmatprep.subr.mxu0 0.0
      %344 = vmatpush1.msra.mxu0 0.0
      %345 = vmatprep.subr.mxu0 0.0
      %346 = vmatpush1.msra.mxu0 0.0
      %347 = vmatprep.subr.mxu0 0.0
      %348 = vmatpush1.msra.mxu0 0.0
      %349 = vmatprep.subr.mxu0 0.0
      %350 = vmatpush1.msra.mxu0 0.0
      %351 = vmatprep.subr.mxu0 0.0
      %352 = vmatpush1.msra.mxu0 0.0
      %353 = vmatprep.subr.mxu0 0.0
      %354 = vmatpush1.msra.mxu0 0.0
      %355 = vmatprep.subr.mxu0 0.0
      %356 = vmatpush1.msra.mxu0 0.0
      %357 = vmatprep.subr.mxu0 0.0
      %358 = vmatpush1.msra.mxu0 0.0
      %359 = vmatprep.subr.mxu0 0.0
      %360 = vmatpush1.msra.mxu0 0.0
      %361 = vmatprep.subr.mxu0 0.0
      %362 = vmatpush1.msra.mxu0 0.0
      %363 = vmatprep.subr.mxu0 0.0
      %364 = vmatpush1.msra.mxu0 0.0
      %365 = vmatprep.subr.mxu0 0.0
      %366 = vmatpush1.msra.mxu0 0.0
      %367 = vmatprep.subr.mxu0 0.0
      %368 = vmatpush1.msra.mxu0 0.0
      %369 = vmatprep.subr.mxu0 0.0
      %370 = vmatpush1.msra.mxu0 0.0
      %371 = vmatprep.subr.mxu0 0.0
      %372 = vmatpush1.msra.mxu0 0.0
      %373 = vmatprep.subr.mxu0 0.0
      %374 = vmatpush1.msra.mxu0 0.0
      %375 = vmatprep.subr.mxu0 0.0
      %376 = vmatpush1.msra.mxu0 0.0
      %377 = vmatprep.subr.mxu0 0.0
      %378 = vmatpush1.msra.mxu0 0.0
      %379 = vmatprep.subr.mxu0 0.0
      %380 = vmatpush1.msra.mxu0 0.0
      %381 = vmatprep.subr.mxu0 0.0
      %382 = vmatpush1.msra.mxu0 0.0
      %383 = vmatprep.subr.mxu0 0.0
      %384 = vmatpush1.msra.mxu0 0.0
      %385 = vmatprep.subr.mxu0 0.0
      %386 = vmatpush1.msra.mxu0 0.0
      %387 = vmatprep.subr.mxu0 0.0
      %388 = vmatpush1.msra.mxu0 0.0
      %389 = vmatprep.subr.mxu0 0.0
      %390 = vmatpush1.msra.mxu0 0.0
      %391 = vmatprep.subr.mxu0 0.0
      %392 = vmatpush1.msra.mxu0 0.0
      %393 = vmatprep.subr.mxu0 0.0
      %394 = vmatpush1.msra.mxu0 0.0
      %395 = vmatprep.mubr.f32.mxu0 0.0
      %396 = vmatmul.mubr.f32.gmra.mrb[0].mxu0 %v321
      %v397 = vpop.f32.mrb[0].mxu0
      %v398 = vadd.f32 0.0, %v397
      %v399 = vpop.f32.mrb[0].mxu0
      %v400 = vadd.f32 0.0, %v399
      %401 = vmatprep.mubr.f32.mxu0 0.0
      %402 = vmatmul.mubr.f32.gmra.mrb[0].mxu0 %v324
      %v403 = vpop.f32.mrb[0].mxu0
      %v404 = vadd.f32 0.0, %v403
      %v405 = vpop.f32.mrb[0].mxu0
      %v406 = vadd.f32 0.0, %v405
      %407 = vdwg.mxu0
      %408 = vst [vmem:[%s259] sm:$0xff] %v398
      %409 = vst [vmem:[%s259 + $0x8] sm:$0xff] %v400
      %410 = vst [vmem:[%s259 + $0x10] sm:$0xff] %v404
      %411 = vst [vmem:[%s259 + $0x18] sm:$0xff] %v406
      %v412 = vadd.f32 %v398, %v400
      %413 = vadd.xlane.f32.xlu0 %v412
      %v414 = vpop.xlane.xlu0 %413
      %v415 = vadd.f32 %v404, %v406
      %416 = vadd.xlane.f32.xlu0 %v415
      %v417 = vpop.xlane.xlu0 %416
      %vm418 = vcmask 7168
      %419 = vst.msk [vmem:[%s264] sm:$0xff] %vm418, %v414
      %420 = vst.msk [vmem:[%s264 + $0x8] sm:$0xff] %vm418, %v417
      %v421 = vmul.f32 %v398, %v398
      %v422 = vmul.f32 %v400, %v400
      %v423 = vmul.f32 %v404, %v404
      %v424 = vmul.f32 %v406, %v406
      %v425 = vadd.f32 %v421, %v422
      %426 = vadd.xlane.f32.xlu0 %v425
      %v427 = vpop.xlane.xlu0 %426
      %v428 = vadd.f32 %v423, %v424
      %429 = vadd.xlane.f32.xlu0 %v428
      %v430 = vpop.xlane.xlu0 %429
      %s431 = scalar_lea.vmem %s264, 16
      %432 = vst.msk [vmem:[%s431] sm:$0xff] %vm418, %v427
      %433 = vst.msk [vmem:[%s431 + $0x8] sm:$0xff] %vm418, %v430
      %p434 = scmp.lt.s32.totalorder %s18, 1
      %s435 = scalar_select %p434, %s18, 1
      %s436 = smul.addr %s435, 4
      %s437 = smul.addr %s436, 8
      %s438 = scalar_lea.vmem %s5, %s437
      %p439 = scmp.lt.s32.totalorder %s18, 1
      %s440 = scalar_select %p439, %s18, 1
      %s441 = smul.addr %s440, 4
      %s442 = smul.addr %s441, 8
      %s443 = scalar_lea.vmem %s6, %s442
      // Predicated region
      $region41: #{bottleneck_block.6} parent=39 // pred_check
        %p444 = pneg %p146
      $region42: #{bottleneck_block.6} parent=39 // pred_check_branch
        %446 = sbr.rel (%p444) target = $region44
      $region43: #{bottleneck_block.6} parent=39 // pred_region
        _
      $region44: #{bottleneck_block.6} parent=39 // pred_fallthru
        _
      // Predicated region
      $region45: #{bottleneck_block.6} parent=39 // pred_check
        %p447 = pneg %p172
      $region46: #{bottleneck_block.6} parent=39 // pred_check_branch
        %449 = sbr.rel (%p447) target = $region48
      $region47: #{bottleneck_block.6} parent=39 // pred_region
        _
      $region48: #{bottleneck_block.6} parent=39 // pred_fallthru
        _
    $region40: #{bottleneck_block.6} parent=5 // pred_fallthru
      _
    %p450 = scmp.le.s32.totalorder 2, %s13
    // Predicated region
    $region49: #{bottleneck_block.6} parent=5 // pred_check
      %p451 = pneg %p450
    $region50: #{bottleneck_block.6} parent=5 // pred_check_branch
      %453 = sbr.rel (%p451) target = $region52
    $region51: #{bottleneck_block.6} parent=5 // pred_region
      %s454 = ssub.s32 %s13, 2
      // Predicated region
      $region53: #{bottleneck_block.6} parent=51 // pred_check
        %p455 = pneg %p152
      $region54: #{bottleneck_block.6} parent=51 // pred_check_branch
        %457 = sbr.rel (%p455) target = $region56
      $region55: #{bottleneck_block.6} parent=51 // pred_region
        %p458 = scmp.lt.s32.totalorder %s19, 1
        %s459 = scalar_select %p458, %s19, 1
        %s460 = smul.addr %s459, 4
        %s461 = smul.addr %s460, 8
        %s462 = scalar_lea.vmem %s5, %s461
      $region56: #{bottleneck_block.6} parent=51 // pred_fallthru
        _
      // Predicated region
      $region57: #{bottleneck_block.6} parent=51 // pred_check
        %p463 = pneg %p178
      $region58: #{bottleneck_block.6} parent=51 // pred_check_branch
        %465 = sbr.rel (%p463) target = $region60
      $region59: #{bottleneck_block.6} parent=51 // pred_region
        %p466 = scmp.lt.s32.totalorder %s19, 1
        %s467 = scalar_select %p466, %s19, 1
        %s468 = smul.addr %s467, 4
        %s469 = smul.addr %s468, 8
        %s470 = scalar_lea.vmem %s6, %s469
      $region60: #{bottleneck_block.6} parent=51 // pred_fallthru
        _
    $region52: #{bottleneck_block.6} parent=5 // pred_fallthru
      _
  $region6: #{bottleneck_block.6} parent=0 // loop_footer
    %s17 = sadd.s32 1, %s13
  $region7: #{bottleneck_block.6} parent=0 // loop_footer_branch
    %12 = sbr.rel target = $region3
  $region8: #{bottleneck_block.6} parent=0 // loop_exit
    _

// kernel: bottleneck_block.4
$region0: #{bottleneck_block.4}
  #allocation0 [shape = 'u32[]', space=smem, size = 0x4, offset = 0x4, fixed_abs, tag = 'smem constant byte address 0x4 - core index']
  #allocation1 [shape = 'u32[144,128]{1,0:T(1,128)}', space=vmem, size = 0x12000, scoped, tag = 'internal scratch']
  %s0 = inlined_call_operand.vmem [shape: f32[2,16,256], index: 0, kind: input, shape index: {}]
  %s1 = inlined_call_operand.vmem [shape: f32[4,16], index: 1, kind: input, shape index: {}]
  %s2 = inlined_call_operand.vmem [shape: f32[2,4,256], index: 2, kind: output, shape index: {0}]
  %s3 = inlined_call_operand.vmem [shape: f32[2,2,4,1], index: 3, kind: output, shape index: {1}]
  %4 = xla_tuple %s2, %s3
  %s5 = sld [smem:[#allocation0]]
  $region49: #{bottleneck_block.4} parent=0
    _
  %s7 = ssub.s32 1, %s5
  %s8 = scalar_select 0, %s7, %s5
  loop: start=0, step=1, limit=4
  $region2: #{bottleneck_block.4} parent=0 // loop_pre_header
    _
  $region3: #{bottleneck_block.4} parent=0 // loop_header
    %s10 = sphi 0, %s14
    %p11 = scmp.ge.s32.totalorder %s10, 4
    %s20 = sphi 0, %s22
    %s23 = sphi 0, %s20
    %s24 = sphi 0, %s23
    %s40 = sphi 0, %s24
    %s44 = sphi 0, %s44
    %s46 = sphi 0, %s44
    %s47 = sphi 0, %s46
    %s61 = sphi 0, %s47
    %s67 = sphi 0, %s69
    %s70 = sphi 0, %s67
    %s71 = sphi 0, %s70
    %s87 = sphi 0, %s71
    %s93 = sphi 0, %s95
    %s96 = sphi 0, %s93
    %s97 = sphi 0, %s96
    %s113 = sphi 0, %s97
  $region4: #{bottleneck_block.4} parent=0 // loop_header_branch
    %13 = sbr.rel (%p11) target = $region8
  $region5: #{bottleneck_block.4} parent=0 // loop_body
    %s15 = ssub.s32 %s10, 1
    %s16 = ssub.s32 %s10, 2
    %s17 = sadd.s32 %s10, 1
    %s18 = ssub.s32 %s10, %s17
    %p19 = scmp.eq.s32.totalorder %s18, 0
    %s21 = sadd.s32 %s20, 1
    %s22 = scalar_select %p19, %s20, %s21
    %p25 = pneg %p19
    %p26 = scmp.eq.s32.totalorder %s10, 1
    %p27 = por %p25, %p26
    %p28 = scmp.ne.s32.totalorder %s20, %s23
    %p29 = scmp.eq.s32.totalorder %s10, 0
    %p30 = por %p28, %p29
    %p31 = scmp.ne.s32.totalorder %s20, %s23
    %p32 = scmp.eq.s32.totalorder %s15, 1
    %p33 = por %p31, %p32
    %p34 = scmp.ne.s32.totalorder %s23, %s24
    %p35 = scmp.eq.s32.totalorder %s15, 0
    %p36 = por %p34, %p35
    %p37 = scmp.ne.s32.totalorder %s23, %s24
    %p38 = scmp.eq.s32.totalorder %s16, 1
    %p39 = por %p37, %p38
    %p41 = scmp.ne.s32.totalorder %s24, %s40
    %p42 = scmp.eq.s32.totalorder %s16, 0
    %p43 = por %p41, %p42
    %s45 = sadd.s32 %s44, 1
    %p48 = scmp.eq.s32.totalorder %s10, 1
    %p49 = scmp.ne.s32.totalorder %s44, %s46
    %p50 = scmp.eq.s32.totalorder %s10, 0
    %p51 = por %p49, %p50
    %p52 = scmp.ne.s32.totalorder %s44, %s46
    %p53 = scmp.eq.s32.totalorder %s15, 1
    %p54 = por %p52, %p53
    %p55 = scmp.ne.s32.totalorder %s46, %s47
    %p56 = scmp.eq.s32.totalorder %s15, 0
    %p57 = por %p55, %p56
    %p58 = scmp.ne.s32.totalorder %s46, %s47
    %p59 = scmp.eq.s32.totalorder %s16, 1
    %p60 = por %p58, %p59
    %p62 = scmp.ne.s32.totalorder %s47, %s61
    %p63 = scmp.eq.s32.totalorder %s16, 0
    %p64 = por %p62, %p63
    %s65 = ssub.s32 %s10, %s17
    %p66 = scmp.eq.s32.totalorder %s65, 0
    %s68 = sadd.s32 %s67, 1
    %s69 = scalar_select %p66, %s67, %s68
    %p72 = pneg %p66
    %p73 = scmp.eq.s32.totalorder %s10, 1
    %p74 = por %p72, %p73
    %p75 = scmp.ne.s32.totalorder %s67, %s70
    %p76 = scmp.eq.s32.totalorder %s10, 0
    %p77 = por %p75, %p76
    %p78 = scmp.ne.s32.totalorder %s67, %s70
    %p79 = scmp.eq.s32.totalorder %s15, 1
    %p80 = por %p78, %p79
    %p81 = scmp.ne.s32.totalorder %s70, %s71
    %p82 = scmp.eq.s32.totalorder %s15, 0
    %p83 = por %p81, %p82
    %p84 = scmp.ne.s32.totalorder %s70, %s71
    %p85 = scmp.eq.s32.totalorder %s16, 1
    %p86 = por %p84, %p85
    %p88 = scmp.ne.s32.totalorder %s71, %s87
    %p89 = scmp.eq.s32.totalorder %s16, 0
    %p90 = por %p88, %p89
    %s91 = ssub.s32 %s10, %s17
    %p92 = scmp.eq.s32.totalorder %s91, 0
    %s94 = sadd.s32 %s93, 1
    %s95 = scalar_select %p92, %s93, %s94
    %p98 = pneg %p92
    %p99 = scmp.eq.s32.totalorder %s10, 1
    %p100 = por %p98, %p99
    %p101 = scmp.ne.s32.totalorder %s93, %s96
    %p102 = scmp.eq.s32.totalorder %s10, 0
    %p103 = por %p101, %p102
    %p104 = scmp.ne.s32.totalorder %s93, %s96
    %p105 = scmp.eq.s32.totalorder %s15, 1
    %p106 = por %p104, %p105
    %p107 = scmp.ne.s32.totalorder %s96, %s97
    %p108 = scmp.eq.s32.totalorder %s15, 0
    %p109 = por %p107, %p108
    %p110 = scmp.ne.s32.totalorder %s96, %s97
    %p111 = scmp.eq.s32.totalorder %s16, 1
    %p112 = por %p110, %p111
    %p114 = scmp.ne.s32.totalorder %s97, %s113
    %p115 = scmp.eq.s32.totalorder %s16, 0
    %p116 = por %p114, %p115
    %p117 = scmp.le.s32.totalorder 1, %s10
    %p118 = scmp.lt.s32.totalorder %s10, 3
    %p119 = pnand %p117, %p118
    %p120 = pneg %p119
    // Predicated region
    $region9: #{bottleneck_block.4} parent=5 // pred_check
      _
    $region10: #{bottleneck_block.4} parent=5 // pred_check_branch
      %122 = sbr.rel (%p119) target = $region12
    $region11: #{bottleneck_block.4} parent=5 // pred_region
      %s123 = ssub.s32 %s10, 1
      // Predicated region
      $region13: #{bottleneck_block.4} parent=11 // pred_check
        %p124 = pneg %p57
      $region14: #{bottleneck_block.4} parent=11 // pred_check_branch
        %126 = sbr.rel (%p124) target = $region16
      $region15: #{bottleneck_block.4} parent=11 // pred_region
        _
      $region16: #{bottleneck_block.4} parent=11 // pred_fallthru
        _
    $region12: #{bottleneck_block.4} parent=5 // pred_fallthru
      _
    %p127 = scmp.lt.s32.totalorder %s10, 2
    // Predicated region
    $region17: #{bottleneck_block.4} parent=5 // pred_check
      %p128 = pneg %p127
    $region18: #{bottleneck_block.4} parent=5 // pred_check_branch
      %130 = sbr.rel (%p128) target = $region20
    $region19: #{bottleneck_block.4} parent=5 // pred_region
      // Predicated region
      $region21: #{bottleneck_block.4} parent=19 // pred_check
        %p131 = pneg %p30
      $region22: #{bottleneck_block.4} parent=19 // pred_check_branch
        %133 = sbr.rel (%p131) target = $region24
      $region23: #{bottleneck_block.4} parent=19 // pred_region
        %p134 = scmp.lt.s32.totalorder %s10, 1
        %s135 = scalar_select %p134, %s10, 1
        %s136 = smul.addr %s135, 4
        %s137 = smul.addr %s136, 8
        %s138 = scalar_lea.vmem %s0, %s137
      $region24: #{bottleneck_block.4} parent=19 // pred_fallthru
        _
    $region20: #{bottleneck_block.4} parent=5 // pred_fallthru
      _
    %p139 = scmp.le.s32.totalorder 1, %s10
    %p140 = scmp.lt.s32.totalorder %s10, 3
    %p141 = pnand %p139, %p140
    %p142 = pneg %p141
    // Predicated region
    $region25: #{bottleneck_block.4} parent=5 // pred_check
      _
    $region26: #{bottleneck_block.4} parent=5 // pred_check_branch
      %144 = sbr.rel (%p141) target = $region28
    $region27: #{bottleneck_block.4} parent=5 // pred_region
      %s145 = ssub.s32 %s10, 1
      %p146 = scmp.lt.s32.totalorder %s15, 1
      %s147 = scalar_select %p146, %s15, 1
      %s148 = smul.addr %s147, 4
      %s149 = smul.addr %s148, 8
      %s150 = scalar_lea.vmem %s0, %s149
      %p151 = pneg %p36
      %p152 = pneg %p33
      %p153 = pneg %p57
      %p154 = pneg %p54
      %p155 = pneg %p83
      %p156 = pneg %p80
      %p157 = scmp.lt.s32.totalorder %s15, 1
      %s158 = scalar_select %p157, %s15, 1
      %s159 = smul.addr %s158, 2
      %s160 = smul.addr %s159, 4
      %s161 = scalar_lea.vmem %s2, %s160
      %p162 = pneg %p109
      %p163 = pneg %p106
      %p164 = scmp.lt.s32.totalorder %s15, 1
      %s165 = scalar_select %p164, %s15, 1
      %s166 = smul.addr %s165, 2
      %s167 = smul.addr %s166, 4
      %s168 = scalar_lea.vmem %s3, %s167
      %p169 = scmp.lt.s32.totalorder %s15, 1
      %s170 = scalar_select %p169, %s15, 1
      %s171 = smul.addr %s170, 4
      %s172 = smul.addr %s171, 8
      %s173 = scalar_lea.vmem %s0, %s172
      %p174 = scmp.lt.s32.totalorder %s15, 1
      %s175 = scalar_select %p174, %s15, 1
      %s176 = smul.addr %s175, 2
      %s177 = smul.addr %s176, 4
      %s178 = scalar_lea.vmem %s2, %s177
      %p179 = scmp.lt.s32.totalorder %s15, 1
      %s180 = scalar_select %p179, %s15, 1
      %s181 = smul.addr %s180, 2
      %s182 = smul.addr %s181, 4
      %s183 = scalar_lea.vmem %s3, %s182
      %v184 = vld [vmem:[%s1] sm:$0xf]
      %v185 = vld [vmem:[%s173] sm:$0xff]
      %v186 = vld [vmem:[%s173 + $0x8] sm:$0xff]
      %v187 = vld [vmem:[%s173 + $0x10] sm:$0xff]
      %v188 = vld [vmem:[%s173 + $0x18] sm:$0xff]
      %vm189 = vcmask 130048
      %v191 = vsel %vm189, %v184, 0
      %193 = vmatprep.subr.mxu0 %v186
      %194 = vmatpush1.msra.mxu0 %v185
      %195 = vmatprep.subr.mxu0 %v188
      %196 = vmatpush1.msra.mxu0 %v187
      %197 = vmatprep.subr.mxu0 0.0
      %198 = vmatpush1.msra.mxu0 0.0
      %199 = vmatprep.subr.mxu0 0.0
      %200 = vmatpush1.msra.mxu0 0.0
      %201 = vmatprep.subr.mxu0 0.0
      %202 = vmatpush1.msra.mxu0 0.0
      %203 = vmatprep.subr.mxu0 0.0
      %204 = vmatpush1.msra.mxu0 0.0
      %205 = vmatprep.subr.mxu0 0.0
      %206 = vmatpush1.msra.mxu0 0.0
      %207 = vmatprep.subr.mxu0 0.0
      %208 = vmatpush1.msra.mxu0 0.0
      %209 = vmatprep.subr.mxu0 0.0
      %210 = vmatpush1.msra.mxu0 0.0
      %211 = vmatprep.subr.mxu0 0.0
      %212 = vmatpush1.msra.mxu0 0.0
      %213 = vmatprep.subr.mxu0 0.0
      %214 = vmatpush1.msra.mxu0 0.0
      %215 = vmatprep.subr.mxu0 0.0
      %216 = vmatpush1.msra.mxu0 0.0
      %217 = vmatprep.subr.mxu0 0.0
      %218 = vmatpush1.msra.mxu0 0.0
      %219 = vmatprep.subr.mxu0 0.0
      %220 = vmatpush1.msra.mxu0 0.0
      %221 = vmatprep.subr.mxu0 0.0
      %222 = vmatpush1.msra.mxu0 0.0
      %223 = vmatprep.subr.mxu0 0.0
      %224 = vmatpush1.msra.mxu0 0.0
      %225 = vmatprep.subr.mxu0 0.0
      %226 = vmatpush1.msra.mxu0 0.0
      %227 = vmatprep.subr.mxu0 0.0
      %228 = vmatpush1.msra.mxu0 0.0
      %229 = vmatprep.subr.mxu0 0.0
      %230 = vmatpush1.msra.mxu0 0.0
      %231 = vmatprep.subr.mxu0 0.0
      %232 = vmatpush1.msra.mxu0 0.0
      %233 = vmatprep.subr.mxu0 0.0
      %234 = vmatpush1.msra.mxu0 0.0
      %235 = vmatprep.subr.mxu0 0.0
      %236 = vmatpush1.msra.mxu0 0.0
      %237 = vmatprep.subr.mxu0 0.0
      %238 = vmatpush1.msra.mxu0 0.0
      %239 = vmatprep.subr.mxu0 0.0
      %240 = vmatpush1.msra.mxu0 0.0
      %241 = vmatprep.subr.mxu0 0.0
      %242 = vmatpush1.msra.mxu0 0.0
      %243 = vmatprep.subr.mxu0 0.0
      %244 = vmatpush1.msra.mxu0 0.0
      %245 = vmatprep.subr.mxu0 0.0
      %246 = vmatpush1.msra.mxu0 0.0
      %247 = vmatprep.subr.mxu0 0.0
      %248 = vmatpush1.msra.mxu0 0.0
      %249 = vmatprep.subr.mxu0 0.0
      %250 = vmatpush1.msra.mxu0 0.0
      %251 = vmatprep.subr.mxu0 0.0
      %252 = vmatpush1.msra.mxu0 0.0
      %253 = vmatprep.subr.mxu0 0.0
      %254 = vmatpush1.msra.mxu0 0.0
      %255 = vmatprep.subr.mxu0 0.0
      %256 = vmatpush1.msra.mxu0 0.0
      %257 = vmatprep.mubr.f32.mxu0 0.0
      %258 = vmatmul.mubr.f32.gmra.mrb[0].mxu0 %v191
      %v259 = vpop.f32.mrb[0].mxu0
      %v260 = vadd.f32 0.0, %v259
      %v261 = vpop.f32.mrb[0].mxu0
      %v262 = vadd.f32 0.0, %v261
      %263 = vdwg.mxu0
      %v266 = vcombine.low %v260, %v262
      %268 = vst [vmem:[%s178] sm:$0xff] %v266
      %vm269 = vcmask 1043456
      %v270 = vsel %vm269, %v260, 0.0
      %v271 = vsel %vm269, %v262, 0.0
      %v272 = vadd.f32 %v270, %v271
      %273 = vadd.xlane.f32.xlu0 %v272
      %v274 = vpop.xlane.xlu0 %273
      %vm275 = vcmask 3072
      %276 = vst.msk [vmem:[%s183] sm:$0xf] %vm275, %v274
      %v277 = vmul.f32 %v260, %v260
      %v278 = vmul.f32 %v262, %v262
      %v279 = vsel %vm269, %v277, 0.0
      %v280 = vsel %vm269, %v278, 0.0
      %v281 = vadd.f32 %v279, %v280
      %282 = vadd.xlane.f32.xlu0 %v281
      %v283 = vpop.xlane.xlu0 %282
      %s284 = scalar_lea.vmem %s183, 4
      %285 = vst.msk [vmem:[%s284] sm:$0xf] %vm275, %v283
      %p286 = scmp.lt.s32.totalorder %s15, 1
      %s287 = scalar_select %p286, %s15, 1
      %s288 = smul.addr %s287, 2
      %s289 = smul.addr %s288, 4
      %s290 = scalar_lea.vmem %s2, %s289
      %p291 = scmp.lt.s32.totalorder %s15, 1
      %s292 = scalar_select %p291, %s15, 1
      %s293 = smul.addr %s292, 2
      %s294 = smul.addr %s293, 4
      %s295 = scalar_lea.vmem %s3, %s294
      // Predicated region
      $region29: #{bottleneck_block.4} parent=27 // pred_check
        %p296 = pneg %p80
      $region30: #{bottleneck_block.4} parent=27 // pred_check_branch
        %298 = sbr.rel (%p296) target = $region32
      $region31: #{bottleneck_block.4} parent=27 // pred_region
        _
      $region32: #{bottleneck_block.4} parent=27 // pred_fallthru
        _
      // Predicated region
      $region33: #{bottleneck_block.4} parent=27 // pred_check
        %p299 = pneg %p106
      $region34: #{bottleneck_block.4} parent=27 // pred_check_branch
        %301 = sbr.rel (%p299) target = $region36
      $region35: #{bottleneck_block.4} parent=27 // pred_region
        _
      $region36: #{bottleneck_block.4} parent=27 // pred_fallthru
        _
    $region28: #{bottleneck_block.4} parent=5 // pred_fallthru
      _
    %p302 = scmp.le.s32.totalorder 2, %s10
    // Predicated region
    $region37: #{bottleneck_block.4} parent=5 // pred_check
      %p303 = pneg %p302
    $region38: #{bottleneck_block.4} parent=5 // pred_check_branch
      %305 = sbr.rel (%p303) target = $region40
    $region39: #{bottleneck_block.4} parent=5 // pred_region
      %s306 = ssub.s32 %s10, 2
      // Predicated region
      $region41: #{bottleneck_block.4} parent=39 // pred_check
        %p307 = pneg %p86
      $region42: #{bottleneck_block.4} parent=39 // pred_check_branch
        %309 = sbr.rel (%p307) target = $region44
      $region43: #{bottleneck_block.4} parent=39 // pred_region
        %p310 = scmp.lt.s32.totalorder %s16, 1
        %s311 = scalar_select %p310, %s16, 1
        %s312 = smul.addr %s311, 2
        %s313 = smul.addr %s312, 4
        %s314 = scalar_lea.vmem %s2, %s313
      $region44: #{bottleneck_block.4} parent=39 // pred_fallthru
        _
      // Predicated region
      $region45: #{bottleneck_block.4} parent=39 // pred_check
        %p315 = pneg %p112
      $region46: #{bottleneck_block.4} parent=39 // pred_check_branch
        %317 = sbr.rel (%p315) target = $region48
      $region47: #{bottleneck_block.4} parent=39 // pred_region
        %p318 = scmp.lt.s32.totalorder %s16, 1
        %s319 = scalar_select %p318, %s16, 1
        %s320 = smul.addr %s319, 2
        %s321 = smul.addr %s320, 4
        %s322 = scalar_lea.vmem %s3, %s321
      $region48: #{bottleneck_block.4} parent=39 // pred_fallthru
        _
    $region40: #{bottleneck_block.4} parent=5 // pred_fallthru
      _
  $region6: #{bottleneck_block.4} parent=0 // loop_footer
    %s14 = sadd.s32 1, %s10
  $region7: #{bottleneck_block.4} parent=0 // loop_footer_branch
    %9 = sbr.rel target = $region3
  $region8: #{bottleneck_block.4} parent=0 // loop_exit
    _

// kernel: bottleneck_block.7
$region0: #{bottleneck_block.7}
  #allocation0 [shape = 'u32[]', space=smem, size = 0x4, offset = 0x4, fixed_abs, tag = 'smem constant byte address 0x4 - core index']
  #allocation1 [shape = 'u32[144,128]{1,0:T(1,128)}', space=vmem, size = 0x12000, scoped, tag = 'internal scratch']
  %s0 = inlined_call_operand.vmem [shape: f32[2,16,256], index: 0, kind: input, shape index: {}]
  %s1 = inlined_call_operand.vmem [shape: f32[2,2,16,1], index: 1, kind: input, shape index: {}]
  %s2 = inlined_call_operand.vmem [shape: f32[16,1], index: 2, kind: input, shape index: {}]
  %s3 = inlined_call_operand.vmem [shape: f32[16,1], index: 3, kind: input, shape index: {}]
  %s4 = inlined_call_operand.vmem [shape: f32[2,16,256], index: 4, kind: input, shape index: {}, may-alias: {4,5}]
  %s5 = inlined_call_operand.vmem [shape: f32[2,16,256], index: 5, kind: output, shape index: {}, may-alias: {4,5}]
  %s6 = sld [smem:[#allocation0]]
  $region53: #{bottleneck_block.7} parent=0
    _
  %s8 = ssub.s32 1, %s6
  %s9 = scalar_select 0, %s8, %s6
  loop: start=0, step=1, limit=4
  $region2: #{bottleneck_block.7} parent=0 // loop_pre_header
    _
  $region3: #{bottleneck_block.7} parent=0 // loop_header
    %s11 = sphi 0, %s15
    %p12 = scmp.ge.s32.totalorder %s11, 4
    %s21 = sphi 0, %s23
    %s24 = sphi 0, %s21
    %s25 = sphi 0, %s24
    %s41 = sphi 0, %s25
    %s45 = sphi 0, %s45
    %s47 = sphi 0, %s45
    %s48 = sphi 0, %s47
    %s62 = sphi 0, %s48
    %s66 = sphi 0, %s66
    %s68 = sphi 0, %s66
    %s69 = sphi 0, %s68
    %s83 = sphi 0, %s69
    %s87 = sphi 0, %s87
    %s89 = sphi 0, %s87
    %s90 = sphi 0, %s89
    %s104 = sphi 0, %s90
    %s110 = sphi 0, %s112
    %s113 = sphi 0, %s110
    %s114 = sphi 0, %s113
    %s130 = sphi 0, %s114
    %s136 = sphi 0, %s138
    %s139 = sphi 0, %s136
    %s140 = sphi 0, %s139
    %s156 = sphi 0, %s140
  $region4: #{bottleneck_block.7} parent=0 // loop_header_branch
    %14 = sbr.rel (%p12) target = $region8
  $region5: #{bottleneck_block.7} parent=0 // loop_body
    %s16 = ssub.s32 %s11, 1
    %s17 = ssub.s32 %s11, 2
    %s18 = sadd.s32 %s11, 1
    %s19 = ssub.s32 %s11, %s18
    %p20 = scmp.eq.s32.totalorder %s19, 0
    %s22 = sadd.s32 %s21, 1
    %s23 = scalar_select %p20, %s21, %s22
    %p26 = pneg %p20
    %p27 = scmp.eq.s32.totalorder %s11, 1
    %p28 = por %p26, %p27
    %p29 = scmp.ne.s32.totalorder %s21, %s24
    %p30 = scmp.eq.s32.totalorder %s11, 0
    %p31 = por %p29, %p30
    %p32 = scmp.ne.s32.totalorder %s21, %s24
    %p33 = scmp.eq.s32.totalorder %s16, 1
    %p34 = por %p32, %p33
    %p35 = scmp.ne.s32.totalorder %s24, %s25
    %p36 = scmp.eq.s32.totalorder %s16, 0
    %p37 = por %p35, %p36
    %p38 = scmp.ne.s32.totalorder %s24, %s25
    %p39 = scmp.eq.s32.totalorder %s17, 1
    %p40 = por %p38, %p39
    %p42 = scmp.ne.s32.totalorder %s25, %s41
    %p43 = scmp.eq.s32.totalorder %s17, 0
    %p44 = por %p42, %p43
    %s46 = sadd.s32 %s45, 1
    %p49 = scmp.eq.s32.totalorder %s11, 1
    %p50 = scmp.ne.s32.totalorder %s45, %s47
    %p51 = scmp.eq.s32.totalorder %s11, 0
    %p52 = por %p50, %p51
    %p53 = scmp.ne.s32.totalorder %s45, %s47
    %p54 = scmp.eq.s32.totalorder %s16, 1
    %p55 = por %p53, %p54
    %p56 = scmp.ne.s32.totalorder %s47, %s48
    %p57 = scmp.eq.s32.totalorder %s16, 0
    %p58 = por %p56, %p57
    %p59 = scmp.ne.s32.totalorder %s47, %s48
    %p60 = scmp.eq.s32.totalorder %s17, 1
    %p61 = por %p59, %p60
    %p63 = scmp.ne.s32.totalorder %s48, %s62
    %p64 = scmp.eq.s32.totalorder %s17, 0
    %p65 = por %p63, %p64
    %s67 = sadd.s32 %s66, 1
    %p70 = scmp.eq.s32.totalorder %s11, 1
    %p71 = scmp.ne.s32.totalorder %s66, %s68
    %p72 = scmp.eq.s32.totalorder %s11, 0
    %p73 = por %p71, %p72
    %p74 = scmp.ne.s32.totalorder %s66, %s68
    %p75 = scmp.eq.s32.totalorder %s16, 1
    %p76 = por %p74, %p75
    %p77 = scmp.ne.s32.totalorder %s68, %s69
    %p78 = scmp.eq.s32.totalorder %s16, 0
    %p79 = por %p77, %p78
    %p80 = scmp.ne.s32.totalorder %s68, %s69
    %p81 = scmp.eq.s32.totalorder %s17, 1
    %p82 = por %p80, %p81
    %p84 = scmp.ne.s32.totalorder %s69, %s83
    %p85 = scmp.eq.s32.totalorder %s17, 0
    %p86 = por %p84, %p85
    %s88 = sadd.s32 %s87, 1
    %p91 = scmp.eq.s32.totalorder %s11, 1
    %p92 = scmp.ne.s32.totalorder %s87, %s89
    %p93 = scmp.eq.s32.totalorder %s11, 0
    %p94 = por %p92, %p93
    %p95 = scmp.ne.s32.totalorder %s87, %s89
    %p96 = scmp.eq.s32.totalorder %s16, 1
    %p97 = por %p95, %p96
    %p98 = scmp.ne.s32.totalorder %s89, %s90
    %p99 = scmp.eq.s32.totalorder %s16, 0
    %p100 = por %p98, %p99
    %p101 = scmp.ne.s32.totalorder %s89, %s90
    %p102 = scmp.eq.s32.totalorder %s17, 1
    %p103 = por %p101, %p102
    %p105 = scmp.ne.s32.totalorder %s90, %s104
    %p106 = scmp.eq.s32.totalorder %s17, 0
    %p107 = por %p105, %p106
    %s108 = ssub.s32 %s11, %s18
    %p109 = scmp.eq.s32.totalorder %s108, 0
    %s111 = sadd.s32 %s110, 1
    %s112 = scalar_select %p109, %s110, %s111
    %p115 = pneg %p109
    %p116 = scmp.eq.s32.totalorder %s11, 1
    %p117 = por %p115, %p116
    %p118 = scmp.ne.s32.totalorder %s110, %s113
    %p119 = scmp.eq.s32.totalorder %s11, 0
    %p120 = por %p118, %p119
    %p121 = scmp.ne.s32.totalorder %s110, %s113
    %p122 = scmp.eq.s32.totalorder %s16, 1
    %p123 = por %p121, %p122
    %p124 = scmp.ne.s32.totalorder %s113, %s114
    %p125 = scmp.eq.s32.totalorder %s16, 0
    %p126 = por %p124, %p125
    %p127 = scmp.ne.s32.totalorder %s113, %s114
    %p128 = scmp.eq.s32.totalorder %s17, 1
    %p129 = por %p127, %p128
    %p131 = scmp.ne.s32.totalorder %s114, %s130
    %p132 = scmp.eq.s32.totalorder %s17, 0
    %p133 = por %p131, %p132
    %s134 = ssub.s32 %s11, %s18
    %p135 = scmp.eq.s32.totalorder %s134, 0
    %s137 = sadd.s32 %s136, 1
    %s138 = scalar_select %p135, %s136, %s137
    %p141 = pneg %p135
    %p142 = scmp.eq.s32.totalorder %s11, 1
    %p143 = por %p141, %p142
    %p144 = scmp.ne.s32.totalorder %s136, %s139
    %p145 = scmp.eq.s32.totalorder %s11, 0
    %p146 = por %p144, %p145
    %p147 = scmp.ne.s32.totalorder %s136, %s139
    %p148 = scmp.eq.s32.totalorder %s16, 1
    %p149 = por %p147, %p148
    %p150 = scmp.ne.s32.totalorder %s139, %s140
    %p151 = scmp.eq.s32.totalorder %s16, 0
    %p152 = por %p150, %p151
    %p153 = scmp.ne.s32.totalorder %s139, %s140
    %p154 = scmp.eq.s32.totalorder %s17, 1
    %p155 = por %p153, %p154
    %p157 = scmp.ne.s32.totalorder %s140, %s156
    %p158 = scmp.eq.s32.totalorder %s17, 0
    %p159 = por %p157, %p158
    %p160 = scmp.le.s32.totalorder 1, %s11
    %p161 = scmp.lt.s32.totalorder %s11, 3
    %p162 = pnand %p160, %p161
    %p163 = pneg %p162
    // Predicated region
    $region9: #{bottleneck_block.7} parent=5 // pred_check
      _
    $region10: #{bottleneck_block.7} parent=5 // pred_check_branch
      %165 = sbr.rel (%p162) target = $region12
    $region11: #{bottleneck_block.7} parent=5 // pred_region
      %s166 = ssub.s32 %s11, 1
      // Predicated region
      $region13: #{bottleneck_block.7} parent=11 // pred_check
        %p167 = pneg %p58
      $region14: #{bottleneck_block.7} parent=11 // pred_check_branch
        %169 = sbr.rel (%p167) target = $region16
      $region15: #{bottleneck_block.7} parent=11 // pred_region
        _
      $region16: #{bottleneck_block.7} parent=11 // pred_fallthru
        _
      // Predicated region
      $region17: #{bottleneck_block.7} parent=11 // pred_check
        %p170 = pneg %p79
      $region18: #{bottleneck_block.7} parent=11 // pred_check_branch
        %172 = sbr.rel (%p170) target = $region20
      $region19: #{bottleneck_block.7} parent=11 // pred_region
        _
      $region20: #{bottleneck_block.7} parent=11 // pred_fallthru
        _
      // Predicated region
      $region21: #{bottleneck_block.7} parent=11 // pred_check
        %p173 = pneg %p100
      $region22: #{bottleneck_block.7} parent=11 // pred_check_branch
        %175 = sbr.rel (%p173) target = $region24
      $region23: #{bottleneck_block.7} parent=11 // pred_region
        _
      $region24: #{bottleneck_block.7} parent=11 // pred_fallthru
        _
    $region12: #{bottleneck_block.7} parent=5 // pred_fallthru
      _
    %p176 = scmp.lt.s32.totalorder %s11, 2
    // Predicated region
    $region25: #{bottleneck_block.7} parent=5 // pred_check
      %p177 = pneg %p176
    $region26: #{bottleneck_block.7} parent=5 // pred_check_branch
      %179 = sbr.rel (%p177) target = $region28
    $region27: #{bottleneck_block.7} parent=5 // pred_region
      // Predicated region
      $region29: #{bottleneck_block.7} parent=27 // pred_check
        %p180 = pneg %p31
      $region30: #{bottleneck_block.7} parent=27 // pred_check_branch
        %182 = sbr.rel (%p180) target = $region32
      $region31: #{bottleneck_block.7} parent=27 // pred_region
        %p183 = scmp.lt.s32.totalorder %s11, 1
        %s184 = scalar_select %p183, %s11, 1
        %s185 = smul.addr %s184, 4
        %s186 = smul.addr %s185, 8
        %s187 = scalar_lea.vmem %s0, %s186
      $region32: #{bottleneck_block.7} parent=27 // pred_fallthru
        _
      // Predicated region
      $region33: #{bottleneck_block.7} parent=27 // pred_check
        %p188 = pneg %p120
      $region34: #{bottleneck_block.7} parent=27 // pred_check_branch
        %190 = sbr.rel (%p188) target = $region36
      $region35: #{bottleneck_block.7} parent=27 // pred_region
        %p191 = scmp.lt.s32.totalorder %s11, 1
        %s192 = scalar_select %p191, %s11, 1
        %s193 = smul.addr %s192, 4
        %s194 = smul.addr %s193, 8
        %s195 = scalar_lea.vmem %s4, %s194
      $region36: #{bottleneck_block.7} parent=27 // pred_fallthru
        _
    $region28: #{bottleneck_block.7} parent=5 // pred_fallthru
      _
    %p196 = scmp.le.s32.totalorder 1, %s11
    %p197 = scmp.lt.s32.totalorder %s11, 3
    %p198 = pnand %p196, %p197
    %p199 = pneg %p198
    // Predicated region
    $region37: #{bottleneck_block.7} parent=5 // pred_check
      _
    $region38: #{bottleneck_block.7} parent=5 // pred_check_branch
      %201 = sbr.rel (%p198) target = $region40
    $region39: #{bottleneck_block.7} parent=5 // pred_region
      %s202 = ssub.s32 %s11, 1
      %p203 = scmp.lt.s32.totalorder %s16, 1
      %s204 = scalar_select %p203, %s16, 1
      %s205 = smul.addr %s204, 4
      %s206 = smul.addr %s205, 8
      %s207 = scalar_lea.vmem %s0, %s206
      %p208 = pneg %p37
      %p209 = pneg %p34
      %p210 = pneg %p58
      %p211 = pneg %p55
      %p212 = pneg %p79
      %p213 = pneg %p76
      %p214 = pneg %p100
      %p215 = pneg %p97
      %p216 = scmp.lt.s32.totalorder %s16, 1
      %s217 = scalar_select %p216, %s16, 1
      %s218 = smul.addr %s217, 4
      %s219 = smul.addr %s218, 8
      %s220 = scalar_lea.vmem %s4, %s219
      %p221 = pneg %p126
      %p222 = pneg %p123
      %p223 = pneg %p152
      %p224 = pneg %p149
      %p225 = scmp.lt.s32.totalorder %s16, 1
      %s226 = scalar_select %p225, %s16, 1
      %s227 = smul.addr %s226, 4
      %s228 = smul.addr %s227, 8
      %s229 = scalar_lea.vmem %s5, %s228
      %p230 = scmp.lt.s32.totalorder %s16, 1
      %s231 = scalar_select %p230, %s16, 1
      %s232 = smul.addr %s231, 4
      %s233 = smul.addr %s232, 8
      %s234 = scalar_lea.vmem %s0, %s233
      %p235 = scmp.lt.s32.totalorder %s16, 1
      %s236 = scalar_select %p235, %s16, 1
      %s237 = smul.addr %s236, 4
      %s238 = smul.addr %s237, 8
      %s239 = scalar_lea.vmem %s4, %s238
      %p240 = scmp.lt.s32.totalorder %s16, 1
      %s241 = scalar_select %p240, %s16, 1
      %s242 = smul.addr %s241, 4
      %s243 = smul.addr %s242, 8
      %s244 = scalar_lea.vmem %s5, %s243
      %v245 = vld [vmem:[%s1] sm:$0xff]
      %v246 = vld [vmem:[%s1 + $0x8] sm:$0xff]
      %v247 = vld [vmem:[%s1 + $0x10] sm:$0xff]
      %v248 = vld [vmem:[%s1 + $0x18] sm:$0xff]
      %v249 = vld [vmem:[%s1 + $0x20] sm:$0xff]
      %v250 = vld [vmem:[%s1 + $0x28] sm:$0xff]
      %v251 = vld [vmem:[%s1 + $0x30] sm:$0xff]
      %v252 = vld [vmem:[%s1 + $0x38] sm:$0xff]
      %vm253 = vcmask 7168
      %v254 = vsel %vm253, %v245, 0.0
      %v255 = vsel %vm253, %v249, 0.0
      %v256 = vadd.f32 %v254, %v255
      %v257 = vsel %vm253, %v246, 0.0
      %v258 = vsel %vm253, %v250, 0.0
      %v259 = vadd.f32 %v257, %v258
      %v260 = vsel %vm253, %v247, 0.0
      %v261 = vsel %vm253, %v251, 0.0
      %v262 = vadd.f32 %v260, %v261
      %v263 = vsel %vm253, %v248, 0.0
      %v264 = vsel %vm253, %v252, 0.0
      %v265 = vadd.f32 %v263, %v264
      %v266 = vmul.f32 %v256, 0.001953125
      %v267 = vmul.f32 %v259, 0.001953125
      %v268 = vmul.f32 %v262, 0.001953125
      %v269 = vmul.f32 %v265, 0.001953125
      %v270 = vmul.f32 %v266, %v266
      %v271 = vmul.f32 %v267, %v267
      %v272 = vsub.f32 %v268, %v270
      %v273 = vsub.f32 %v269, %v271
      %v274 = vadd.f32 %v272, 1e-05
      %v275 = vadd.f32 %v273, 1e-05
      %v276 = vrsqrt.pop %v274
      %v277 = vrsqrt.pop %v275
      %v278 = vld [vmem:[%s2] sm:$0xff]
      %v279 = vld [vmem:[%s2 + $0x8] sm:$0xff]
      %v280 = vmul.f32 %v276, %v278
      %v281 = vmul.f32 %v277, %v279
      %v282 = vld [vmem:[%s3] sm:$0xff]
      %v283 = vld [vmem:[%s3 + $0x8] sm:$0xff]
      %v284 = vmul.f32 %v266, %v280
      %v285 = vmul.f32 %v267, %v281
      %v286 = vsub.f32 %v282, %v284
      %v287 = vsub.f32 %v283, %v285
      %v288 = vld [vmem:[%s234] sm:$0xff]
      %v289 = vld [vmem:[%s234 + $0x8] sm:$0xff]
      %v290 = vld [vmem:[%s234 + $0x10] sm:$0xff]
      %v291 = vld [vmem:[%s234 + $0x18] sm:$0xff]
      %293 = vset.pattern.permute.xlu0 0
      %294 = vperm.xlu0 %293, %v280
      %v295 = vpop.permute.xlu0 %294
      %298 = vset.pattern.permute.xlu0 0
      %299 = vperm.xlu0 %298, %v281
      %v300 = vpop.permute.xlu0 %299
      %v302 = vmul.f32 %v288, %v295
      %v303 = vmul.f32 %v289, %v295
      %v304 = vmul.f32 %v290, %v300
      %v305 = vmul.f32 %v291, %v300
      %307 = vset.pattern.permute.xlu0 0
      %308 = vperm.xlu0 %307, %v286
      %v309 = vpop.permute.xlu0 %308
      %312 = vset.pattern.permute.xlu0 0
      %313 = vperm.xlu0 %312, %v287
      %v314 = vpop.permute.xlu0 %313
      %v316 = vadd.f32 %v302, %v309
      %v317 = vadd.f32 %v303, %v309
      %v318 = vadd.f32 %v304, %v314
      %v319 = vadd.f32 %v305, %v314
      %v320 = vld [vmem:[%s239] sm:$0xff]
      %v321 = vld [vmem:[%s239 + $0x8] sm:$0xff]
      %v322 = vld [vmem:[%s239 + $0x10] sm:$0xff]
      %v323 = vld [vmem:[%s239 + $0x18] sm:$0xff]
      %v324 = vadd.f32 %v316, %v320
      %v325 = vadd.f32 %v317, %v321
      %v326 = vadd.f32 %v318, %v322
      %v327 = vadd.f32 %v319, %v323
      %v328 = vmax.f32 %v324, 0.0
      %v329 = vmax.f32 %v325, 0.0
      %v330 = vmax.f32 %v326, 0.0
      %v331 = vmax.f32 %v327, 0.0
      %332 = vst [vmem:[%s244] sm:$0xff] %v328
      %333 = vst [vmem:[%s244 + $0x8] sm:$0xff] %v329
      %334 = vst [vmem:[%s244 + $0x10] sm:$0xff] %v330
      %335 = vst [vmem:[%s244 + $0x18] sm:$0xff] %v331
      %p336 = scmp.lt.s32.totalorder %s16, 1
      %s337 = scalar_select %p336, %s16, 1
      %s338 = smul.addr %s337, 4
      %s339 = smul.addr %s338, 8
      %s340 = scalar_lea.vmem %s5, %s339
      // Predicated region
      $region41: #{bottleneck_block.7} parent=39 // pred_check
        %p341 = pneg %p149
      $region42: #{bottleneck_block.7} parent=39 // pred_check_branch
        %343 = sbr.rel (%p341) target = $region44
      $region43: #{bottleneck_block.7} parent=39 // pred_region
        _
      $region44: #{bottleneck_block.7} parent=39 // pred_fallthru
        _
    $region40: #{bottleneck_block.7} parent=5 // pred_fallthru
      _
    %p344 = scmp.le.s32.totalorder 2, %s11
    // Predicated region
    $region45: #{bottleneck_block.7} parent=5 // pred_check
      %p345 = pneg %p344
    $region46: #{bottleneck_block.7} parent=5 // pred_check_branch
      %347 = sbr.rel (%p345) target = $region48
    $region47: #{bottleneck_block.7} parent=5 // pred_region
      %s348 = ssub.s32 %s11, 2
      // Predicated region
      $region49: #{bottleneck_block.7} parent=47 // pred_check
        %p349 = pneg %p155
      $region50: #{bottleneck_block.7} parent=47 // pred_check_branch
        %351 = sbr.rel (%p349) target = $region52
      $region51: #{bottleneck_block.7} parent=47 // pred_region
        %p352 = scmp.lt.s32.totalorder %s17, 1
        %s353 = scalar_select %p352, %s17, 1
        %s354 = smul.addr %s353, 4
        %s355 = smul.addr %s354, 8
        %s356 = scalar_lea.vmem %s5, %s355
      $region52: #{bottleneck_block.7} parent=47 // pred_fallthru
        _
    $region48: #{bottleneck_block.7} parent=5 // pred_fallthru
      _
  $region6: #{bottleneck_block.7} parent=0 // loop_footer
    %s15 = sadd.s32 1, %s11
  $region7: #{bottleneck_block.7} parent=0 // loop_footer_branch
    %10 = sbr.rel target = $region3
  $region8: #{bottleneck_block.7} parent=0 // loop_exit
    _

// kernel: bottleneck_block.5
$region0: #{bottleneck_block.5}
  #allocation0 [shape = 'u32[]', space=smem, size = 0x4, offset = 0x4, fixed_abs, tag = 'smem constant byte address 0x4 - core index']
  #allocation1 [shape = 'u32[144,128]{1,0:T(1,128)}', space=vmem, size = 0x12000, scoped, tag = 'internal scratch']
  %s0 = inlined_call_operand.vmem [shape: f32[2,4,256], index: 0, kind: input, shape index: {}]
  %s1 = inlined_call_operand.vmem [shape: f32[2,2,4,1], index: 1, kind: input, shape index: {}]
  %s2 = inlined_call_operand.vmem [shape: f32[4,1], index: 2, kind: input, shape index: {}]
  %s3 = inlined_call_operand.vmem [shape: f32[4,1], index: 3, kind: input, shape index: {}]
  %s4 = inlined_call_operand.vmem [shape: f32[3,3,4,4], index: 4, kind: input, shape index: {}]
  %s5 = inlined_call_operand.vmem [shape: f32[9,1,256], index: 5, kind: input, shape index: {}]
  %s6 = inlined_call_operand.vmem [shape: f32[2,4,256], index: 6, kind: output, shape index: {0}]
  %s7 = inlined_call_operand.vmem [shape: f32[2,2,4,1], index: 7, kind: output, shape index: {1}]
  %8 = xla_tuple %s6, %s7
  %s9 = sld [smem:[#allocation0]]
  $region65: #{bottleneck_block.5} parent=0
    _
  %s11 = ssub.s32 1, %s9
  %s12 = scalar_select 0, %s11, %s9
  loop: start=0, step=1, limit=4
  $region2: #{bottleneck_block.5} parent=0 // loop_pre_header
    _
  $region3: #{bottleneck_block.5} parent=0 // loop_header
    %s14 = sphi 0, %s18
    %p15 = scmp.ge.s32.totalorder %s14, 4
    %s24 = sphi 0, %s26
    %s27 = sphi 0, %s24
    %s28 = sphi 0, %s27
    %s44 = sphi 0, %s28
    %s48 = sphi 0, %s48
    %s50 = sphi 0, %s48
    %s51 = sphi 0, %s50
    %s65 = sphi 0, %s51
    %s69 = sphi 0, %s69
    %s71 = sphi 0, %s69
    %s72 = sphi 0, %s71
    %s86 = sphi 0, %s72
    %s90 = sphi 0, %s90
    %s92 = sphi 0, %s90
    %s93 = sphi 0, %s92
    %s107 = sphi 0, %s93
    %s111 = sphi 0, %s111
    %s113 = sphi 0, %s111
    %s114 = sphi 0, %s113
    %s128 = sphi 0, %s114
    %s132 = sphi 0, %s132
    %s134 = sphi 0, %s132
    %s135 = sphi 0, %s134
    %s149 = sphi 0, %s135
    %s155 = sphi 0, %s157
    %s158 = sphi 0, %s155
    %s159 = sphi 0, %s158
    %s175 = sphi 0, %s159
    %s181 = sphi 0, %s183
    %s184 = sphi 0, %s181
    %s185 = sphi 0, %s184
    %s201 = sphi 0, %s185
  $region4: #{bottleneck_block.5} parent=0 // loop_header_branch
    %17 = sbr.rel (%p15) target = $region8
  $region5: #{bottleneck_block.5} parent=0 // loop_body
    %s19 = ssub.s32 %s14, 1
    %s20 = ssub.s32 %s14, 2
    %s21 = sadd.s32 %s14, 1
    %s22 = ssub.s32 %s14, %s21
    %p23 = scmp.eq.s32.totalorder %s22, 0
    %s25 = sadd.s32 %s24, 1
    %s26 = scalar_select %p23, %s24, %s25
    %p29 = pneg %p23
    %p30 = scmp.eq.s32.totalorder %s14, 1
    %p31 = por %p29, %p30
    %p32 = scmp.ne.s32.totalorder %s24, %s27
    %p33 = scmp.eq.s32.totalorder %s14, 0
    %p34 = por %p32, %p33
    %p35 = scmp.ne.s32.totalorder %s24, %s27
    %p36 = scmp.eq.s32.totalorder %s19, 1
    %p37 = por %p35, %p36
    %p38 = scmp.ne.s32.totalorder %s27, %s28
    %p39 = scmp.eq.s32.totalorder %s19, 0
    %p40 = por %p38, %p39
    %p41 = scmp.ne.s32.totalorder %s27, %s28
    %p42 = scmp.eq.s32.totalorder %s20, 1
    %p43 = por %p41, %p42
    %p45 = scmp.ne.s32.totalorder %s28, %s44
    %p46 = scmp.eq.s32.totalorder %s20, 0
    %p47 = por %p45, %p46
    %s49 = sadd.s32 %s48, 1
    %p52 = scmp.eq.s32.totalorder %s14, 1
    %p53 = scmp.ne.s32.totalorder %s48, %s50
    %p54 = scmp.eq.s32.totalorder %s14, 0
    %p55 = por %p53, %p54
    %p56 = scmp.ne.s32.totalorder %s48, %s50
    %p57 = scmp.eq.s32.totalorder %s19, 1
    %p58 = por %p56, %p57
    %p59 = scmp.ne.s32.totalorder %s50, %s51
    %p60 = scmp.eq.s32.totalorder %s19, 0
    %p61 = por %p59, %p60
    %p62 = scmp.ne.s32.totalorder %s50, %s51
    %p63 = scmp.eq.s32.totalorder %s20, 1
    %p64 = por %p62, %p63
    %p66 = scmp.ne.s32.totalorder %s51, %s65
    %p67 = scmp.eq.s32.totalorder %s20, 0
    %p68 = por %p66, %p67
    %s70 = sadd.s32 %s69, 1
    %p73 = scmp.eq.s32.totalorder %s14, 1
    %p74 = scmp.ne.s32.totalorder %s69, %s71
    %p75 = scmp.eq.s32.totalorder %s14, 0
    %p76 = por %p74, %p75
    %p77 = scmp.ne.s32.totalorder %s69, %s71
    %p78 = scmp.eq.s32.totalorder %s19, 1
    %p79 = por %p77, %p78
    %p80 = scmp.ne.s32.totalorder %s71, %s72
    %p81 = scmp.eq.s32.totalorder %s19, 0
    %p82 = por %p80, %p81
    %p83 = scmp.ne.s32.totalorder %s71, %s72
    %p84 = scmp.eq.s32.totalorder %s20, 1
    %p85 = por %p83, %p84
    %p87 = scmp.ne.s32.totalorder %s72, %s86
    %p88 = scmp.eq.s32.totalorder %s20, 0
    %p89 = por %p87, %p88
    %s91 = sadd.s32 %s90, 1
    %p94 = scmp.eq.s32.totalorder %s14, 1
    %p95 = scmp.ne.s32.totalorder %s90, %s92
    %p96 = scmp.eq.s32.totalorder %s14, 0
    %p97 = por %p95, %p96
    %p98 = scmp.ne.s32.totalorder %s90, %s92
    %p99 = scmp.eq.s32.totalorder %s19, 1
    %p100 = por %p98, %p99
    %p101 = scmp.ne.s32.totalorder %s92, %s93
    %p102 = scmp.eq.s32.totalorder %s19, 0
    %p103 = por %p101, %p102
    %p104 = scmp.ne.s32.totalorder %s92, %s93
    %p105 = scmp.eq.s32.totalorder %s20, 1
    %p106 = por %p104, %p105
    %p108 = scmp.ne.s32.totalorder %s93, %s107
    %p109 = scmp.eq.s32.totalorder %s20, 0
    %p110 = por %p108, %p109
    %s112 = sadd.s32 %s111, 1
    %p115 = scmp.eq.s32.totalorder %s14, 1
    %p116 = scmp.ne.s32.totalorder %s111, %s113
    %p117 = scmp.eq.s32.totalorder %s14, 0
    %p118 = por %p116, %p117
    %p119 = scmp.ne.s32.totalorder %s111, %s113
    %p120 = scmp.eq.s32.totalorder %s19, 1
    %p121 = por %p119, %p120
    %p122 = scmp.ne.s32.totalorder %s113, %s114
    %p123 = scmp.eq.s32.totalorder %s19, 0
    %p124 = por %p122, %p123
    %p125 = scmp.ne.s32.totalorder %s113, %s114
    %p126 = scmp.eq.s32.totalorder %s20, 1
    %p127 = por %p125, %p126
    %p129 = scmp.ne.s32.totalorder %s114, %s128
    %p130 = scmp.eq.s32.totalorder %s20, 0
    %p131 = por %p129, %p130
    %s133 = sadd.s32 %s132, 1
    %p136 = scmp.eq.s32.totalorder %s14, 1
    %p137 = scmp.ne.s32.totalorder %s132, %s134
    %p138 = scmp.eq.s32.totalorder %s14, 0
    %p139 = por %p137, %p138
    %p140 = scmp.ne.s32.totalorder %s132, %s134
    %p141 = scmp.eq.s32.totalorder %s19, 1
    %p142 = por %p140, %p141
    %p143 = scmp.ne.s32.totalorder %s134, %s135
    %p144 = scmp.eq.s32.totalorder %s19, 0
    %p145 = por %p143, %p144
    %p146 = scmp.ne.s32.totalorder %s134, %s135
    %p147 = scmp.eq.s32.totalorder %s20, 1
    %p148 = por %p146, %p147
    %p150 = scmp.ne.s32.totalorder %s135, %s149
    %p151 = scmp.eq.s32.totalorder %s20, 0
    %p152 = por %p150, %p151
    %s153 = ssub.s32 %s14, %s21
    %p154 = scmp.eq.s32.totalorder %s153, 0
    %s156 = sadd.s32 %s155, 1
    %s157 = scalar_select %p154, %s155, %s156
    %p160 = pneg %p154
    %p161 = scmp.eq.s32.totalorder %s14, 1
    %p162 = por %p160, %p161
    %p163 = scmp.ne.s32.totalorder %s155, %s158
    %p164 = scmp.eq.s32.totalorder %s14, 0
    %p165 = por %p163, %p164
    %p166 = scmp.ne.s32.totalorder %s155, %s158
    %p167 = scmp.eq.s32.totalorder %s19, 1
    %p168 = por %p166, %p167
    %p169 = scmp.ne.s32.totalorder %s158, %s159
    %p170 = scmp.eq.s32.totalorder %s19, 0
    %p171 = por %p169, %p170
    %p172 = scmp.ne.s32.totalorder %s158, %s159
    %p173 = scmp.eq.s32.totalorder %s20, 1
    %p174 = por %p172, %p173
    %p176 = scmp.ne.s32.totalorder %s159, %s175
    %p177 = scmp.eq.s32.totalorder %s20, 0
    %p178 = por %p176, %p177
    %s179 = ssub.s32 %s14, %s21
    %p180 = scmp.eq.s32.totalorder %s179, 0
    %s182 = sadd.s32 %s181, 1
    %s183 = scalar_select %p180, %s181, %s182
    %p186 = pneg %p180
    %p187 = scmp.eq.s32.totalorder %s14, 1
    %p188 = por %p186, %p187
    %p189 = scmp.ne.s32.totalorder %s181, %s184
    %p190 = scmp.eq.s32.totalorder %s14, 0
    %p191 = por %p189, %p190
    %p192 = scmp.ne.s32.totalorder %s181, %s184
    %p193 = scmp.eq.s32.totalorder %s19, 1
    %p194 = por %p192, %p193
    %p195 = scmp.ne.s32.totalorder %s184, %s185
    %p196 = scmp.eq.s32.totalorder %s19, 0
    %p197 = por %p195, %p196
    %p198 = scmp.ne.s32.totalorder %s184, %s185
    %p199 = scmp.eq.s32.totalorder %s20, 1
    %p200 = por %p198, %p199
    %p202 = scmp.ne.s32.totalorder %s185, %s201
    %p203 = scmp.eq.s32.totalorder %s20, 0
    %p204 = por %p202, %p203
    %p205 = scmp.le.s32.totalorder 1, %s14
    %p206 = scmp.lt.s32.totalorder %s14, 3
    %p207 = pnand %p205, %p206
    %p208 = pneg %p207
    // Predicated region
    $region9: #{bottleneck_block.5} parent=5 // pred_check
      _
    $region10: #{bottleneck_block.5} parent=5 // pred_check_branch
      %210 = sbr.rel (%p207) target = $region12
    $region11: #{bottleneck_block.5} parent=5 // pred_region
      %s211 = ssub.s32 %s14, 1
      // Predicated region
      $region13: #{bottleneck_block.5} parent=11 // pred_check
        %p212 = pneg %p61
      $region14: #{bottleneck_block.5} parent=11 // pred_check_branch
        %214 = sbr.rel (%p212) target = $region16
      $region15: #{bottleneck_block.5} parent=11 // pred_region
        _
      $region16: #{bottleneck_block.5} parent=11 // pred_fallthru
        _
      // Predicated region
      $region17: #{bottleneck_block.5} parent=11 // pred_check
        %p215 = pneg %p82
      $region18: #{bottleneck_block.5} parent=11 // pred_check_branch
        %217 = sbr.rel (%p215) target = $region20
      $region19: #{bottleneck_block.5} parent=11 // pred_region
        _
      $region20: #{bottleneck_block.5} parent=11 // pred_fallthru
        _
      // Predicated region
      $region21: #{bottleneck_block.5} parent=11 // pred_check
        %p218 = pneg %p103
      $region22: #{bottleneck_block.5} parent=11 // pred_check_branch
        %220 = sbr.rel (%p218) target = $region24
      $region23: #{bottleneck_block.5} parent=11 // pred_region
        _
      $region24: #{bottleneck_block.5} parent=11 // pred_fallthru
        _
      // Predicated region
      $region25: #{bottleneck_block.5} parent=11 // pred_check
        %p221 = pneg %p124
      $region26: #{bottleneck_block.5} parent=11 // pred_check_branch
        %223 = sbr.rel (%p221) target = $region28
      $region27: #{bottleneck_block.5} parent=11 // pred_region
        _
      $region28: #{bottleneck_block.5} parent=11 // pred_fallthru
        _
      // Predicated region
      $region29: #{bottleneck_block.5} parent=11 // pred_check
        %p224 = pneg %p145
      $region30: #{bottleneck_block.5} parent=11 // pred_check_branch
        %226 = sbr.rel (%p224) target = $region32
      $region31: #{bottleneck_block.5} parent=11 // pred_region
        _
      $region32: #{bottleneck_block.5} parent=11 // pred_fallthru
        _
    $region12: #{bottleneck_block.5} parent=5 // pred_fallthru
      _
    %p227 = scmp.lt.s32.totalorder %s14, 2
    // Predicated region
    $region33: #{bottleneck_block.5} parent=5 // pred_check
      %p228 = pneg %p227
    $region34: #{bottleneck_block.5} parent=5 // pred_check_branch
      %230 = sbr.rel (%p228) target = $region36
    $region35: #{bottleneck_block.5} parent=5 // pred_region
      // Predicated region
      $region37: #{bottleneck_block.5} parent=35 // pred_check
        %p231 = pneg %p34
      $region38: #{bottleneck_block.5} parent=35 // pred_check_branch
        %233 = sbr.rel (%p231) target = $region40
      $region39: #{bottleneck_block.5} parent=35 // pred_region
        %p234 = scmp.lt.s32.totalorder %s14, 1
        %s235 = scalar_select %p234, %s14, 1
        %s236 = smul.addr %s235, 2
        %s237 = smul.addr %s236, 4
        %s238 = scalar_lea.vmem %s0, %s237
      $region40: #{bottleneck_block.5} parent=35 // pred_fallthru
        _
    $region36: #{bottleneck_block.5} parent=5 // pred_fallthru
      _
    %p239 = scmp.le.s32.totalorder 1, %s14
    %p240 = scmp.lt.s32.totalorder %s14, 3
    %p241 = pnand %p239, %p240
    %p242 = pneg %p241
    // Predicated region
    $region41: #{bottleneck_block.5} parent=5 // pred_check
      _
    $region42: #{bottleneck_block.5} parent=5 // pred_check_branch
      %244 = sbr.rel (%p241) target = $region44
    $region43: #{bottleneck_block.5} parent=5 // pred_region
      %s245 = ssub.s32 %s14, 1
      %p246 = scmp.lt.s32.totalorder %s19, 1
      %s247 = scalar_select %p246, %s19, 1
      %s248 = smul.addr %s247, 2
      %s249 = smul.addr %s248, 4
      %s250 = scalar_lea.vmem %s0, %s249
      %p251 = pneg %p40
      %p252 = pneg %p37
      %p253 = pneg %p61
      %p254 = pneg %p58
      %p255 = pneg %p82
      %p256 = pneg %p79
      %p257 = pneg %p103
      %p258 = pneg %p100
      %p259 = pneg %p124
      %p260 = pneg %p121
      %p261 = pneg %p145
      %p262 = pneg %p142
      %p263 = pneg %p171
      %p264 = pneg %p168
      %p265 = scmp.lt.s32.totalorder %s19, 1
      %s266 = scalar_select %p265, %s19, 1
      %s267 = smul.addr %s266, 2
      %s268 = smul.addr %s267, 4
      %s269 = scalar_lea.vmem %s6, %s268
      %p270 = pneg %p197
      %p271 = pneg %p194
      %p272 = scmp.lt.s32.totalorder %s19, 1
      %s273 = scalar_select %p272, %s19, 1
      %s274 = smul.addr %s273, 2
      %s275 = smul.addr %s274, 4
      %s276 = scalar_lea.vmem %s7, %s275
      %p277 = scmp.lt.s32.totalorder %s19, 1
      %s278 = scalar_select %p277, %s19, 1
      %s279 = smul.addr %s278, 2
      %s280 = smul.addr %s279, 4
      %s281 = scalar_lea.vmem %s0, %s280
      %p282 = scmp.lt.s32.totalorder %s19, 1
      %s283 = scalar_select %p282, %s19, 1
      %s284 = smul.addr %s283, 2
      %s285 = smul.addr %s284, 4
      %s286 = scalar_lea.vmem %s6, %s285
      %p287 = scmp.lt.s32.totalorder %s19, 1
      %s288 = scalar_select %p287, %s19, 1
      %s289 = smul.addr %s288, 2
      %s290 = smul.addr %s289, 4
      %s291 = scalar_lea.vmem %s7, %s290
      %v292 = vld [vmem:[%s1] sm:$0xf]
      %v293 = vld [vmem:[%s1 + $0x4] sm:$0xf]
      %v294 = vld [vmem:[%s1 + $0x8] sm:$0xf]
      %v295 = vld [vmem:[%s1 + $0xc] sm:$0xf]
      %vm296 = vcmask 3072
      %v297 = vsel %vm296, %v292, 0.0
      %v298 = vsel %vm296, %v294, 0.0
      %v299 = vadd.f32 %v297, %v298
      %v300 = vsel %vm296, %v293, 0.0
      %v301 = vsel %vm296, %v295, 0.0
      %v302 = vadd.f32 %v300, %v301
      %v303 = vmul.f32 %v299, 0.001953125
      %v304 = vmul.f32 %v302, 0.001953125
      %v305 = vmul.f32 %v303, %v303
      %v306 = vsub.f32 %v304, %v305
      %v307 = vadd.f32 %v306, 1e-05
      %v308 = vrsqrt.pop %v307
      %v309 = vld [vmem:[%s2] sm:$0xf]
      %v310 = vmul.f32 %v308, %v309
      %v311 = vld [vmem:[%s3] sm:$0xf]
      %v312 = vmul.f32 %v303, %v310
      %v313 = vsub.f32 %v311, %v312
      %v314 = vld [vmem:[%s281] sm:$0xff]
      %316 = vset.pattern.permute.xlu0 0
      %317 = vperm.xlu0 %316, %v310
      %v318 = vpop.permute.xlu0 %317
      %v320 = vunpack.c.l.s4 839922192
      %v321 = vunpack.c.0.s8 %v320
      %v322 = vlaneseq
      %v323 = vshrl.u32 %v322, 7
      %v324 = vsub.s32 %v321, %v323
      %v325 = vrot.slane %v318, %v324
      %v327 = vmul.f32 %v314, %v325
      %329 = vset.pattern.permute.xlu0 0
      %330 = vperm.xlu0 %329, %v313
      %v331 = vpop.permute.xlu0 %330
      %v333 = vunpack.c.l.s4 839922192
      %v334 = vunpack.c.0.s8 %v333
      %v335 = vlaneseq
      %v336 = vshrl.u32 %v335, 7
      %v337 = vsub.s32 %v334, %v336
      %v338 = vrot.slane %v331, %v337
      %v340 = vadd.f32 %v327, %v338
      %v341 = vmax.f32 %v340, 0.0
      %v343 = vcombine.high %v341, %v341
      %345 = vrot.lane.b32.xlu0 %v341, 17
      %v346 = vpop.permute.xlu0 %345
      %347 = vrot.lane.b32.xlu0 %v343, 17
      %v348 = vpop.permute.xlu0 %347
      %v349 = vlaneseq
      %v350 = vand.u32 %v349, 127
      %vm351 = vcmp.lt.s32.totalorder %v350, 17
      %v352 = vsel %vm351, %v346, %v348
      %v353 = vsel %vm351, %v348, %v346
      %v354 = vld [vmem:[%s5] sm:$0x3]
      %v356 = vlaneseq
      %v357 = vshrl.u32 %v356, 7
      %v358 = vsub.s32 0, %v357
      %v359 = vrot.slane %v354, %v358
      %v360 = vlaneseq
      %v361 = vshrl.u32 %v360, 7
      %v362 = vsub.s32 1, %v361
      %v363 = vrot.slane %v354, %v362
      %v366 = vmul.f32 %v353, %v359
      %v367 = vmul.f32 %v352, %v363
      %v368 = vld [vmem:[%s4] sm:$0xf]
      %369 = vrot.lane.b32.xlu0 %v341, 16
      %v370 = vpop.permute.xlu0 %369
      %371 = vrot.lane.b32.xlu0 %v343, 16
      %v372 = vpop.permute.xlu0 %371
      %vm373 = vcmp.lt.s32.totalorder %v350, 16
      %v374 = vsel %vm373, %v370, %v372
      %v375 = vsel %vm373, %v372, %v370
      %s376 = scalar_lea.vmem %s5, 2
      %v377 = vld [vmem:[%s376] sm:$0x3]
      %v379 = vlaneseq
      %v380 = vshrl.u32 %v379, 7
      %v381 = vsub.s32 0, %v380
      %v382 = vrot.slane %v377, %v381
      %v383 = vlaneseq
      %v384 = vshrl.u32 %v383, 7
      %v385 = vsub.s32 1, %v384
      %v386 = vrot.slane %v377, %v385
      %v389 = vmul.f32 %v375, %v382
      %v390 = vmul.f32 %v374, %v386
      %s391 = scalar_lea.vmem %s4, 4
      %v392 = vld [vmem:[%s391] sm:$0xf]
      %vm393 = vcmask 31744
      %v395 = vsel %vm393, %v392, 0
      %vm397 = vcmask 1043456
      %v399 = vsel %vm397, %v389, 0
      %v402 = vsel %vm397, %v390, 0
      %404 = vmatprep.subr.mxu0 %v402
      %405 = vmatpush1.msra.mxu0 %v399
      %406 = vmatprep.subr.mxu0 0.0
      %407 = vmatpush1.msra.mxu0 0.0
      %408 = vmatprep.subr.mxu0 0.0
      %409 = vmatpush1.msra.mxu0 0.0
      %410 = vmatprep.subr.mxu0 0.0
      %411 = vmatpush1.msra.mxu0 0.0
      %412 = vmatprep.subr.mxu0 0.0
      %413 = vmatpush1.msra.mxu0 0.0
      %414 = vmatprep.subr.mxu0 0.0
      %415 = vmatpush1.msra.mxu0 0.0
      %416 = vmatprep.subr.mxu0 0.0
      %417 = vmatpush1.msra.mxu0 0.0
      %418 = vmatprep.subr.mxu0 0.0
      %419 = vmatpush1.msra.mxu0 0.0
      %420 = vmatprep.subr.mxu0 0.0
      %421 = vmatpush1.msra.mxu0 0.0
      %422 = vmatprep.subr.mxu0 0.0
      %423 = vmatpush1.msra.mxu0 0.0
      %424 = vmatprep.subr.mxu0 0.0
      %425 = vmatpush1.msra.mxu0 0.0
      %426 = vmatprep.subr.mxu0 0.0
      %427 = vmatpush1.msra.mxu0 0.0
      %428 = vmatprep.subr.mxu0 0.0
      %429 = vmatpush1.msra.mxu0 0.0
      %430 = vmatprep.subr.mxu0 0.0
      %431 = vmatpush1.msra.mxu0 0.0
      %432 = vmatprep.subr.mxu0 0.0
      %433 = vmatpush1.msra.mxu0 0.0
      %434 = vmatprep.subr.mxu0 0.0
      %435 = vmatpush1.msra.mxu0 0.0
      %436 = vmatprep.subr.mxu0 0.0
      %437 = vmatpush1.msra.mxu0 0.0
      %438 = vmatprep.subr.mxu0 0.0
      %439 = vmatpush1.msra.mxu0 0.0
      %440 = vmatprep.subr.mxu0 0.0
      %441 = vmatpush1.msra.mxu0 0.0
      %442 = vmatprep.subr.mxu0 0.0
      %443 = vmatpush1.msra.mxu0 0.0
      %444 = vmatprep.subr.mxu0 0.0
      %445 = vmatpush1.msra.mxu0 0.0
      %446 = vmatprep.subr.mxu0 0.0
      %447 = vmatpush1.msra.mxu0 0.0
      %448 = vmatprep.subr.mxu0 0.0
      %449 = vmatpush1.msra.mxu0 0.0
      %450 = vmatprep.subr.mxu0 0.0
      %451 = vmatpush1.msra.mxu0 0.0
      %452 = vmatprep.subr.mxu0 0.0
      %453 = vmatpush1.msra.mxu0 0.0
      %454 = vmatprep.subr.mxu0 0.0
      %455 = vmatpush1.msra.mxu0 0.0
      %456 = vmatprep.subr.mxu0 0.0
      %457 = vmatpush1.msra.mxu0 0.0
      %458 = vmatprep.subr.mxu0 0.0
      %459 = vmatpush1.msra.mxu0 0.0
      %460 = vmatprep.subr.mxu0 0.0
      %461 = vmatpush1.msra.mxu0 0.0
      %462 = vmatprep.subr.mxu0 0.0
      %463 = vmatpush1.msra.mxu0 0.0
      %464 = vmatprep.subr.mxu0 0.0
      %465 = vmatpush1.msra.mxu0 0.0
      %466 = vmatprep.subr.mxu0 0.0
      %467 = vmatpush1.msra.mxu0 0.0
      %468 = vmatprep.mubr.f32.mxu0 0.0
      %469 = vmatmul.mubr.f32.gmra.mrb[0].mxu0 %v395
      %v470 = vpop.f32.mrb[0].mxu0
      %v471 = vadd.f32 0.0, %v470
      %v472 = vpop.f32.mrb[0].mxu0
      %v473 = vadd.f32 0.0, %v472
      %474 = vdwg.mxu0
      %v476 = vsel %vm393, %v368, 0
      %v479 = vsel %vm397, %v366, 0
      %v482 = vsel %vm397, %v367, 0
      %484 = vmatprep.subr.mxu0 %v482
      %485 = vmatpush1.msra.mxu0 %v479
      %486 = vmatprep.subr.mxu0 0.0
      %487 = vmatpush1.msra.mxu0 0.0
      %488 = vmatprep.subr.mxu0 0.0
      %489 = vmatpush1.msra.mxu0 0.0
      %490 = vmatprep.subr.mxu0 0.0
      %491 = vmatpush1.msra.mxu0 0.0
      %492 = vmatprep.subr.mxu0 0.0
      %493 = vmatpush1.msra.mxu0 0.0
      %494 = vmatprep.subr.mxu0 0.0
      %495 = vmatpush1.msra.mxu0 0.0
      %496 = vmatprep.subr.mxu0 0.0
      %497 = vmatpush1.msra.mxu0 0.0
      %498 = vmatprep.subr.mxu0 0.0
      %499 = vmatpush1.msra.mxu0 0.0
      %500 = vmatprep.subr.mxu0 0.0
      %501 = vmatpush1.msra.mxu0 0.0
      %502 = vmatprep.subr.mxu0 0.0
      %503 = vmatpush1.msra.mxu0 0.0
      %504 = vmatprep.subr.mxu0 0.0
      %505 = vmatpush1.msra.mxu0 0.0
      %506 = vmatprep.subr.mxu0 0.0
      %507 = vmatpush1.msra.mxu0 0.0
      %508 = vmatprep.subr.mxu0 0.0
      %509 = vmatpush1.msra.mxu0 0.0
      %510 = vmatprep.subr.mxu0 0.0
      %511 = vmatpush1.msra.mxu0 0.0
      %512 = vmatprep.subr.mxu0 0.0
      %513 = vmatpush1.msra.mxu0 0.0
      %514 = vmatprep.subr.mxu0 0.0
      %515 = vmatpush1.msra.mxu0 0.0
      %516 = vmatprep.subr.mxu0 0.0
      %517 = vmatpush1.msra.mxu0 0.0
      %518 = vmatprep.subr.mxu0 0.0
      %519 = vmatpush1.msra.mxu0 0.0
      %520 = vmatprep.subr.mxu0 0.0
      %521 = vmatpush1.msra.mxu0 0.0
      %522 = vmatprep.subr.mxu0 0.0
      %523 = vmatpush1.msra.mxu0 0.0
      %524 = vmatprep.subr.mxu0 0.0
      %525 = vmatpush1.msra.mxu0 0.0
      %526 = vmatprep.subr.mxu0 0.0
      %527 = vmatpush1.msra.mxu0 0.0
      %528 = vmatprep.subr.mxu0 0.0
      %529 = vmatpush1.msra.mxu0 0.0
      %530 = vmatprep.subr.mxu0 0.0
      %531 = vmatpush1.msra.mxu0 0.0
      %532 = vmatprep.subr.mxu0 0.0
      %533 = vmatpush1.msra.mxu0 0.0
      %534 = vmatprep.subr.mxu0 0.0
      %535 = vmatpush1.msra.mxu0 0.0
      %536 = vmatprep.subr.mxu0 0.0
      %537 = vmatpush1.msra.mxu0 0.0
      %538 = vmatprep.subr.mxu0 0.0
      %539 = vmatpush1.msra.mxu0 0.0
      %540 = vmatprep.subr.mxu0 0.0
      %541 = vmatpush1.msra.mxu0 0.0
      %542 = vmatprep.subr.mxu0 0.0
      %543 = vmatpush1.msra.mxu0 0.0
      %544 = vmatprep.subr.mxu0 0.0
      %545 = vmatpush1.msra.mxu0 0.0
      %546 = vmatprep.subr.mxu0 0.0
      %547 = vmatpush1.msra.mxu0 0.0
      %548 = vmatprep.mubr.f32.mxu0 0.0
      %549 = vmatmul.mubr.f32.gmra.mrb[0].mxu0 %v476
      %v550 = vpop.f32.mrb[0].mxu0
      %v551 = vadd.f32 %v471, %v550
      %v552 = vpop.f32.mrb[0].mxu0
      %v553 = vadd.f32 %v473, %v552
      %554 = vdwg.mxu0
      %555 = vrot.lane.b32.xlu0 %v341, 15
      %v556 = vpop.permute.xlu0 %555
      %557 = vrot.lane.b32.xlu0 %v343, 15
      %v558 = vpop.permute.xlu0 %557
      %vm559 = vcmp.lt.s32.totalorder %v350, 15
      %v560 = vsel %vm559, %v556, %v558
      %v561 = vsel %vm559, %v558, %v556
      %s562 = scalar_lea.vmem %s5, 4
      %v563 = vld [vmem:[%s562] sm:$0x3]
      %v565 = vlaneseq
      %v566 = vshrl.u32 %v565, 7
      %v567 = vsub.s32 0, %v566
      %v568 = vrot.slane %v563, %v567
      %v569 = vlaneseq
      %v570 = vshrl.u32 %v569, 7
      %v571 = vsub.s32 1, %v570
      %v572 = vrot.slane %v563, %v571
      %v575 = vmul.f32 %v561, %v568
      %v576 = vmul.f32 %v560, %v572
      %s577 = scalar_lea.vmem %s4, 8
      %v578 = vld [vmem:[%s577] sm:$0xf]
      %v580 = vsel %vm393, %v578, 0
      %v583 = vsel %vm397, %v575, 0
      %v586 = vsel %vm397, %v576, 0
      %588 = vmatprep.subr.mxu0 %v586
      %589 = vmatpush1.msra.mxu0 %v583
      %590 = vmatprep.subr.mxu0 0.0
      %591 = vmatpush1.msra.mxu0 0.0
      %592 = vmatprep.subr.mxu0 0.0
      %593 = vmatpush1.msra.mxu0 0.0
      %594 = vmatprep.subr.mxu0 0.0
      %595 = vmatpush1.msra.mxu0 0.0
      %596 = vmatprep.subr.mxu0 0.0
      %597 = vmatpush1.msra.mxu0 0.0
      %598 = vmatprep.subr.mxu0 0.0
      %599 = vmatpush1.msra.mxu0 0.0
      %600 = vmatprep.subr.mxu0 0.0
      %601 = vmatpush1.msra.mxu0 0.0
      %602 = vmatprep.subr.mxu0 0.0
      %603 = vmatpush1.msra.mxu0 0.0
      %604 = vmatprep.subr.mxu0 0.0
      %605 = vmatpush1.msra.mxu0 0.0
      %606 = vmatprep.subr.mxu0 0.0
      %607 = vmatpush1.msra.mxu0 0.0
      %608 = vmatprep.subr.mxu0 0.0
      %609 = vmatpush1.msra.mxu0 0.0
      %610 = vmatprep.subr.mxu0 0.0
      %611 = vmatpush1.msra.mxu0 0.0
      %612 = vmatprep.subr.mxu0 0.0
      %613 = vmatpush1.msra.mxu0 0.0
      %614 = vmatprep.subr.mxu0 0.0
      %615 = vmatpush1.msra.mxu0 0.0
      %616 = vmatprep.subr.mxu0 0.0
      %617 = vmatpush1.msra.mxu0 0.0
      %618 = vmatprep.subr.mxu0 0.0
      %619 = vmatpush1.msra.mxu0 0.0
      %620 = vmatprep.subr.mxu0 0.0
      %621 = vmatpush1.msra.mxu0 0.0
      %622 = vmatprep.subr.mxu0 0.0
      %623 = vmatpush1.msra.mxu0 0.0
      %624 = vmatprep.subr.mxu0 0.0
      %625 = vmatpush1.msra.mxu0 0.0
      %626 = vmatprep.subr.mxu0 0.0
      %627 = vmatpush1.msra.mxu0 0.0
      %628 = vmatprep.subr.mxu0 0.0
      %629 = vmatpush1.msra.mxu0 0.0
      %630 = vmatprep.subr.mxu0 0.0
      %631 = vmatpush1.msra.mxu0 0.0
      %632 = vmatprep.subr.mxu0 0.0
      %633 = vmatpush1.msra.mxu0 0.0
      %634 = vmatprep.subr.mxu0 0.0
      %635 = vmatpush1.msra.mxu0 0.0
      %636 = vmatprep.subr.mxu0 0.0
      %637 = vmatpush1.msra.mxu0 0.0
      %638 = vmatprep.subr.mxu0 0.0
      %639 = vmatpush1.msra.mxu0 0.0
      %640 = vmatprep.subr.mxu0 0.0
      %641 = vmatpush1.msra.mxu0 0.0
      %642 = vmatprep.subr.mxu0 0.0
      %643 = vmatpush1.msra.mxu0 0.0
      %644 = vmatprep.subr.mxu0 0.0
      %645 = vmatpush1.msra.mxu0 0.0
      %646 = vmatprep.subr.mxu0 0.0
      %647 = vmatpush1.msra.mxu0 0.0
      %648 = vmatprep.subr.mxu0 0.0
      %649 = vmatpush1.msra.mxu0 0.0
      %650 = vmatprep.subr.mxu0 0.0
      %651 = vmatpush1.msra.mxu0 0.0
      %652 = vmatprep.mubr.f32.mxu0 0.0
      %653 = vmatmul.mubr.f32.gmra.mrb[0].mxu0 %v580
      %v654 = vpop.f32.mrb[0].mxu0
      %v655 = vadd.f32 0.0, %v654
      %v656 = vpop.f32.mrb[0].mxu0
      %v657 = vadd.f32 0.0, %v656
      %658 = vdwg.mxu0
      %v659 = vadd.f32 %v551, %v655
      %v660 = vadd.f32 %v553, %v657
      %661 = vrot.lane.b32.xlu0 %v341, 1
      %v662 = vpop.permute.xlu0 %661
      %663 = vrot.lane.b32.xlu0 %v343, 1
      %v664 = vpop.permute.xlu0 %663
      %vm665 = vcmp.lt.s32.totalorder %v350, 1
      %v666 = vsel %vm665, %v662, %v664
      %v667 = vsel %vm665, %v664, %v662
      %s668 = scalar_lea.vmem %s5, 6
      %v669 = vld [vmem:[%s668] sm:$0x3]
      %v671 = vlaneseq
      %v672 = vshrl.u32 %v671, 7
      %v673 = vsub.s32 0, %v672
      %v674 = vrot.slane %v669, %v673
      %v675 = vlaneseq
      %v676 = vshrl.u32 %v675, 7
      %v677 = vsub.s32 1, %v676
      %v678 = vrot.slane %v669, %v677
      %v681 = vmul.f32 %v667, %v674
      %v682 = vmul.f32 %v666, %v678
      %s683 = scalar_lea.vmem %s4, 12
      %v684 = vld [vmem:[%s683] sm:$0xf]
      %v686 = vsel %vm393, %v684, 0
      %v689 = vsel %vm397, %v681, 0
      %v692 = vsel %vm397, %v682, 0
      %694 = vmatprep.subr.mxu0 %v692
      %695 = vmatpush1.msra.mxu0 %v689
      %696 = vmatprep.subr.mxu0 0.0
      %697 = vmatpush1.msra.mxu0 0.0
      %698 = vmatprep.subr.mxu0 0.0
      %699 = vmatpush1.msra.mxu0 0.0
      %700 = vmatprep.subr.mxu0 0.0
      %701 = vmatpush1.msra.mxu0 0.0
      %702 = vmatprep.subr.mxu0 0.0
      %703 = vmatpush1.msra.mxu0 0.0
      %704 = vmatprep.subr.mxu0 0.0
      %705 = vmatpush1.msra.mxu0 0.0
      %706 = vmatprep.subr.mxu0 0.0
      %707 = vmatpush1.msra.mxu0 0.0
      %708 = vmatprep.subr.mxu0 0.0
      %709 = vmatpush1.msra.mxu0 0.0
      %710 = vmatprep.subr.mxu0 0.0
      %711 = vmatpush1.msra.mxu0 0.0
      %712 = vmatprep.subr.mxu0 0.0
      %713 = vmatpush1.msra.mxu0 0.0
      %714 = vmatprep.subr.mxu0 0.0
      %715 = vmatpush1.msra.mxu0 0.0
      %716 = vmatprep.subr.mxu0 0.0
      %717 = vmatpush1.msra.mxu0 0.0
      %718 = vmatprep.subr.mxu0 0.0
      %719 = vmatpush1.msra.mxu0 0.0
      %720 = vmatprep.subr.mxu0 0.0
      %721 = vmatpush1.msra.mxu0 0.0
      %722 = vmatprep.subr.mxu0 0.0
      %723 = vmatpush1.msra.mxu0 0.0
      %724 = vmatprep.subr.mxu0 0.0
      %725 = vmatpush1.msra.mxu0 0.0
      %726 = vmatprep.subr.mxu0 0.0
      %727 = vmatpush1.msra.mxu0 0.0
      %728 = vmatprep.subr.mxu0 0.0
      %729 = vmatpush1.msra.mxu0 0.0
      %730 = vmatprep.subr.mxu0 0.0
      %731 = vmatpush1.msra.mxu0 0.0
      %732 = vmatprep.subr.mxu0 0.0
      %733 = vmatpush1.msra.mxu0 0.0
      %734 = vmatprep.subr.mxu0 0.0
      %735 = vmatpush1.msra.mxu0 0.0
      %736 = vmatprep.subr.mxu0 0.0
      %737 = vmatpush1.msra.mxu0 0.0
      %738 = vmatprep.subr.mxu0 0.0
      %739 = vmatpush1.msra.mxu0 0.0
      %740 = vmatprep.subr.mxu0 0.0
      %741 = vmatpush1.msra.mxu0 0.0
      %742 = vmatprep.subr.mxu0 0.0
      %743 = vmatpush1.msra.mxu0 0.0
      %744 = vmatprep.subr.mxu0 0.0
      %745 = vmatpush1.msra.mxu0 0.0
      %746 = vmatprep.subr.mxu0 0.0
      %747 = vmatpush1.msra.mxu0 0.0
      %748 = vmatprep.subr.mxu0 0.0
      %749 = vmatpush1.msra.mxu0 0.0
      %750 = vmatprep.subr.mxu0 0.0
      %751 = vmatpush1.msra.mxu0 0.0
      %752 = vmatprep.subr.mxu0 0.0
      %753 = vmatpush1.msra.mxu0 0.0
      %754 = vmatprep.subr.mxu0 0.0
      %755 = vmatpush1.msra.mxu0 0.0
      %756 = vmatprep.subr.mxu0 0.0
      %757 = vmatpush1.msra.mxu0 0.0
      %758 = vmatprep.mubr.f32.mxu0 0.0
      %759 = vmatmul.mubr.f32.gmra.mrb[0].mxu0 %v686
      %v760 = vpop.f32.mrb[0].mxu0
      %v761 = vadd.f32 0.0, %v760
      %v762 = vpop.f32.mrb[0].mxu0
      %v763 = vadd.f32 0.0, %v762
      %764 = vdwg.mxu0
      %v765 = vadd.f32 %v659, %v761
      %v766 = vadd.f32 %v660, %v763
      %s767 = scalar_lea.vmem %s4, 16
      %v768 = vld [vmem:[%s767] sm:$0xf]
      %v770 = vsel %vm393, %v768, 0
      %v772 = vsel %vm397, %v341, 0
      %v774 = vsel %vm397, %v343, 0
      %776 = vmatprep.subr.mxu0 %v774
      %777 = vmatpush1.msra.mxu0 %v772
      %778 = vmatprep.subr.mxu0 0.0
      %779 = vmatpush1.msra.mxu0 0.0
      %780 = vmatprep.subr.mxu0 0.0
      %781 = vmatpush1.msra.mxu0 0.0
      %782 = vmatprep.subr.mxu0 0.0
      %783 = vmatpush1.msra.mxu0 0.0
      %784 = vmatprep.subr.mxu0 0.0
      %785 = vmatpush1.msra.mxu0 0.0
      %786 = vmatprep.subr.mxu0 0.0
      %787 = vmatpush1.msra.mxu0 0.0
      %788 = vmatprep.subr.mxu0 0.0
      %789 = vmatpush1.msra.mxu0 0.0
      %790 = vmatprep.subr.mxu0 0.0
      %791 = vmatpush1.msra.mxu0 0.0
      %792 = vmatprep.subr.mxu0 0.0
      %793 = vmatpush1.msra.mxu0 0.0
      %794 = vmatprep.subr.mxu0 0.0
      %795 = vmatpush1.msra.mxu0 0.0
      %796 = vmatprep.subr.mxu0 0.0
      %797 = vmatpush1.msra.mxu0 0.0
      %798 = vmatprep.subr.mxu0 0.0
      %799 = vmatpush1.msra.mxu0 0.0
      %800 = vmatprep.subr.mxu0 0.0
      %801 = vmatpush1.msra.mxu0 0.0
      %802 = vmatprep.subr.mxu0 0.0
      %803 = vmatpush1.msra.mxu0 0.0
      %804 = vmatprep.subr.mxu0 0.0
      %805 = vmatpush1.msra.mxu0 0.0
      %806 = vmatprep.subr.mxu0 0.0
      %807 = vmatpush1.msra.mxu0 0.0
      %808 = vmatprep.subr.mxu0 0.0
      %809 = vmatpush1.msra.mxu0 0.0
      %810 = vmatprep.subr.mxu0 0.0
      %811 = vmatpush1.msra.mxu0 0.0
      %812 = vmatprep.subr.mxu0 0.0
      %813 = vmatpush1.msra.mxu0 0.0
      %814 = vmatprep.subr.mxu0 0.0
      %815 = vmatpush1.msra.mxu0 0.0
      %816 = vmatprep.subr.mxu0 0.0
      %817 = vmatpush1.msra.mxu0 0.0
      %818 = vmatprep.subr.mxu0 0.0
      %819 = vmatpush1.msra.mxu0 0.0
      %820 = vmatprep.subr.mxu0 0.0
      %821 = vmatpush1.msra.mxu0 0.0
      %822 = vmatprep.subr.mxu0 0.0
      %823 = vmatpush1.msra.mxu0 0.0
      %824 = vmatprep.subr.mxu0 0.0
      %825 = vmatpush1.msra.mxu0 0.0
      %826 = vmatprep.subr.mxu0 0.0
      %827 = vmatpush1.msra.mxu0 0.0
      %828 = vmatprep.subr.mxu0 0.0
      %829 = vmatpush1.msra.mxu0 0.0
      %830 = vmatprep.subr.mxu0 0.0
      %831 = vmatpush1.msra.mxu0 0.0
      %832 = vmatprep.subr.mxu0 0.0
      %833 = vmatpush1.msra.mxu0 0.0
      %834 = vmatprep.subr.mxu0 0.0
      %835 = vmatpush1.msra.mxu0 0.0
      %836 = vmatprep.subr.mxu0 0.0
      %837 = vmatpush1.msra.mxu0 0.0
      %838 = vmatprep.subr.mxu0 0.0
      %839 = vmatpush1.msra.mxu0 0.0
      %840 = vmatprep.mubr.f32.mxu0 0.0
      %841 = vmatmul.mubr.f32.gmra.mrb[0].mxu0 %v770
      %v842 = vpop.f32.mrb[0].mxu0
      %v843 = vadd.f32 0.0, %v842
      %v844 = vpop.f32.mrb[0].mxu0
      %v845 = vadd.f32 0.0, %v844
      %846 = vdwg.mxu0
      %v847 = vadd.f32 %v765, %v843
      %v848 = vadd.f32 %v766, %v845
      %849 = vrot.lane.b32.xlu0 %v341, 127
      %v850 = vpop.permute.xlu0 %849
      %851 = vrot.lane.b32.xlu0 %v343, 127
      %v852 = vpop.permute.xlu0 %851
      %vm853 = vcmp.lt.s32.totalorder %v350, 127
      %v854 = vsel %vm853, %v850, %v852
      %v855 = vsel %vm853, %v852, %v850
      %s856 = scalar_lea.vmem %s5, 10
      %v857 = vld [vmem:[%s856] sm:$0x3]
      %v859 = vlaneseq
      %v860 = vshrl.u32 %v859, 7
      %v861 = vsub.s32 0, %v860
      %v862 = vrot.slane %v857, %v861
      %v863 = vlaneseq
      %v864 = vshrl.u32 %v863, 7
      %v865 = vsub.s32 1, %v864
      %v866 = vrot.slane %v857, %v865
      %v869 = vmul.f32 %v854, %v862
      %v870 = vmul.f32 %v855, %v866
      %s871 = scalar_lea.vmem %s4, 20
      %v872 = vld [vmem:[%s871] sm:$0xf]
      %v874 = vsel %vm393, %v872, 0
      %v877 = vsel %vm397, %v869, 0
      %v880 = vsel %vm397, %v870, 0
      %882 = vmatprep.subr.mxu0 %v880
      %883 = vmatpush1.msra.mxu0 %v877
      %884 = vmatprep.subr.mxu0 0.0
      %885 = vmatpush1.msra.mxu0 0.0
      %886 = vmatprep.subr.mxu0 0.0
      %887 = vmatpush1.msra.mxu0 0.0
      %888 = vmatprep.subr.mxu0 0.0
      %889 = vmatpush1.msra.mxu0 0.0
      %890 = vmatprep.subr.mxu0 0.0
      %891 = vmatpush1.msra.mxu0 0.0
      %892 = vmatprep.subr.mxu0 0.0
      %893 = vmatpush1.msra.mxu0 0.0
      %894 = vmatprep.subr.mxu0 0.0
      %895 = vmatpush1.msra.mxu0 0.0
      %896 = vmatprep.subr.mxu0 0.0
      %897 = vmatpush1.msra.mxu0 0.0
      %898 = vmatprep.subr.mxu0 0.0
      %899 = vmatpush1.msra.mxu0 0.0
      %900 = vmatprep.subr.mxu0 0.0
      %901 = vmatpush1.msra.mxu0 0.0
      %902 = vmatprep.subr.mxu0 0.0
      %903 = vmatpush1.msra.mxu0 0.0
      %904 = vmatprep.subr.mxu0 0.0
      %905 = vmatpush1.msra.mxu0 0.0
      %906 = vmatprep.subr.mxu0 0.0
      %907 = vmatpush1.msra.mxu0 0.0
      %908 = vmatprep.subr.mxu0 0.0
      %909 = vmatpush1.msra.mxu0 0.0
      %910 = vmatprep.subr.mxu0 0.0
      %911 = vmatpush1.msra.mxu0 0.0
      %912 = vmatprep.subr.mxu0 0.0
      %913 = vmatpush1.msra.mxu0 0.0
      %914 = vmatprep.subr.mxu0 0.0
      %915 = vmatpush1.msra.mxu0 0.0
      %916 = vmatprep.subr.mxu0 0.0
      %917 = vmatpush1.msra.mxu0 0.0
      %918 = vmatprep.subr.mxu0 0.0
      %919 = vmatpush1.msra.mxu0 0.0
      %920 = vmatprep.subr.mxu0 0.0
      %921 = vmatpush1.msra.mxu0 0.0
      %922 = vmatprep.subr.mxu0 0.0
      %923 = vmatpush1.msra.mxu0 0.0
      %924 = vmatprep.subr.mxu0 0.0
      %925 = vmatpush1.msra.mxu0 0.0
      %926 = vmatprep.subr.mxu0 0.0
      %927 = vmatpush1.msra.mxu0 0.0
      %928 = vmatprep.subr.mxu0 0.0
      %929 = vmatpush1.msra.mxu0 0.0
      %930 = vmatprep.subr.mxu0 0.0
      %931 = vmatpush1.msra.mxu0 0.0
      %932 = vmatprep.subr.mxu0 0.0
      %933 = vmatpush1.msra.mxu0 0.0
      %934 = vmatprep.subr.mxu0 0.0
      %935 = vmatpush1.msra.mxu0 0.0
      %936 = vmatprep.subr.mxu0 0.0
      %937 = vmatpush1.msra.mxu0 0.0
      %938 = vmatprep.subr.mxu0 0.0
      %939 = vmatpush1.msra.mxu0 0.0
      %940 = vmatprep.subr.mxu0 0.0
      %941 = vmatpush1.msra.mxu0 0.0
      %942 = vmatprep.subr.mxu0 0.0
      %943 = vmatpush1.msra.mxu0 0.0
      %944 = vmatprep.subr.mxu0 0.0
      %945 = vmatpush1.msra.mxu0 0.0
      %946 = vmatprep.mubr.f32.mxu0 0.0
      %947 = vmatmul.mubr.f32.gmra.mrb[0].mxu0 %v874
      %v948 = vpop.f32.mrb[0].mxu0
      %v949 = vadd.f32 0.0, %v948
      %v950 = vpop.f32.mrb[0].mxu0
      %v951 = vadd.f32 0.0, %v950
      %952 = vdwg.mxu0
      %v953 = vadd.f32 %v847, %v949
      %v954 = vadd.f32 %v848, %v951
      %955 = vrot.lane.b32.xlu0 %v341, 113
      %v956 = vpop.permute.xlu0 %955
      %957 = vrot.lane.b32.xlu0 %v343, 113
      %v958 = vpop.permute.xlu0 %957
      %vm959 = vcmp.lt.s32.totalorder %v350, 113
      %v960 = vsel %vm959, %v956, %v958
      %v961 = vsel %vm959, %v958, %v956
      %s962 = scalar_lea.vmem %s5, 12
      %v963 = vld [vmem:[%s962] sm:$0x3]
      %v965 = vlaneseq
      %v966 = vshrl.u32 %v965, 7
      %v967 = vsub.s32 0, %v966
      %v968 = vrot.slane %v963, %v967
      %v969 = vlaneseq
      %v970 = vshrl.u32 %v969, 7
      %v971 = vsub.s32 1, %v970
      %v972 = vrot.slane %v963, %v971
      %v975 = vmul.f32 %v960, %v968
      %v976 = vmul.f32 %v961, %v972
      %s977 = scalar_lea.vmem %s4, 24
      %v978 = vld [vmem:[%s977] sm:$0xf]
      %v980 = vsel %vm393, %v978, 0
      %v983 = vsel %vm397, %v975, 0
      %v986 = vsel %vm397, %v976, 0
      %988 = vmatprep.subr.mxu0 %v986
      %989 = vmatpush1.msra.mxu0 %v983
      %990 = vmatprep.subr.mxu0 0.0
      %991 = vmatpush1.msra.mxu0 0.0
      %992 = vmatprep.subr.mxu0 0.0
      %993 = vmatpush1.msra.mxu0 0.0
      %994 = vmatprep.subr.mxu0 0.0
      %995 = vmatpush1.msra.mxu0 0.0
      %996 = vmatprep.subr.mxu0 0.0
      %997 = vmatpush1.msra.mxu0 0.0
      %998 = vmatprep.subr.mxu0 0.0
      %999 = vmatpush1.msra.mxu0 0.0
      %1000 = vmatprep.subr.mxu0 0.0
      %1001 = vmatpush1.msra.mxu0 0.0
      %1002 = vmatprep.subr.mxu0 0.0
      %1003 = vmatpush1.msra.mxu0 0.0
      %1004 = vmatprep.subr.mxu0 0.0
      %1005 = vmatpush1.msra.mxu0 0.0
      %1006 = vmatprep.subr.mxu0 0.0
      %1007 = vmatpush1.msra.mxu0 0.0
      %1008 = vmatprep.subr.mxu0 0.0
      %1009 = vmatpush1.msra.mxu0 0.0
      %1010 = vmatprep.subr.mxu0 0.0
      %1011 = vmatpush1.msra.mxu0 0.0
      %1012 = vmatprep.subr.mxu0 0.0
      %1013 = vmatpush1.msra.mxu0 0.0
      %1014 = vmatprep.subr.mxu0 0.0
      %1015 = vmatpush1.msra.mxu0 0.0
      %1016 = vmatprep.subr.mxu0 0.0
      %1017 = vmatpush1.msra.mxu0 0.0
      %1018 = vmatprep.subr.mxu0 0.0
      %1019 = vmatpush1.msra.mxu0 0.0
      %1020 = vmatprep.subr.mxu0 0.0
      %1021 = vmatpush1.msra.mxu0 0.0
      %1022 = vmatprep.subr.mxu0 0.0
      %1023 = vmatpush1.msra.mxu0 0.0
      %1024 = vmatprep.subr.mxu0 0.0
      %1025 = vmatpush1.msra.mxu0 0.0
      %1026 = vmatprep.subr.mxu0 0.0
      %1027 = vmatpush1.msra.mxu0 0.0
      %1028 = vmatprep.subr.mxu0 0.0
      %1029 = vmatpush1.msra.mxu0 0.0
      %1030 = vmatprep.subr.mxu0 0.0
      %1031 = vmatpush1.msra.mxu0 0.0
      %1032 = vmatprep.subr.mxu0 0.0
      %1033 = vmatpush1.msra.mxu0 0.0
      %1034 = vmatprep.subr.mxu0 0.0
      %1035 = vmatpush1.msra.mxu0 0.0
      %1036 = vmatprep.subr.mxu0 0.0
      %1037 = vmatpush1.msra.mxu0 0.0
      %1038 = vmatprep.subr.mxu0 0.0
      %1039 = vmatpush1.msra.mxu0 0.0
      %1040 = vmatprep.subr.mxu0 0.0
      %1041 = vmatpush1.msra.mxu0 0.0
      %1042 = vmatprep.subr.mxu0 0.0
      %1043 = vmatpush1.msra.mxu0 0.0
      %1044 = vmatprep.subr.mxu0 0.0
      %1045 = vmatpush1.msra.mxu0 0.0
      %1046 = vmatprep.subr.mxu0 0.0
      %1047 = vmatpush1.msra.mxu0 0.0
      %1048 = vmatprep.subr.mxu0 0.0
      %1049 = vmatpush1.msra.mxu0 0.0
      %1050 = vmatprep.subr.mxu0 0.0
      %1051 = vmatpush1.msra.mxu0 0.0
      %1052 = vmatprep.mubr.f32.mxu0 0.0
      %1053 = vmatmul.mubr.f32.gmra.mrb[0].mxu0 %v980
      %v1054 = vpop.f32.mrb[0].mxu0
      %v1055 = vadd.f32 0.0, %v1054
      %v1056 = vpop.f32.mrb[0].mxu0
      %v1057 = vadd.f32 0.0, %v1056
      %1058 = vdwg.mxu0
      %v1059 = vadd.f32 %v953, %v1055
      %v1060 = vadd.f32 %v954, %v1057
      %1061 = vrot.lane.b32.xlu0 %v341, 112
      %v1062 = vpop.permute.xlu0 %1061
      %1063 = vrot.lane.b32.xlu0 %v343, 112
      %v1064 = vpop.permute.xlu0 %1063
      %vm1065 = vcmp.lt.s32.totalorder %v350, 112
      %v1066 = vsel %vm1065, %v1062, %v1064
      %v1067 = vsel %vm1065, %v1064, %v1062
      %s1068 = scalar_lea.vmem %s5, 14
      %v1069 = vld [vmem:[%s1068] sm:$0x3]
      %v1071 = vlaneseq
      %v1072 = vshrl.u32 %v1071, 7
      %v1073 = vsub.s32 0, %v1072
      %v1074 = vrot.slane %v1069, %v1073
      %v1075 = vlaneseq
      %v1076 = vshrl.u32 %v1075, 7
      %v1077 = vsub.s32 1, %v1076
      %v1078 = vrot.slane %v1069, %v1077
      %v1081 = vmul.f32 %v1066, %v1074
      %v1082 = vmul.f32 %v1067, %v1078
      %s1083 = scalar_lea.vmem %s4, 28
      %v1084 = vld [vmem:[%s1083] sm:$0xf]
      %v1086 = vsel %vm393, %v1084, 0
      %v1089 = vsel %vm397, %v1081, 0
      %v1092 = vsel %vm397, %v1082, 0
      %1094 = vmatprep.subr.mxu0 %v1092
      %1095 = vmatpush1.msra.mxu0 %v1089
      %1096 = vmatprep.subr.mxu0 0.0
      %1097 = vmatpush1.msra.mxu0 0.0
      %1098 = vmatprep.subr.mxu0 0.0
      %1099 = vmatpush1.msra.mxu0 0.0
      %1100 = vmatprep.subr.mxu0 0.0
      %1101 = vmatpush1.msra.mxu0 0.0
      %1102 = vmatprep.subr.mxu0 0.0
      %1103 = vmatpush1.msra.mxu0 0.0
      %1104 = vmatprep.subr.mxu0 0.0
      %1105 = vmatpush1.msra.mxu0 0.0
      %1106 = vmatprep.subr.mxu0 0.0
      %1107 = vmatpush1.msra.mxu0 0.0
      %1108 = vmatprep.subr.mxu0 0.0
      %1109 = vmatpush1.msra.mxu0 0.0
      %1110 = vmatprep.subr.mxu0 0.0
      %1111 = vmatpush1.msra.mxu0 0.0
      %1112 = vmatprep.subr.mxu0 0.0
      %1113 = vmatpush1.msra.mxu0 0.0
      %1114 = vmatprep.subr.mxu0 0.0
      %1115 = vmatpush1.msra.mxu0 0.0
      %1116 = vmatprep.subr.mxu0 0.0
      %1117 = vmatpush1.msra.mxu0 0.0
      %1118 = vmatprep.subr.mxu0 0.0
      %1119 = vmatpush1.msra.mxu0 0.0
      %1120 = vmatprep.subr.mxu0 0.0
      %1121 = vmatpush1.msra.mxu0 0.0
      %1122 = vmatprep.subr.mxu0 0.0
      %1123 = vmatpush1.msra.mxu0 0.0
      %1124 = vmatprep.subr.mxu0 0.0
      %1125 = vmatpush1.msra.mxu0 0.0
      %1126 = vmatprep.subr.mxu0 0.0
      %1127 = vmatpush1.msra.mxu0 0.0
      %1128 = vmatprep.subr.mxu0 0.0
      %1129 = vmatpush1.msra.mxu0 0.0
      %1130 = vmatprep.subr.mxu0 0.0
      %1131 = vmatpush1.msra.mxu0 0.0
      %1132 = vmatprep.subr.mxu0 0.0
      %1133 = vmatpush1.msra.mxu0 0.0
      %1134 = vmatprep.subr.mxu0 0.0
      %1135 = vmatpush1.msra.mxu0 0.0
      %1136 = vmatprep.subr.mxu0 0.0
      %1137 = vmatpush1.msra.mxu0 0.0
      %1138 = vmatprep.subr.mxu0 0.0
      %1139 = vmatpush1.msra.mxu0 0.0
      %1140 = vmatprep.subr.mxu0 0.0
      %1141 = vmatpush1.msra.mxu0 0.0
      %1142 = vmatprep.subr.mxu0 0.0
      %1143 = vmatpush1.msra.mxu0 0.0
      %1144 = vmatprep.subr.mxu0 0.0
      %1145 = vmatpush1.msra.mxu0 0.0
      %1146 = vmatprep.subr.mxu0 0.0
      %1147 = vmatpush1.msra.mxu0 0.0
      %1148 = vmatprep.subr.mxu0 0.0
      %1149 = vmatpush1.msra.mxu0 0.0
      %1150 = vmatprep.subr.mxu0 0.0
      %1151 = vmatpush1.msra.mxu0 0.0
      %1152 = vmatprep.subr.mxu0 0.0
      %1153 = vmatpush1.msra.mxu0 0.0
      %1154 = vmatprep.subr.mxu0 0.0
      %1155 = vmatpush1.msra.mxu0 0.0
      %1156 = vmatprep.subr.mxu0 0.0
      %1157 = vmatpush1.msra.mxu0 0.0
      %1158 = vmatprep.mubr.f32.mxu0 0.0
      %1159 = vmatmul.mubr.f32.gmra.mrb[0].mxu0 %v1086
      %v1160 = vpop.f32.mrb[0].mxu0
      %v1161 = vadd.f32 0.0, %v1160
      %v1162 = vpop.f32.mrb[0].mxu0
      %v1163 = vadd.f32 0.0, %v1162
      %1164 = vdwg.mxu0
      %v1165 = vadd.f32 %v1059, %v1161
      %v1166 = vadd.f32 %v1060, %v1163
      %1167 = vrot.lane.b32.xlu0 %v341, 111
      %v1168 = vpop.permute.xlu0 %1167
      %1169 = vrot.lane.b32.xlu0 %v343, 111
      %v1170 = vpop.permute.xlu0 %1169
      %vm1171 = vcmp.lt.s32.totalorder %v350, 111
      %v1172 = vsel %vm1171, %v1168, %v1170
      %v1173 = vsel %vm1171, %v1170, %v1168
      %s1174 = scalar_lea.vmem %s5, 16
      %v1175 = vld [vmem:[%s1174] sm:$0x3]
      %v1177 = vlaneseq
      %v1178 = vshrl.u32 %v1177, 7
      %v1179 = vsub.s32 0, %v1178
      %v1180 = vrot.slane %v1175, %v1179
      %v1181 = vlaneseq
      %v1182 = vshrl.u32 %v1181, 7
      %v1183 = vsub.s32 1, %v1182
      %v1184 = vrot.slane %v1175, %v1183
      %v1187 = vmul.f32 %v1172, %v1180
      %v1188 = vmul.f32 %v1173, %v1184
      %s1189 = scalar_lea.vmem %s4, 32
      %v1190 = vld [vmem:[%s1189] sm:$0xf]
      %v1192 = vsel %vm393, %v1190, 0
      %v1195 = vsel %vm397, %v1187, 0
      %v1198 = vsel %vm397, %v1188, 0
      %1200 = vmatprep.subr.mxu0 %v1198
      %1201 = vmatpush1.msra.mxu0 %v1195
      %1202 = vmatprep.subr.mxu0 0.0
      %1203 = vmatpush1.msra.mxu0 0.0
      %1204 = vmatprep.subr.mxu0 0.0
      %1205 = vmatpush1.msra.mxu0 0.0
      %1206 = vmatprep.subr.mxu0 0.0
      %1207 = vmatpush1.msra.mxu0 0.0
      %1208 = vmatprep.subr.mxu0 0.0
      %1209 = vmatpush1.msra.mxu0 0.0
      %1210 = vmatprep.subr.mxu0 0.0
      %1211 = vmatpush1.msra.mxu0 0.0
      %1212 = vmatprep.subr.mxu0 0.0
      %1213 = vmatpush1.msra.mxu0 0.0
      %1214 = vmatprep.subr.mxu0 0.0
      %1215 = vmatpush1.msra.mxu0 0.0
      %1216 = vmatprep.subr.mxu0 0.0
      %1217 = vmatpush1.msra.mxu0 0.0
      %1218 = vmatprep.subr.mxu0 0.0
      %1219 = vmatpush1.msra.mxu0 0.0
      %1220 = vmatprep.subr.mxu0 0.0
      %1221 = vmatpush1.msra.mxu0 0.0
      %1222 = vmatprep.subr.mxu0 0.0
      %1223 = vmatpush1.msra.mxu0 0.0
      %1224 = vmatprep.subr.mxu0 0.0
      %1225 = vmatpush1.msra.mxu0 0.0
      %1226 = vmatprep.subr.mxu0 0.0
      %1227 = vmatpush1.msra.mxu0 0.0
      %1228 = vmatprep.subr.mxu0 0.0
      %1229 = vmatpush1.msra.mxu0 0.0
      %1230 = vmatprep.subr.mxu0 0.0
      %1231 = vmatpush1.msra.mxu0 0.0
      %1232 = vmatprep.subr.mxu0 0.0
      %1233 = vmatpush1.msra.mxu0 0.0
      %1234 = vmatprep.subr.mxu0 0.0
      %1235 = vmatpush1.msra.mxu0 0.0
      %1236 = vmatprep.subr.mxu0 0.0
      %1237 = vmatpush1.msra.mxu0 0.0
      %1238 = vmatprep.subr.mxu0 0.0
      %1239 = vmatpush1.msra.mxu0 0.0
      %1240 = vmatprep.subr.mxu0 0.0
      %1241 = vmatpush1.msra.mxu0 0.0
      %1242 = vmatprep.subr.mxu0 0.0
      %1243 = vmatpush1.msra.mxu0 0.0
      %1244 = vmatprep.subr.mxu0 0.0
      %1245 = vmatpush1.msra.mxu0 0.0
      %1246 = vmatprep.subr.mxu0 0.0
      %1247 = vmatpush1.msra.mxu0 0.0
      %1248 = vmatprep.subr.mxu0 0.0
      %1249 = vmatpush1.msra.mxu0 0.0
      %1250 = vmatprep.subr.mxu0 0.0
      %1251 = vmatpush1.msra.mxu0 0.0
      %1252 = vmatprep.subr.mxu0 0.0
      %1253 = vmatpush1.msra.mxu0 0.0
      %1254 = vmatprep.subr.mxu0 0.0
      %1255 = vmatpush1.msra.mxu0 0.0
      %1256 = vmatprep.subr.mxu0 0.0
      %1257 = vmatpush1.msra.mxu0 0.0
      %1258 = vmatprep.subr.mxu0 0.0
      %1259 = vmatpush1.msra.mxu0 0.0
      %1260 = vmatprep.subr.mxu0 0.0
      %1261 = vmatpush1.msra.mxu0 0.0
      %1262 = vmatprep.subr.mxu0 0.0
      %1263 = vmatpush1.msra.mxu0 0.0
      %1264 = vmatprep.mubr.f32.mxu0 0.0
      %1265 = vmatmul.mubr.f32.gmra.mrb[0].mxu0 %v1192
      %v1266 = vpop.f32.mrb[0].mxu0
      %v1267 = vadd.f32 0.0, %v1266
      %v1268 = vpop.f32.mrb[0].mxu0
      %v1269 = vadd.f32 0.0, %v1268
      %1270 = vdwg.mxu0
      %v1271 = vadd.f32 %v1165, %v1267
      %v1272 = vadd.f32 %v1166, %v1269
      %v1275 = vcombine.low %v1271, %v1272
      %1277 = vst [vmem:[%s286] sm:$0xff] %v1275
      %v1278 = vsel %vm397, %v1271, 0.0
      %v1279 = vsel %vm397, %v1272, 0.0
      %v1280 = vadd.f32 %v1278, %v1279
      %1281 = vadd.xlane.f32.xlu0 %v1280
      %v1282 = vpop.xlane.xlu0 %1281
      %1283 = vst.msk [vmem:[%s291] sm:$0xf] %vm296, %v1282
      %v1284 = vmul.f32 %v1271, %v1271
      %v1285 = vmul.f32 %v1272, %v1272
      %v1286 = vsel %vm397, %v1284, 0.0
      %v1287 = vsel %vm397, %v1285, 0.0
      %v1288 = vadd.f32 %v1286, %v1287
      %1289 = vadd.xlane.f32.xlu0 %v1288
      %v1290 = vpop.xlane.xlu0 %1289
      %s1291 = scalar_lea.vmem %s291, 4
      %1292 = vst.msk [vmem:[%s1291] sm:$0xf] %vm296, %v1290
      %p1293 = scmp.lt.s32.totalorder %s19, 1
      %s1294 = scalar_select %p1293, %s19, 1
      %s1295 = smul.addr %s1294, 2
      %s1296 = smul.addr %s1295, 4
      %s1297 = scalar_lea.vmem %s6, %s1296
      %p1298 = scmp.lt.s32.totalorder %s19, 1
      %s1299 = scalar_select %p1298, %s19, 1
      %s1300 = smul.addr %s1299, 2
      %s1301 = smul.addr %s1300, 4
      %s1302 = scalar_lea.vmem %s7, %s1301
      // Predicated region
      $region45: #{bottleneck_block.5} parent=43 // pred_check
        %p1303 = pneg %p168
      $region46: #{bottleneck_block.5} parent=43 // pred_check_branch
        %1305 = sbr.rel (%p1303) target = $region48
      $region47: #{bottleneck_block.5} parent=43 // pred_region
        _
      $region48: #{bottleneck_block.5} parent=43 // pred_fallthru
        _
      // Predicated region
      $region49: #{bottleneck_block.5} parent=43 // pred_check
        %p1306 = pneg %p194
      $region50: #{bottleneck_block.5} parent=43 // pred_check_branch
        %1308 = sbr.rel (%p1306) target = $region52
      $region51: #{bottleneck_block.5} parent=43 // pred_region
        _
      $region52: #{bottleneck_block.5} parent=43 // pred_fallthru
        _
    $region44: #{bottleneck_block.5} parent=5 // pred_fallthru
      _
    %p1309 = scmp.le.s32.totalorder 2, %s14
    // Predicated region
    $region53: #{bottleneck_block.5} parent=5 // pred_check
      %p1310 = pneg %p1309
    $region54: #{bottleneck_block.5} parent=5 // pred_check_branch
      %1312 = sbr.rel (%p1310) target = $region56
    $region55: #{bottleneck_block.5} parent=5 // pred_region
      %s1313 = ssub.s32 %s14, 2
      // Predicated region
      $region57: #{bottleneck_block.5} parent=55 // pred_check
        %p1314 = pneg %p174
      $region58: #{bottleneck_block.5} parent=55 // pred_check_branch
        %1316 = sbr.rel (%p1314) target = $region60
      $region59: #{bottleneck_block.5} parent=55 // pred_region
        %p1317 = scmp.lt.s32.totalorder %s20, 1
        %s1318 = scalar_select %p1317, %s20, 1
        %s1319 = smul.addr %s1318, 2
        %s1320 = smul.addr %s1319, 4
        %s1321 = scalar_lea.vmem %s6, %s1320
      $region60: #{bottleneck_block.5} parent=55 // pred_fallthru
        _
      // Predicated region
      $region61: #{bottleneck_block.5} parent=55 // pred_check
        %p1322 = pneg %p200
      $region62: #{bottleneck_block.5} parent=55 // pred_check_branch
        %1324 = sbr.rel (%p1322) target = $region64
      $region63: #{bottleneck_block.5} parent=55 // pred_region
        %p1325 = scmp.lt.s32.totalorder %s20, 1
        %s1326 = scalar_select %p1325, %s20, 1
        %s1327 = smul.addr %s1326, 2
        %s1328 = smul.addr %s1327, 4
        %s1329 = scalar_lea.vmem %s7, %s1328
      $region64: #{bottleneck_block.5} parent=55 // pred_fallthru
        _
    $region56: #{bottleneck_block.5} parent=5 // pred_fallthru
      _
  $region6: #{bottleneck_block.5} parent=0 // loop_footer
    %s18 = sadd.s32 1, %s14
  $region7: #{bottleneck_block.5} parent=0 // loop_footer_branch
    %13 = sbr.rel target = $region3
  $region8: #{bottleneck_block.5} parent=0 // loop_exit
    _

</llo_original>
